<compile_context>
chip_gen: v7x
topology: tpu7x:2x2x1
jax: 0.10.0
libtpu: 0.0.40
codegen_flags: <defaults>
</compile_context>

<pallas_src>
import functools

import jax
import jax.numpy as jnp
from jax.experimental import pallas as pl
from jax.experimental.pallas import tpu as pltpu

BN_EPS = 1e-5
TK_BIG = 512                      # reduction tile, used only when the X slab is large
SINGLE_STEP_MAX_BYTES = 8 << 20   # bf16 X slab under this -> run K in one grid step


# ---------------------------------------------------------------------------
# Pallas kernel: matmul (bf16 in, f32 acc) + fused BN / bias / residual / ReLU / softmax
# ---------------------------------------------------------------------------
def _epilogue(y, gamma_ref, beta_ref, res_ref, o_ref, *, bn, relu, softmax):
    """All epilogue math in f32 (v5e has no bf16 VPU/EUP)."""
    if bn:
        # training-mode BatchNorm: batch statistics over M = B*Ho*Wo, per channel
        mean = jnp.mean(y, axis=0, keepdims=True)
        var = jnp.mean(jnp.square(y - mean), axis=0, keepdims=True)
        y = (y - mean) * jax.lax.rsqrt(var + BN_EPS)
        y = y * gamma_ref[...] + beta_ref[...]
    else:
        y = y + beta_ref[...]              # plain bias (linear head)
    if res_ref is not None:
        y = y + res_ref[...]               # residual branch
    if relu:
        y = jnp.maximum(y, 0.0)
    if softmax:
        y = y - jnp.max(y, axis=-1, keepdims=True)
        e = jnp.exp(y)
        y = e / jnp.sum(e, axis=-1, keepdims=True)
    o_ref[...] = y.astype(o_ref.dtype)


def _fused_matmul_kernel(*refs, nk, bn, has_res, relu, softmax):
    # refs layout: x, w, [gamma if bn], beta, [res if has_res], o
    it = iter(refs)
    x_ref = next(it)
    w_ref = next(it)
    gamma_ref = next(it) if bn else None
    beta_ref = next(it)
    res_ref = next(it) if has_res else None
    o_ref = next(it)

    part = jnp.dot(x_ref[...], w_ref[...], preferred_element_type=jnp.float32)

    if nk == 1:
        # Whole K in one step: compute + epilogue, no accumulator needed.
        _epilogue(part, gamma_ref, beta_ref, res_ref, o_ref,
                  bn=bn, relu=relu, softmax=softmax)
    else:
        # K-tiled fallback: output block index is constant across k, so o_ref stays
        # resident and doubles as the f32 accumulator (no VMEM scratch).
        k = pl.program_id(0)

        @pl.when(k == 0)
        def _():
            o_ref[...] = part

        @pl.when(k > 0)
        def _():
            o_ref[...] += part

        @pl.when(k == nk - 1)
        def _():
            _epilogue(o_ref[...], gamma_ref, beta_ref, res_ref, o_ref,
                      bn=bn, relu=relu, softmax=softmax)


def fused_matmul(x, w, *, beta, gamma=None, res=None, bn, relu, softmax=False):
    """x: (M, K), w: (K, N) -> (M, N) float32.  MXU operands cast to bf16."""
    M, K = x.shape
    N = w.shape[1]
    x = x.astype(jnp.bfloat16)
    w = w.astype(jnp.bfloat16)
    beta = beta.reshape(1, N).astype(jnp.float32)
    if bn:
        gamma = gamma.reshape(1, N).astype(jnp.float32)

    if M * K * 2 <= SINGLE_STEP_MAX_BYTES:
        nk, bk = 1, K                      # full K, no padding, no wasted MACs
    else:
        bk = TK_BIG
        Kp = ((K + bk - 1) // bk) * bk
        if Kp != K:                        # zeros add nothing to the accumulation
            x = jnp.pad(x, ((0, 0), (0, Kp - K)))
            w = jnp.pad(w, ((0, Kp - K), (0, 0)))
        nk = Kp // bk

    in_specs = [
        pl.BlockSpec((M, bk), lambda k: (0, k)),   # X tile (full M)
        pl.BlockSpec((bk, N), lambda k: (k, 0)),   # W tile
    ]
    operands = [x, w]
    if bn:
        in_specs.append(pl.BlockSpec((1, N), lambda k: (0, 0)))
        operands.append(gamma)
    in_specs.append(pl.BlockSpec((1, N), lambda k: (0, 0)))
    operands.append(beta)
    has_res = res is not None
    if has_res:
        in_specs.append(pl.BlockSpec((M, N), lambda k: (0, 0)))
        operands.append(res.reshape(M, N).astype(jnp.float32))

    kernel = functools.partial(_fused_matmul_kernel, nk=nk, bn=bn,
                               has_res=has_res, relu=relu, softmax=softmax)
    return pl.pallas_call(
        kernel,
        out_shape=jax.ShapeDtypeStruct((M, N), jnp.float32),
        grid_spec=pltpu.PrefetchScalarGridSpec(
            num_scalar_prefetch=0,
            grid=(nk,),
            in_specs=in_specs,
            out_specs=pl.BlockSpec((M, N), lambda k: (0, 0)),
        ),
        compiler_params=pltpu.CompilerParams(
            dimension_semantics=("arbitrary",)),
    )(*operands)


# ---------------------------------------------------------------------------
# Glue: im2col / layer wrappers (reshape & pad only; all matmuls in Pallas)
# ---------------------------------------------------------------------------
def _im2col_3x3(x, stride):
    """x: (B, H, W, C) NHWC (bf16) -> patches (B*Ho*Wo, 9*C), pad=1, k=3."""
    # TODO(synk): fuse im2col into the kernel via manual DMAs of shifted NHWC slabs
    # to remove the 9x activation blow-up written/read through HBM.
    B, H, W, C = x.shape
    Ho = (H + 2 - 3) // stride + 1
    Wo = (W + 2 - 3) // stride + 1
    xp = jnp.pad(x, ((0, 0), (1, 1), (1, 1), (0, 0)))
    cols = []
    for kh in range(3):
        for kw in range(3):
            cols.append(xp[:, kh:kh + stride * (Ho - 1) + 1:stride,
                           kw:kw + stride * (Wo - 1) + 1:stride, :])
    patches = jnp.stack(cols, axis=3)              # (B, Ho, Wo, 9, C)
    return patches.reshape(B * Ho * Wo, 9 * C), (B, Ho, Wo)


def conv3x3_bn(x, w, gamma, beta, *, stride, relu, res=None):
    """3x3 conv (pad=1, no bias) + BN (+ residual) (+ ReLU). x: NHWC f32."""
    B, H, W, Cin = x.shape
    Cout = w.shape[0]
    patches, (B, Ho, Wo) = _im2col_3x3(x.astype(jnp.bfloat16), stride)
    wm = jnp.transpose(w, (2, 3, 1, 0)).reshape(9 * Cin, Cout)
    res_m = None if res is None else res.reshape(B * Ho * Wo, Cout)
    out = fused_matmul(patches, wm, gamma=gamma, beta=beta, res=res_m,
                       bn=True, relu=relu)
    return out.reshape(B, Ho, Wo, Cout)


def conv1x1_bn(x, w, gamma, beta, *, stride):
    """1x1 conv (no pad, no bias) + BN — the downsampling shortcut. x: NHWC f32."""
    B, H, W, Cin = x.shape
    Cout = w.shape[0]
    xs = x[:, ::stride, ::stride, :]
    Ho, Wo = xs.shape[1], xs.shape[2]
    xm = xs.reshape(B * Ho * Wo, Cin)
    wm = w.reshape(Cout, Cin).T
    out = fused_matmul(xm, wm, gamma=gamma, beta=beta, res=None,
                       bn=True, relu=False)
    return out.reshape(B, Ho, Wo, Cout)


def basic_block(x, blk):
    """BasicBlock (expansion=1): relu(bn2(conv2(relu(bn1(conv1(x))))) + shortcut(x))."""
    stride = blk['stride']
    if 'sc_w' in blk:
        sc = conv1x1_bn(x, blk['sc_w'], *blk['sc_bn'], stride=stride)
    else:
        sc = x
    out = conv3x3_bn(x, blk['w1'], *blk['bn1'], stride=stride, relu=True)
    out = conv3x3_bn(out, blk['w2'], *blk['bn2'], stride=1, relu=True, res=sc)
    return out


def classifier_head(pooled, lin_w, lin_b):
    """linear + softmax, lane-dense: pad N 10 -> 128 (zero weights, -1e30 bias)."""
    num_classes = lin_b.shape[0]
    n_pad = 128
    w = jnp.pad(lin_w.T, ((0, 0), (0, n_pad - num_classes)))            # (512, 128)
    b = jnp.pad(lin_b.astype(jnp.float32), (0, n_pad - num_classes),
                constant_values=-1e30)                                   # (128,)
    probs = fused_matmul(pooled, w, beta=b, gamma=None, res=None,
                         bn=False, relu=False, softmax=True)
    return probs[:, :num_classes]


# ---------------------------------------------------------------------------
# Parameter init (deterministic, PyTorch-shaped) and forward pass
# ---------------------------------------------------------------------------
def init_params(key, num_blocks=(1, 1, 1, 1), num_classes=10):
    keys = iter(jax.random.split(key, 256))

    def conv_w(k, cout, cin, kh, kw):
        fan_in = cin * kh * kw
        return (jax.random.normal(k, (cout, cin, kh, kw), jnp.float32)
                * jnp.sqrt(2.0 / fan_in))

    def bn_p(k, c):
        k1, k2 = jax.random.split(k)
        gamma = 1.0 + 0.1 * jax.random.normal(k1, (c,), jnp.float32)
        beta = 0.1 * jax.random.normal(k2, (c,), jnp.float32)
        return (gamma, beta)

    params = {
        'conv1_w': conv_w(next(keys), 64, 1, 3, 3),
        'bn1': bn_p(next(keys), 64),
    }
    in_planes = 64
    layers = []
    for planes, nb, stride0 in zip((64, 128, 256, 512), num_blocks, (1, 2, 2, 2)):
        blocks = []
        for s in [stride0] + [1] * (nb - 1):
            blk = {
                'stride': s,
                'w1': conv_w(next(keys), planes, in_planes, 3, 3),
                'bn1': bn_p(next(keys), planes),
                'w2': conv_w(next(keys), planes, planes, 3, 3),
                'bn2': bn_p(next(keys), planes),
            }
            if s != 1 or in_planes != planes:
                blk['sc_w'] = conv_w(next(keys), planes, in_planes, 1, 1)
                blk['sc_bn'] = bn_p(next(keys), planes)
            blocks.append(blk)
            in_planes = planes
        layers.append(blocks)
    params['layers'] = layers
    params['lin_w'] = (jax.random.normal(next(keys), (num_classes, 512),
                                         jnp.float32) * jnp.sqrt(1.0 / 512))
    params['lin_b'] = 0.1 * jax.random.normal(next(keys), (num_classes,),
                                              jnp.float32)
    return params


def resnet_forward(params, x_nchw):
    # NCHW (PyTorch) -> NHWC for the kernels
    x = jnp.transpose(x_nchw, (0, 2, 3, 1)).astype(jnp.float32)

    # stem: relu(bn1(conv1(x)))
    x = conv3x3_bn(x, params['conv1_w'], *params['bn1'], stride=1, relu=True)

    for blocks in params['layers']:
        for blk in blocks:
            x = basic_block(x, blk)

    # F.avg_pool2d(out, 4): for 28x28 MNIST inputs the final feature map is exactly
    # 4x4, so the 4x4 average pool == global spatial mean (tiny reduction in glue).
    pooled = jnp.mean(x, axis=(1, 2))  # (B, 512)

    # linear + softmax(dim=1), fused in the Pallas matmul kernel (lane-padded to 128)
    return classifier_head(pooled, params['lin_w'], params['lin_b'])


if __name__ == "__main__":
    key = jax.random.PRNGKey(0)
    pkey, xkey = jax.random.split(key)

    # ResNet(block=BasicBlock, num_blocks=[1,1,1,1]) on MNIST-shaped input.
    params = init_params(pkey, num_blocks=(1, 1, 1, 1), num_classes=10)
    x = jax.random.normal(xkey, (2, 1, 28, 28), jnp.float32)

    out = resnet_forward(params, x)
    out = jax.block_until_ready(out)

    assert out.shape == (2, 10), out.shape
    row_sums = jnp.sum(out, axis=1)
    assert bool(jnp.all(jnp.abs(row_sums - 1.0) < 1e-4)), row_sums
    assert bool(jnp.all(jnp.isfinite(out)))
    print("KERNEL_OK")
</pallas_src>

<mosaic_0001>
module attributes {stable_mosaic.version = 11 : i64} {
  func.func @_fused_matmul_kernel(%arg0: i32, %arg1: memref<1568x9xbf16, #tpu.memory_space<vmem>>, %arg2: memref<9x64xbf16, #tpu.memory_space<vmem>>, %arg3: memref<1x64xf32, #tpu.memory_space<vmem>>, %arg4: memref<1x64xf32, #tpu.memory_space<vmem>>, %arg5: memref<1568x64xf32, #tpu.memory_space<vmem>>) attributes {dimension_semantics = [#tpu.dimension_semantics<arbitrary>], iteration_bounds = array<i64: 1>, scalar_prefetch = 0 : i64, scratch_operands = 0 : i64, tpu.core_type = #tpu.core_type<tc>, window_params = [{transform_indices = @transform_0, window_bounds = array<i64: 1568, 9>}, {transform_indices = @transform_1, window_bounds = array<i64: 9, 64>}, {pipeline_mode = #tpu.pipeline_mode<synchronous>, transform_indices = @transform_2, window_bounds = array<i64: 1, 64>}, {pipeline_mode = #tpu.pipeline_mode<synchronous>, transform_indices = @transform_3, window_bounds = array<i64: 1, 64>}, {pipeline_mode = #tpu.pipeline_mode<synchronous>, transform_indices = @transform_4, window_bounds = array<i64: 1568, 64>}]} {
    %c0 = arith.constant 0 : index
    %c0_0 = arith.constant 0 : index
    %0 = vector.load %arg1[%c0, %c0_0] : memref<1568x9xbf16, #tpu.memory_space<vmem>>, vector<1568x9xbf16>
    %c0_1 = arith.constant 0 : index
    %c0_2 = arith.constant 0 : index
    %1 = vector.load %arg2[%c0_1, %c0_2] : memref<9x64xbf16, #tpu.memory_space<vmem>>, vector<9x64xbf16>
    %cst = arith.constant dense<0.000000e+00> : vector<1568x64xf32>
    %2 = tpu.matmul %0, %1, %cst {dimension_numbers = #tpu.dot_dimension_numbers<[1], [0], [0], [1], [0, 0, 1, 1], [], []>} : vector<1568x9xbf16>, vector<9x64xbf16>, vector<1568x64xf32> -> vector<1568x64xf32>
    %cst_3 = arith.constant dense<0.000000e+00> : vector<64xf32>
    %3 = vector.multi_reduction <add>, %2, %cst_3 [0] : vector<1568x64xf32> to vector<64xf32>
    %4 = vector.shape_cast %3 : vector<64xf32> to vector<1x64xf32>
    %cst_4 = arith.constant 1.568000e+03 : f32
    %5 = vector.broadcast %cst_4 : f32 to vector<1x64xf32>
    %6 = arith.divf %4, %5 : vector<1x64xf32>
    %7 = vector.broadcast %6 : vector<1x64xf32> to vector<1568x64xf32>
    %8 = arith.subf %2, %7 : vector<1568x64xf32>
    %9 = arith.mulf %8, %8 : vector<1568x64xf32>
    %cst_5 = arith.constant dense<0.000000e+00> : vector<64xf32>
    %10 = vector.multi_reduction <add>, %9, %cst_5 [0] : vector<1568x64xf32> to vector<64xf32>
    %11 = vector.shape_cast %10 : vector<64xf32> to vector<1x64xf32>
    %cst_6 = arith.constant 1.568000e+03 : f32
    %12 = vector.broadcast %cst_6 : f32 to vector<1x64xf32>
    %13 = arith.divf %11, %12 : vector<1x64xf32>
    %14 = vector.broadcast %6 : vector<1x64xf32> to vector<1568x64xf32>
    %15 = arith.subf %2, %14 : vector<1568x64xf32>
    %cst_7 = arith.constant 9.99999974E-6 : f32
    %16 = vector.broadcast %cst_7 : f32 to vector<1x64xf32>
    %17 = arith.addf %13, %16 : vector<1x64xf32>
    %18 = math.rsqrt %17 : vector<1x64xf32>
    %19 = vector.broadcast %18 : vector<1x64xf32> to vector<1568x64xf32>
    %20 = arith.mulf %15, %19 : vector<1568x64xf32>
    %c0_8 = arith.constant 0 : index
    %c0_9 = arith.constant 0 : index
    %21 = vector.load %arg3[%c0_8, %c0_9] : memref<1x64xf32, #tpu.memory_space<vmem>>, vector<1x64xf32>
    %22 = vector.broadcast %21 : vector<1x64xf32> to vector<1568x64xf32>
    %23 = arith.mulf %20, %22 : vector<1568x64xf32>
    %c0_10 = arith.constant 0 : index
    %c0_11 = arith.constant 0 : index
    %24 = vector.load %arg4[%c0_10, %c0_11] : memref<1x64xf32, #tpu.memory_space<vmem>>, vector<1x64xf32>
    %25 = vector.broadcast %24 : vector<1x64xf32> to vector<1568x64xf32>
    %26 = arith.addf %23, %25 : vector<1568x64xf32>
    %cst_12 = arith.constant 0.000000e+00 : f32
    %27 = vector.broadcast %cst_12 : f32 to vector<1568x64xf32>
    %28 = arith.maximumf %26, %27 : vector<1568x64xf32>
    %c0_13 = arith.constant 0 : index
    %c0_14 = arith.constant 0 : index
    %29 = vector.load %arg5[%c0_13, %c0_14] : memref<1568x64xf32, #tpu.memory_space<vmem>>, vector<1568x64xf32>
    tpu.vector_store %arg5[%c0_13, %c0_14], %28 {strides = array<i32>} : memref<1568x64xf32, #tpu.memory_space<vmem>>, vector<1568x64xf32>,
    return
  }
  func.func @transform_0(%arg0: i32) -> (i32, i32) {
    %c0_i32 = arith.constant 0 : i32
    %c0_i32_0 = arith.constant 0 : i32
    return %c0_i32, %arg0 : i32, i32
  }
  func.func @transform_1(%arg0: i32) -> (i32, i32) {
    %c0_i32 = arith.constant 0 : i32
    %c0_i32_0 = arith.constant 0 : i32
    return %arg0, %c0_i32 : i32, i32
  }
  func.func @transform_2(%arg0: i32) -> (i32, i32) {
    %c0_i32 = arith.constant 0 : i32
    %c0_i32_0 = arith.constant 0 : i32
    %c0_i32_1 = arith.constant 0 : i32
    return %c0_i32, %c0_i32_0 : i32, i32
  }
  func.func @transform_3(%arg0: i32) -> (i32, i32) {
    %c0_i32 = arith.constant 0 : i32
    %c0_i32_0 = arith.constant 0 : i32
    %c0_i32_1 = arith.constant 0 : i32
    return %c0_i32, %c0_i32_0 : i32, i32
  }
  func.func @transform_4(%arg0: i32) -> (i32, i32) {
    %c0_i32 = arith.constant 0 : i32
    %c0_i32_0 = arith.constant 0 : i32
    %c0_i32_1 = arith.constant 0 : i32
    return %c0_i32, %c0_i32_0 : i32, i32
  }
}

</mosaic_0001>

<llo_original>
// kernel: tpu_custom_call.1
$region0: #{tpu_custom_call.1}
  #allocation0 [shape = 'u32[]', space=smem, size = 0x4, offset = 0x4, fixed_abs, tag = 'smem constant byte address 0x4 - core index']
  #allocation1 [shape = 'u32[144,128]{1,0:T(1,128)}', space=vmem, size = 0x12000, scoped, tag = 'internal scratch']
  %s0 = inlined_call_operand.vmem [shape: bf16[1568,9], index: 0, kind: input, shape index: {}]
  %s1 = inlined_call_operand.vmem [shape: bf16[9,64], index: 1, kind: input, shape index: {}]
  %s2 = inlined_call_operand.vmem [shape: f32[1,64], index: 2, kind: input, shape index: {}]
  %s3 = inlined_call_operand.vmem [shape: f32[1,64], index: 3, kind: input, shape index: {}]
  %s4 = inlined_call_operand.vmem [shape: f32[1568,64], index: 4, kind: output, shape index: {}]
  %s5 = sld [smem:[#allocation0]]
  $region26: #{tpu_custom_call.1} parent=0
    _
  %s7 = ssub.s32 1, %s5
  %s8 = scalar_select 0, %s7, %s5
  // Predicated region
  $region2: #{tpu_custom_call.1} parent=0 // pred_check
    _
  $region3: #{tpu_custom_call.1} parent=0 // pred_check_branch
    %10 = sbr.rel (0) target = $region5
  $region4: #{tpu_custom_call.1} parent=0 // pred_region
    _
  $region5: #{tpu_custom_call.1} parent=0 // pred_fallthru
    _
  // Predicated region
  $region6: #{tpu_custom_call.1} parent=0 // pred_check
    _
  $region7: #{tpu_custom_call.1} parent=0 // pred_check_branch
    %12 = sbr.rel (0) target = $region9
  $region8: #{tpu_custom_call.1} parent=0 // pred_region
    _
  $region9: #{tpu_custom_call.1} parent=0 // pred_fallthru
    _
  // Predicated region
  $region10: #{tpu_custom_call.1} parent=0 // pred_check
    _
  $region11: #{tpu_custom_call.1} parent=0 // pred_check_branch
    %14 = sbr.rel (0) target = $region13
  $region12: #{tpu_custom_call.1} parent=0 // pred_region
    _
  $region13: #{tpu_custom_call.1} parent=0 // pred_fallthru
    _
  // Predicated region
  $region14: #{tpu_custom_call.1} parent=0 // pred_check
    _
  $region15: #{tpu_custom_call.1} parent=0 // pred_check_branch
    %16 = sbr.rel (0) target = $region17
  $region16: #{tpu_custom_call.1} parent=0 // pred_region
    _
  $region17: #{tpu_custom_call.1} parent=0 // pred_fallthru
    _
  %v18 = vld [vmem:[%s0] sm:$0xf]
  %v19 = vld [vmem:[%s0 + $0x4] sm:$0xf]
  %v20 = vld [vmem:[%s0 + $0x8] sm:$0xf]
  %v21 = vld [vmem:[%s0 + $0xc] sm:$0xf]
  %v22 = vld [vmem:[%s0 + $0x10] sm:$0xf]
  %v23 = vld [vmem:[%s0 + $0x14] sm:$0xf]
  %v24 = vld [vmem:[%s0 + $0x18] sm:$0xf]
  %v25 = vld [vmem:[%s0 + $0x1c] sm:$0xf]
  %v26 = vld [vmem:[%s0 + $0x20] sm:$0xf]
  %v27 = vld [vmem:[%s0 + $0x24] sm:$0xf]
  %v28 = vld [vmem:[%s0 + $0x28] sm:$0xf]
  %v29 = vld [vmem:[%s0 + $0x2c] sm:$0xf]
  %v30 = vld [vmem:[%s0 + $0x30] sm:$0xf]
  %v31 = vld [vmem:[%s0 + $0x34] sm:$0xf]
  %v32 = vld [vmem:[%s0 + $0x38] sm:$0xf]
  %v33 = vld [vmem:[%s0 + $0x3c] sm:$0xf]
  %v34 = vld [vmem:[%s0 + $0x40] sm:$0xf]
  %v35 = vld [vmem:[%s0 + $0x44] sm:$0xf]
  %v36 = vld [vmem:[%s0 + $0x48] sm:$0xf]
  %v37 = vld [vmem:[%s0 + $0x4c] sm:$0xf]
  %v38 = vld [vmem:[%s0 + $0x50] sm:$0xf]
  %v39 = vld [vmem:[%s0 + $0x54] sm:$0xf]
  %v40 = vld [vmem:[%s0 + $0x58] sm:$0xf]
  %v41 = vld [vmem:[%s0 + $0x5c] sm:$0xf]
  %v42 = vld [vmem:[%s0 + $0x60] sm:$0xf]
  %v43 = vld [vmem:[%s0 + $0x64] sm:$0xf]
  %v44 = vld [vmem:[%s0 + $0x68] sm:$0xf]
  %v45 = vld [vmem:[%s0 + $0x6c] sm:$0xf]
  %v46 = vld [vmem:[%s0 + $0x70] sm:$0xf]
  %v47 = vld [vmem:[%s0 + $0x74] sm:$0xf]
  %v48 = vld [vmem:[%s0 + $0x78] sm:$0xf]
  %v49 = vld [vmem:[%s0 + $0x7c] sm:$0xf]
  %v50 = vld [vmem:[%s0 + $0x80] sm:$0xf]
  %v51 = vld [vmem:[%s0 + $0x84] sm:$0xf]
  %v52 = vld [vmem:[%s0 + $0x88] sm:$0xf]
  %v53 = vld [vmem:[%s0 + $0x8c] sm:$0xf]
  %v54 = vld [vmem:[%s0 + $0x90] sm:$0xf]
  %v55 = vld [vmem:[%s0 + $0x94] sm:$0xf]
  %v56 = vld [vmem:[%s0 + $0x98] sm:$0xf]
  %v57 = vld [vmem:[%s0 + $0x9c] sm:$0xf]
  %v58 = vld [vmem:[%s0 + $0xa0] sm:$0xf]
  %v59 = vld [vmem:[%s0 + $0xa4] sm:$0xf]
  %v60 = vld [vmem:[%s0 + $0xa8] sm:$0xf]
  %v61 = vld [vmem:[%s0 + $0xac] sm:$0xf]
  %v62 = vld [vmem:[%s0 + $0xb0] sm:$0xf]
  %v63 = vld [vmem:[%s0 + $0xb4] sm:$0xf]
  %v64 = vld [vmem:[%s0 + $0xb8] sm:$0xf]
  %v65 = vld [vmem:[%s0 + $0xbc] sm:$0xf]
  %v66 = vld [vmem:[%s0 + $0xc0] sm:$0xf]
  %v67 = vld [vmem:[%s0 + $0xc4] sm:$0xf]
  %v68 = vld [vmem:[%s0 + $0xc8] sm:$0xf]
  %v69 = vld [vmem:[%s0 + $0xcc] sm:$0xf]
  %v70 = vld [vmem:[%s0 + $0xd0] sm:$0xf]
  %v71 = vld [vmem:[%s0 + $0xd4] sm:$0xf]
  %v72 = vld [vmem:[%s0 + $0xd8] sm:$0xf]
  %v73 = vld [vmem:[%s0 + $0xdc] sm:$0xf]
  %v74 = vld [vmem:[%s0 + $0xe0] sm:$0xf]
  %v75 = vld [vmem:[%s0 + $0xe4] sm:$0xf]
  %v76 = vld [vmem:[%s0 + $0xe8] sm:$0xf]
  %v77 = vld [vmem:[%s0 + $0xec] sm:$0xf]
  %v78 = vld [vmem:[%s0 + $0xf0] sm:$0xf]
  %v79 = vld [vmem:[%s0 + $0xf4] sm:$0xf]
  %v80 = vld [vmem:[%s0 + $0xf8] sm:$0xf]
  %v81 = vld [vmem:[%s0 + $0xfc] sm:$0xf]
  %v82 = vld [vmem:[%s0 + $0x100] sm:$0xf]
  %v83 = vld [vmem:[%s0 + $0x104] sm:$0xf]
  %v84 = vld [vmem:[%s0 + $0x108] sm:$0xf]
  %v85 = vld [vmem:[%s0 + $0x10c] sm:$0xf]
  %v86 = vld [vmem:[%s0 + $0x110] sm:$0xf]
  %v87 = vld [vmem:[%s0 + $0x114] sm:$0xf]
  %v88 = vld [vmem:[%s0 + $0x118] sm:$0xf]
  %v89 = vld [vmem:[%s0 + $0x11c] sm:$0xf]
  %v90 = vld [vmem:[%s0 + $0x120] sm:$0xf]
  %v91 = vld [vmem:[%s0 + $0x124] sm:$0xf]
  %v92 = vld [vmem:[%s0 + $0x128] sm:$0xf]
  %v93 = vld [vmem:[%s0 + $0x12c] sm:$0xf]
  %v94 = vld [vmem:[%s0 + $0x130] sm:$0xf]
  %v95 = vld [vmem:[%s0 + $0x134] sm:$0xf]
  %v96 = vld [vmem:[%s0 + $0x138] sm:$0xf]
  %v97 = vld [vmem:[%s0 + $0x13c] sm:$0xf]
  %v98 = vld [vmem:[%s0 + $0x140] sm:$0xf]
  %v99 = vld [vmem:[%s0 + $0x144] sm:$0xf]
  %v100 = vld [vmem:[%s0 + $0x148] sm:$0xf]
  %v101 = vld [vmem:[%s0 + $0x14c] sm:$0xf]
  %v102 = vld [vmem:[%s0 + $0x150] sm:$0xf]
  %v103 = vld [vmem:[%s0 + $0x154] sm:$0xf]
  %v104 = vld [vmem:[%s0 + $0x158] sm:$0xf]
  %v105 = vld [vmem:[%s0 + $0x15c] sm:$0xf]
  %v106 = vld [vmem:[%s0 + $0x160] sm:$0xf]
  %v107 = vld [vmem:[%s0 + $0x164] sm:$0xf]
  %v108 = vld [vmem:[%s0 + $0x168] sm:$0xf]
  %v109 = vld [vmem:[%s0 + $0x16c] sm:$0xf]
  %v110 = vld [vmem:[%s0 + $0x170] sm:$0xf]
  %v111 = vld [vmem:[%s0 + $0x174] sm:$0xf]
  %v112 = vld [vmem:[%s0 + $0x178] sm:$0xf]
  %v113 = vld [vmem:[%s0 + $0x17c] sm:$0xf]
  %v114 = vld [vmem:[%s0 + $0x180] sm:$0xf]
  %v115 = vld [vmem:[%s0 + $0x184] sm:$0xf]
  %v116 = vld [vmem:[%s0 + $0x188] sm:$0xf]
  %v117 = vld [vmem:[%s0 + $0x18c] sm:$0xf]
  %v118 = vld [vmem:[%s0 + $0x190] sm:$0xf]
  %v119 = vld [vmem:[%s0 + $0x194] sm:$0xf]
  %v120 = vld [vmem:[%s0 + $0x198] sm:$0xf]
  %v121 = vld [vmem:[%s0 + $0x19c] sm:$0xf]
  %v122 = vld [vmem:[%s0 + $0x1a0] sm:$0xf]
  %v123 = vld [vmem:[%s0 + $0x1a4] sm:$0xf]
  %v124 = vld [vmem:[%s0 + $0x1a8] sm:$0xf]
  %v125 = vld [vmem:[%s0 + $0x1ac] sm:$0xf]
  %v126 = vld [vmem:[%s0 + $0x1b0] sm:$0xf]
  %v127 = vld [vmem:[%s0 + $0x1b4] sm:$0xf]
  %v128 = vld [vmem:[%s0 + $0x1b8] sm:$0xf]
  %v129 = vld [vmem:[%s0 + $0x1bc] sm:$0xf]
  %v130 = vld [vmem:[%s0 + $0x1c0] sm:$0xf]
  %v131 = vld [vmem:[%s0 + $0x1c4] sm:$0xf]
  %v132 = vld [vmem:[%s0 + $0x1c8] sm:$0xf]
  %v133 = vld [vmem:[%s0 + $0x1cc] sm:$0xf]
  %v134 = vld [vmem:[%s0 + $0x1d0] sm:$0xf]
  %v135 = vld [vmem:[%s0 + $0x1d4] sm:$0xf]
  %v136 = vld [vmem:[%s0 + $0x1d8] sm:$0xf]
  %v137 = vld [vmem:[%s0 + $0x1dc] sm:$0xf]
  %v138 = vld [vmem:[%s0 + $0x1e0] sm:$0xf]
  %v139 = vld [vmem:[%s0 + $0x1e4] sm:$0xf]
  %v140 = vld [vmem:[%s0 + $0x1e8] sm:$0xf]
  %v141 = vld [vmem:[%s0 + $0x1ec] sm:$0xf]
  %v142 = vld [vmem:[%s0 + $0x1f0] sm:$0xf]
  %v143 = vld [vmem:[%s0 + $0x1f4] sm:$0xf]
  %v144 = vld [vmem:[%s0 + $0x1f8] sm:$0xf]
  %v145 = vld [vmem:[%s0 + $0x1fc] sm:$0xf]
  %v146 = vld [vmem:[%s0 + $0x200] sm:$0xf]
  %v147 = vld [vmem:[%s0 + $0x204] sm:$0xf]
  %v148 = vld [vmem:[%s0 + $0x208] sm:$0xf]
  %v149 = vld [vmem:[%s0 + $0x20c] sm:$0xf]
  %v150 = vld [vmem:[%s0 + $0x210] sm:$0xf]
  %v151 = vld [vmem:[%s0 + $0x214] sm:$0xf]
  %v152 = vld [vmem:[%s0 + $0x218] sm:$0xf]
  %v153 = vld [vmem:[%s0 + $0x21c] sm:$0xf]
  %v154 = vld [vmem:[%s0 + $0x220] sm:$0xf]
  %v155 = vld [vmem:[%s0 + $0x224] sm:$0xf]
  %v156 = vld [vmem:[%s0 + $0x228] sm:$0xf]
  %v157 = vld [vmem:[%s0 + $0x22c] sm:$0xf]
  %v158 = vld [vmem:[%s0 + $0x230] sm:$0xf]
  %v159 = vld [vmem:[%s0 + $0x234] sm:$0xf]
  %v160 = vld [vmem:[%s0 + $0x238] sm:$0xf]
  %v161 = vld [vmem:[%s0 + $0x23c] sm:$0xf]
  %v162 = vld [vmem:[%s0 + $0x240] sm:$0xf]
  %v163 = vld [vmem:[%s0 + $0x244] sm:$0xf]
  %v164 = vld [vmem:[%s0 + $0x248] sm:$0xf]
  %v165 = vld [vmem:[%s0 + $0x24c] sm:$0xf]
  %v166 = vld [vmem:[%s0 + $0x250] sm:$0xf]
  %v167 = vld [vmem:[%s0 + $0x254] sm:$0xf]
  %v168 = vld [vmem:[%s0 + $0x258] sm:$0xf]
  %v169 = vld [vmem:[%s0 + $0x25c] sm:$0xf]
  %v170 = vld [vmem:[%s0 + $0x260] sm:$0xf]
  %v171 = vld [vmem:[%s0 + $0x264] sm:$0xf]
  %v172 = vld [vmem:[%s0 + $0x268] sm:$0xf]
  %v173 = vld [vmem:[%s0 + $0x26c] sm:$0xf]
  %v174 = vld [vmem:[%s0 + $0x270] sm:$0xf]
  %v175 = vld [vmem:[%s0 + $0x274] sm:$0xf]
  %v176 = vld [vmem:[%s0 + $0x278] sm:$0xf]
  %v177 = vld [vmem:[%s0 + $0x27c] sm:$0xf]
  %v178 = vld [vmem:[%s0 + $0x280] sm:$0xf]
  %v179 = vld [vmem:[%s0 + $0x284] sm:$0xf]
  %v180 = vld [vmem:[%s0 + $0x288] sm:$0xf]
  %v181 = vld [vmem:[%s0 + $0x28c] sm:$0xf]
  %v182 = vld [vmem:[%s0 + $0x290] sm:$0xf]
  %v183 = vld [vmem:[%s0 + $0x294] sm:$0xf]
  %v184 = vld [vmem:[%s0 + $0x298] sm:$0xf]
  %v185 = vld [vmem:[%s0 + $0x29c] sm:$0xf]
  %v186 = vld [vmem:[%s0 + $0x2a0] sm:$0xf]
  %v187 = vld [vmem:[%s0 + $0x2a4] sm:$0xf]
  %v188 = vld [vmem:[%s0 + $0x2a8] sm:$0xf]
  %v189 = vld [vmem:[%s0 + $0x2ac] sm:$0xf]
  %v190 = vld [vmem:[%s0 + $0x2b0] sm:$0xf]
  %v191 = vld [vmem:[%s0 + $0x2b4] sm:$0xf]
  %v192 = vld [vmem:[%s0 + $0x2b8] sm:$0xf]
  %v193 = vld [vmem:[%s0 + $0x2bc] sm:$0xf]
  %v194 = vld [vmem:[%s0 + $0x2c0] sm:$0xf]
  %v195 = vld [vmem:[%s0 + $0x2c4] sm:$0xf]
  %v196 = vld [vmem:[%s0 + $0x2c8] sm:$0xf]
  %v197 = vld [vmem:[%s0 + $0x2cc] sm:$0xf]
  %v198 = vld [vmem:[%s0 + $0x2d0] sm:$0xf]
  %v199 = vld [vmem:[%s0 + $0x2d4] sm:$0xf]
  %v200 = vld [vmem:[%s0 + $0x2d8] sm:$0xf]
  %v201 = vld [vmem:[%s0 + $0x2dc] sm:$0xf]
  %v202 = vld [vmem:[%s0 + $0x2e0] sm:$0xf]
  %v203 = vld [vmem:[%s0 + $0x2e4] sm:$0xf]
  %v204 = vld [vmem:[%s0 + $0x2e8] sm:$0xf]
  %v205 = vld [vmem:[%s0 + $0x2ec] sm:$0xf]
  %v206 = vld [vmem:[%s0 + $0x2f0] sm:$0xf]
  %v207 = vld [vmem:[%s0 + $0x2f4] sm:$0xf]
  %v208 = vld [vmem:[%s0 + $0x2f8] sm:$0xf]
  %v209 = vld [vmem:[%s0 + $0x2fc] sm:$0xf]
  %v210 = vld [vmem:[%s0 + $0x300] sm:$0xf]
  %v211 = vld [vmem:[%s0 + $0x304] sm:$0xf]
  %v212 = vld [vmem:[%s0 + $0x308] sm:$0xf]
  %v213 = vld [vmem:[%s0 + $0x30c] sm:$0xf]
  %v214 = vld [vmem:[%s1] sm:$0xf]
  %v215 = vld [vmem:[%s1 + $0x4] sm:$0x1]
  %v412 = vunpack.c.l.b16 %v18
  %v413 = vunpack.c.l.b16 %v19
  %v414 = vunpack.c.l.b16 %v20
  %v415 = vunpack.c.l.b16 %v21
  %v416 = vunpack.c.l.b16 %v22
  %v417 = vunpack.c.l.b16 %v23
  %v418 = vunpack.c.l.b16 %v24
  %v419 = vunpack.c.l.b16 %v25
  %v420 = vunpack.c.l.b16 %v26
  %v421 = vunpack.c.l.b16 %v27
  %v422 = vunpack.c.l.b16 %v28
  %v423 = vunpack.c.l.b16 %v29
  %v424 = vunpack.c.l.b16 %v30
  %v425 = vunpack.c.l.b16 %v31
  %v426 = vunpack.c.l.b16 %v32
  %v427 = vunpack.c.l.b16 %v33
  %v428 = vunpack.c.l.b16 %v34
  %v429 = vunpack.c.l.b16 %v35
  %v430 = vunpack.c.l.b16 %v36
  %v431 = vunpack.c.l.b16 %v37
  %v432 = vunpack.c.l.b16 %v38
  %v433 = vunpack.c.l.b16 %v39
  %v434 = vunpack.c.l.b16 %v40
  %v435 = vunpack.c.l.b16 %v41
  %v436 = vunpack.c.l.b16 %v42
  %v437 = vunpack.c.l.b16 %v43
  %v438 = vunpack.c.l.b16 %v44
  %v439 = vunpack.c.l.b16 %v45
  %v440 = vunpack.c.l.b16 %v46
  %v441 = vunpack.c.l.b16 %v47
  %v442 = vunpack.c.l.b16 %v48
  %v443 = vunpack.c.l.b16 %v49
  %v444 = vunpack.c.l.b16 %v50
  %v445 = vunpack.c.l.b16 %v51
  %v446 = vunpack.c.l.b16 %v52
  %v447 = vunpack.c.l.b16 %v53
  %v448 = vunpack.c.l.b16 %v54
  %v449 = vunpack.c.l.b16 %v55
  %v450 = vunpack.c.l.b16 %v56
  %v451 = vunpack.c.l.b16 %v57
  %v452 = vunpack.c.l.b16 %v58
  %v453 = vunpack.c.l.b16 %v59
  %v454 = vunpack.c.l.b16 %v60
  %v455 = vunpack.c.l.b16 %v61
  %v456 = vunpack.c.l.b16 %v62
  %v457 = vunpack.c.l.b16 %v63
  %v458 = vunpack.c.l.b16 %v64
  %v459 = vunpack.c.l.b16 %v65
  %v460 = vunpack.c.l.b16 %v66
  %v461 = vunpack.c.l.b16 %v67
  %v462 = vunpack.c.l.b16 %v68
  %v463 = vunpack.c.l.b16 %v69
  %v464 = vunpack.c.l.b16 %v70
  %v465 = vunpack.c.l.b16 %v71
  %v466 = vunpack.c.l.b16 %v72
  %v467 = vunpack.c.l.b16 %v73
  %v468 = vunpack.c.l.b16 %v74
  %v469 = vunpack.c.l.b16 %v75
  %v470 = vunpack.c.l.b16 %v76
  %v471 = vunpack.c.l.b16 %v77
  %v472 = vunpack.c.l.b16 %v78
  %v473 = vunpack.c.l.b16 %v79
  %v474 = vunpack.c.l.b16 %v80
  %v475 = vunpack.c.l.b16 %v81
  %v476 = vunpack.c.l.b16 %v82
  %v477 = vunpack.c.l.b16 %v83
  %v478 = vunpack.c.l.b16 %v84
  %v479 = vunpack.c.l.b16 %v85
  %v480 = vunpack.c.l.b16 %v86
  %v481 = vunpack.c.l.b16 %v87
  %v482 = vunpack.c.l.b16 %v88
  %v483 = vunpack.c.l.b16 %v89
  %v484 = vunpack.c.l.b16 %v90
  %v485 = vunpack.c.l.b16 %v91
  %v486 = vunpack.c.l.b16 %v92
  %v487 = vunpack.c.l.b16 %v93
  %v488 = vunpack.c.l.b16 %v94
  %v489 = vunpack.c.l.b16 %v95
  %v490 = vunpack.c.l.b16 %v96
  %v491 = vunpack.c.l.b16 %v97
  %v492 = vunpack.c.l.b16 %v98
  %v493 = vunpack.c.l.b16 %v99
  %v494 = vunpack.c.l.b16 %v100
  %v495 = vunpack.c.l.b16 %v101
  %v496 = vunpack.c.l.b16 %v102
  %v497 = vunpack.c.l.b16 %v103
  %v498 = vunpack.c.l.b16 %v104
  %v499 = vunpack.c.l.b16 %v105
  %v500 = vunpack.c.l.b16 %v106
  %v501 = vunpack.c.l.b16 %v107
  %v502 = vunpack.c.l.b16 %v108
  %v503 = vunpack.c.l.b16 %v109
  %v504 = vunpack.c.l.b16 %v110
  %v505 = vunpack.c.l.b16 %v111
  %v506 = vunpack.c.l.b16 %v112
  %v507 = vunpack.c.l.b16 %v113
  %v508 = vunpack.c.l.b16 %v114
  %v509 = vunpack.c.l.b16 %v115
  %v510 = vunpack.c.l.b16 %v116
  %v511 = vunpack.c.l.b16 %v117
  %v512 = vunpack.c.l.b16 %v118
  %v513 = vunpack.c.l.b16 %v119
  %v514 = vunpack.c.l.b16 %v120
  %v515 = vunpack.c.l.b16 %v121
  %v516 = vunpack.c.l.b16 %v122
  %v517 = vunpack.c.l.b16 %v123
  %v518 = vunpack.c.l.b16 %v124
  %v519 = vunpack.c.l.b16 %v125
  %v520 = vunpack.c.l.b16 %v126
  %v521 = vunpack.c.l.b16 %v127
  %v522 = vunpack.c.l.b16 %v128
  %v523 = vunpack.c.l.b16 %v129
  %v524 = vunpack.c.l.b16 %v130
  %v525 = vunpack.c.l.b16 %v131
  %v526 = vunpack.c.l.b16 %v132
  %v527 = vunpack.c.l.b16 %v133
  %v528 = vunpack.c.l.b16 %v134
  %v529 = vunpack.c.l.b16 %v135
  %v530 = vunpack.c.l.b16 %v136
  %v531 = vunpack.c.l.b16 %v137
  %v532 = vunpack.c.l.b16 %v138
  %v533 = vunpack.c.l.b16 %v139
  %v534 = vunpack.c.l.b16 %v140
  %v535 = vunpack.c.l.b16 %v141
  %v536 = vunpack.c.l.b16 %v142
  %v537 = vunpack.c.l.b16 %v143
  %v538 = vunpack.c.l.b16 %v144
  %v539 = vunpack.c.l.b16 %v145
  %v540 = vunpack.c.l.b16 %v146
  %v541 = vunpack.c.l.b16 %v147
  %v542 = vunpack.c.l.b16 %v148
  %v543 = vunpack.c.l.b16 %v149
  %v544 = vunpack.c.l.b16 %v150
  %v545 = vunpack.c.l.b16 %v151
  %v546 = vunpack.c.l.b16 %v152
  %v547 = vunpack.c.l.b16 %v153
  %v548 = vunpack.c.l.b16 %v154
  %v549 = vunpack.c.l.b16 %v155
  %v550 = vunpack.c.l.b16 %v156
  %v551 = vunpack.c.l.b16 %v157
  %v552 = vunpack.c.l.b16 %v158
  %v553 = vunpack.c.l.b16 %v159
  %v554 = vunpack.c.l.b16 %v160
  %v555 = vunpack.c.l.b16 %v161
  %v556 = vunpack.c.l.b16 %v162
  %v557 = vunpack.c.l.b16 %v163
  %v558 = vunpack.c.l.b16 %v164
  %v559 = vunpack.c.l.b16 %v165
  %v560 = vunpack.c.l.b16 %v166
  %v561 = vunpack.c.l.b16 %v167
  %v562 = vunpack.c.l.b16 %v168
  %v563 = vunpack.c.l.b16 %v169
  %v564 = vunpack.c.l.b16 %v170
  %v565 = vunpack.c.l.b16 %v171
  %v566 = vunpack.c.l.b16 %v172
  %v567 = vunpack.c.l.b16 %v173
  %v568 = vunpack.c.l.b16 %v174
  %v569 = vunpack.c.l.b16 %v175
  %v570 = vunpack.c.l.b16 %v176
  %v571 = vunpack.c.l.b16 %v177
  %v572 = vunpack.c.l.b16 %v178
  %v573 = vunpack.c.l.b16 %v179
  %v574 = vunpack.c.l.b16 %v180
  %v575 = vunpack.c.l.b16 %v181
  %v576 = vunpack.c.l.b16 %v182
  %v577 = vunpack.c.l.b16 %v183
  %v578 = vunpack.c.l.b16 %v184
  %v579 = vunpack.c.l.b16 %v185
  %v580 = vunpack.c.l.b16 %v186
  %v581 = vunpack.c.l.b16 %v187
  %v582 = vunpack.c.l.b16 %v188
  %v583 = vunpack.c.l.b16 %v189
  %v584 = vunpack.c.l.b16 %v190
  %v585 = vunpack.c.l.b16 %v191
  %v586 = vunpack.c.l.b16 %v192
  %v587 = vunpack.c.l.b16 %v193
  %v588 = vunpack.c.l.b16 %v194
  %v589 = vunpack.c.l.b16 %v195
  %v590 = vunpack.c.l.b16 %v196
  %v591 = vunpack.c.l.b16 %v197
  %v592 = vunpack.c.l.b16 %v198
  %v593 = vunpack.c.l.b16 %v199
  %v594 = vunpack.c.l.b16 %v200
  %v595 = vunpack.c.l.b16 %v201
  %v596 = vunpack.c.l.b16 %v202
  %v597 = vunpack.c.l.b16 %v203
  %v598 = vunpack.c.l.b16 %v204
  %v599 = vunpack.c.l.b16 %v205
  %v600 = vunpack.c.l.b16 %v206
  %v601 = vunpack.c.l.b16 %v207
  %v602 = vunpack.c.l.b16 %v208
  %v603 = vunpack.c.l.b16 %v209
  %v604 = vunpack.c.l.b16 %v210
  %v605 = vunpack.c.l.b16 %v211
  %v606 = vunpack.c.l.b16 %v212
  %v607 = vunpack.c.l.b16 %v213
  %v608 = vpack.c.b16 %v413, %v412
  %v609 = vpack.c.b16 %v415, %v414
  %v610 = vpack.c.b16 %v417, %v416
  %v611 = vpack.c.b16 %v419, %v418
  %v612 = vpack.c.b16 %v421, %v420
  %v613 = vpack.c.b16 %v423, %v422
  %v614 = vpack.c.b16 %v425, %v424
  %v615 = vpack.c.b16 %v427, %v426
  %v616 = vpack.c.b16 %v429, %v428
  %v617 = vpack.c.b16 %v431, %v430
  %v618 = vpack.c.b16 %v433, %v432
  %v619 = vpack.c.b16 %v435, %v434
  %v620 = vpack.c.b16 %v437, %v436
  %v621 = vpack.c.b16 %v439, %v438
  %v622 = vpack.c.b16 %v441, %v440
  %v623 = vpack.c.b16 %v443, %v442
  %v624 = vpack.c.b16 %v445, %v444
  %v625 = vpack.c.b16 %v447, %v446
  %v626 = vpack.c.b16 %v449, %v448
  %v627 = vpack.c.b16 %v451, %v450
  %v628 = vpack.c.b16 %v453, %v452
  %v629 = vpack.c.b16 %v455, %v454
  %v630 = vpack.c.b16 %v457, %v456
  %v631 = vpack.c.b16 %v459, %v458
  %v632 = vpack.c.b16 %v461, %v460
  %v633 = vpack.c.b16 %v463, %v462
  %v634 = vpack.c.b16 %v465, %v464
  %v635 = vpack.c.b16 %v467, %v466
  %v636 = vpack.c.b16 %v469, %v468
  %v637 = vpack.c.b16 %v471, %v470
  %v638 = vpack.c.b16 %v473, %v472
  %v639 = vpack.c.b16 %v475, %v474
  %v640 = vpack.c.b16 %v477, %v476
  %v641 = vpack.c.b16 %v479, %v478
  %v642 = vpack.c.b16 %v481, %v480
  %v643 = vpack.c.b16 %v483, %v482
  %v644 = vpack.c.b16 %v485, %v484
  %v645 = vpack.c.b16 %v487, %v486
  %v646 = vpack.c.b16 %v489, %v488
  %v647 = vpack.c.b16 %v491, %v490
  %v648 = vpack.c.b16 %v493, %v492
  %v649 = vpack.c.b16 %v495, %v494
  %v650 = vpack.c.b16 %v497, %v496
  %v651 = vpack.c.b16 %v499, %v498
  %v652 = vpack.c.b16 %v501, %v500
  %v653 = vpack.c.b16 %v503, %v502
  %v654 = vpack.c.b16 %v505, %v504
  %v655 = vpack.c.b16 %v507, %v506
  %v656 = vpack.c.b16 %v509, %v508
  %v657 = vpack.c.b16 %v511, %v510
  %v658 = vpack.c.b16 %v513, %v512
  %v659 = vpack.c.b16 %v515, %v514
  %v660 = vpack.c.b16 %v517, %v516
  %v661 = vpack.c.b16 %v519, %v518
  %v662 = vpack.c.b16 %v521, %v520
  %v663 = vpack.c.b16 %v523, %v522
  %v664 = vpack.c.b16 %v525, %v524
  %v665 = vpack.c.b16 %v527, %v526
  %v666 = vpack.c.b16 %v529, %v528
  %v667 = vpack.c.b16 %v531, %v530
  %v668 = vpack.c.b16 %v533, %v532
  %v669 = vpack.c.b16 %v535, %v534
  %v670 = vpack.c.b16 %v537, %v536
  %v671 = vpack.c.b16 %v539, %v538
  %v672 = vpack.c.b16 %v541, %v540
  %v673 = vpack.c.b16 %v543, %v542
  %v674 = vpack.c.b16 %v545, %v544
  %v675 = vpack.c.b16 %v547, %v546
  %v676 = vpack.c.b16 %v549, %v548
  %v677 = vpack.c.b16 %v551, %v550
  %v678 = vpack.c.b16 %v553, %v552
  %v679 = vpack.c.b16 %v555, %v554
  %v680 = vpack.c.b16 %v557, %v556
  %v681 = vpack.c.b16 %v559, %v558
  %v682 = vpack.c.b16 %v561, %v560
  %v683 = vpack.c.b16 %v563, %v562
  %v684 = vpack.c.b16 %v565, %v564
  %v685 = vpack.c.b16 %v567, %v566
  %v686 = vpack.c.b16 %v569, %v568
  %v687 = vpack.c.b16 %v571, %v570
  %v688 = vpack.c.b16 %v573, %v572
  %v689 = vpack.c.b16 %v575, %v574
  %v690 = vpack.c.b16 %v577, %v576
  %v691 = vpack.c.b16 %v579, %v578
  %v692 = vpack.c.b16 %v581, %v580
  %v693 = vpack.c.b16 %v583, %v582
  %v694 = vpack.c.b16 %v585, %v584
  %v695 = vpack.c.b16 %v587, %v586
  %v696 = vpack.c.b16 %v589, %v588
  %v697 = vpack.c.b16 %v591, %v590
  %v698 = vpack.c.b16 %v593, %v592
  %v699 = vpack.c.b16 %v595, %v594
  %v700 = vpack.c.b16 %v597, %v596
  %v701 = vpack.c.b16 %v599, %v598
  %v702 = vpack.c.b16 %v601, %v600
  %v703 = vpack.c.b16 %v603, %v602
  %v704 = vpack.c.b16 %v605, %v604
  %v705 = vpack.c.b16 %v607, %v606
  %v708 = vunpack.c.l.b16 %v214
  %v709 = vunpack.c.l.b16 %v215
  %v710 = vpack.c.b16 %v709, %v708
  %vm711 = vcmask 72704
  %v713 = vsel %vm711, %v608, 0
  %v716 = vsel %vm711, %v609, 0
  %v719 = vsel %vm711, %v610, 0
  %v722 = vsel %vm711, %v611, 0
  %v725 = vsel %vm711, %v612, 0
  %v728 = vsel %vm711, %v613, 0
  %v731 = vsel %vm711, %v614, 0
  %v734 = vsel %vm711, %v615, 0
  %v737 = vsel %vm711, %v616, 0
  %v740 = vsel %vm711, %v617, 0
  %v743 = vsel %vm711, %v618, 0
  %v746 = vsel %vm711, %v619, 0
  %v749 = vsel %vm711, %v620, 0
  %v752 = vsel %vm711, %v621, 0
  %v755 = vsel %vm711, %v622, 0
  %v758 = vsel %vm711, %v623, 0
  %v761 = vsel %vm711, %v624, 0
  %v764 = vsel %vm711, %v625, 0
  %v767 = vsel %vm711, %v626, 0
  %v770 = vsel %vm711, %v627, 0
  %v773 = vsel %vm711, %v628, 0
  %v776 = vsel %vm711, %v629, 0
  %v779 = vsel %vm711, %v630, 0
  %v782 = vsel %vm711, %v631, 0
  %v785 = vsel %vm711, %v632, 0
  %v788 = vsel %vm711, %v633, 0
  %v791 = vsel %vm711, %v634, 0
  %v794 = vsel %vm711, %v635, 0
  %v797 = vsel %vm711, %v636, 0
  %v800 = vsel %vm711, %v637, 0
  %v803 = vsel %vm711, %v638, 0
  %v806 = vsel %vm711, %v639, 0
  %v809 = vsel %vm711, %v640, 0
  %v812 = vsel %vm711, %v641, 0
  %v815 = vsel %vm711, %v642, 0
  %v818 = vsel %vm711, %v643, 0
  %v821 = vsel %vm711, %v644, 0
  %v824 = vsel %vm711, %v645, 0
  %v827 = vsel %vm711, %v646, 0
  %v830 = vsel %vm711, %v647, 0
  %v833 = vsel %vm711, %v648, 0
  %v836 = vsel %vm711, %v649, 0
  %v839 = vsel %vm711, %v650, 0
  %v842 = vsel %vm711, %v651, 0
  %v845 = vsel %vm711, %v652, 0
  %v848 = vsel %vm711, %v653, 0
  %v851 = vsel %vm711, %v654, 0
  %v854 = vsel %vm711, %v655, 0
  %v857 = vsel %vm711, %v656, 0
  %v860 = vsel %vm711, %v657, 0
  %v863 = vsel %vm711, %v658, 0
  %v866 = vsel %vm711, %v659, 0
  %v869 = vsel %vm711, %v660, 0
  %v872 = vsel %vm711, %v661, 0
  %v875 = vsel %vm711, %v662, 0
  %v878 = vsel %vm711, %v663, 0
  %v881 = vsel %vm711, %v664, 0
  %v884 = vsel %vm711, %v665, 0
  %v887 = vsel %vm711, %v666, 0
  %v890 = vsel %vm711, %v667, 0
  %v893 = vsel %vm711, %v668, 0
  %v896 = vsel %vm711, %v669, 0
  %v899 = vsel %vm711, %v670, 0
  %v902 = vsel %vm711, %v671, 0
  %v905 = vsel %vm711, %v672, 0
  %v908 = vsel %vm711, %v673, 0
  %v911 = vsel %vm711, %v674, 0
  %v914 = vsel %vm711, %v675, 0
  %v917 = vsel %vm711, %v676, 0
  %v920 = vsel %vm711, %v677, 0
  %v923 = vsel %vm711, %v678, 0
  %v926 = vsel %vm711, %v679, 0
  %v929 = vsel %vm711, %v680, 0
  %v932 = vsel %vm711, %v681, 0
  %v935 = vsel %vm711, %v682, 0
  %v938 = vsel %vm711, %v683, 0
  %v941 = vsel %vm711, %v684, 0
  %v944 = vsel %vm711, %v685, 0
  %v947 = vsel %vm711, %v686, 0
  %v950 = vsel %vm711, %v687, 0
  %v953 = vsel %vm711, %v688, 0
  %v956 = vsel %vm711, %v689, 0
  %v959 = vsel %vm711, %v690, 0
  %v962 = vsel %vm711, %v691, 0
  %v965 = vsel %vm711, %v692, 0
  %v968 = vsel %vm711, %v693, 0
  %v971 = vsel %vm711, %v694, 0
  %v974 = vsel %vm711, %v695, 0
  %v977 = vsel %vm711, %v696, 0
  %v980 = vsel %vm711, %v697, 0
  %v983 = vsel %vm711, %v698, 0
  %v986 = vsel %vm711, %v699, 0
  %v989 = vsel %vm711, %v700, 0
  %v992 = vsel %vm711, %v701, 0
  %v995 = vsel %vm711, %v702, 0
  %v998 = vsel %vm711, %v703, 0
  %v1001 = vsel %vm711, %v704, 0
  %v1004 = vsel %vm711, %v705, 0
  %vm1006 = vcmask 1043456
  %vm1007 = vcmask 1044480
  %v1008 = vsel %vm1006, 4294967295, 65535
  %v1009 = vsel %vm1007, %v1008, 0
  %v1011 = vand.u32 %v710, %v1009
  %1013 = vmatprep.subr.bf16.mxu0 0
  %1014 = vmatpush1.bf16.msra.mxu0 %v1011
  %1015 = vmatprep.subr.bf16.mxu0 0
  %1016 = vmatpush1.bf16.msra.mxu0 0
  %1017 = vmatprep.subr.bf16.mxu0 0
  %1018 = vmatpush1.bf16.msra.mxu0 0
  %1019 = vmatprep.subr.bf16.mxu0 0
  %1020 = vmatpush1.bf16.msra.mxu0 0
  %1021 = vmatprep.subr.bf16.mxu0 0
  %1022 = vmatpush1.bf16.msra.mxu0 0
  %1023 = vmatprep.subr.bf16.mxu0 0
  %1024 = vmatpush1.bf16.msra.mxu0 0
  %1025 = vmatprep.subr.bf16.mxu0 0
  %1026 = vmatpush1.bf16.msra.mxu0 0
  %1027 = vmatprep.subr.bf16.mxu0 0
  %1028 = vmatpush1.bf16.msra.mxu0 0
  %1029 = vmatprep.subr.bf16.mxu0 0
  %1030 = vmatpush1.bf16.msra.mxu0 0
  %1031 = vmatprep.subr.bf16.mxu0 0
  %1032 = vmatpush1.bf16.msra.mxu0 0
  %1033 = vmatprep.subr.bf16.mxu0 0
  %1034 = vmatpush1.bf16.msra.mxu0 0
  %1035 = vmatprep.subr.bf16.mxu0 0
  %1036 = vmatpush1.bf16.msra.mxu0 0
  %1037 = vmatprep.subr.bf16.mxu0 0
  %1038 = vmatpush1.bf16.msra.mxu0 0
  %1039 = vmatprep.subr.bf16.mxu0 0
  %1040 = vmatpush1.bf16.msra.mxu0 0
  %1041 = vmatprep.subr.bf16.mxu0 0
  %1042 = vmatpush1.bf16.msra.mxu0 0
  %1043 = vmatprep.subr.bf16.mxu0 0
  %1044 = vmatpush1.bf16.msra.mxu0 0
  %1045 = vmatprep.mubr.bf16.mxu0 0
  %1046 = vmatmul.mubr.bf16.gmra.mrb[0].mxu0 %v713
  %v1047 = vpop.f32.mrb[0].mxu0
  %v1048 = vadd.f32 0.0, %v1047
  %v1049 = vpop.f32.mrb[0].mxu0
  %v1050 = vpop.f32.mrb[0].mxu0
  %v1051 = vadd.f32 0.0, %v1050
  %v1052 = vpop.f32.mrb[0].mxu0
  %1053 = vmatprep.mubr.bf16.mxu0 0
  %1054 = vmatmul.mubr.bf16.gmra.mrb[0].mxu0 %v716
  %v1055 = vpop.f32.mrb[0].mxu0
  %v1056 = vadd.f32 0.0, %v1055
  %v1057 = vpop.f32.mrb[0].mxu0
  %v1058 = vpop.f32.mrb[0].mxu0
  %v1059 = vadd.f32 0.0, %v1058
  %v1060 = vpop.f32.mrb[0].mxu0
  %1061 = vmatprep.mubr.bf16.mxu0 0
  %1062 = vmatmul.mubr.bf16.gmra.mrb[0].mxu0 %v719
  %v1063 = vpop.f32.mrb[0].mxu0
  %v1064 = vadd.f32 0.0, %v1063
  %v1065 = vpop.f32.mrb[0].mxu0
  %v1066 = vpop.f32.mrb[0].mxu0
  %v1067 = vadd.f32 0.0, %v1066
  %v1068 = vpop.f32.mrb[0].mxu0
  %1069 = vmatprep.mubr.bf16.mxu0 0
  %1070 = vmatmul.mubr.bf16.gmra.mrb[0].mxu0 %v722
  %v1071 = vpop.f32.mrb[0].mxu0
  %v1072 = vadd.f32 0.0, %v1071
  %v1073 = vpop.f32.mrb[0].mxu0
  %v1074 = vpop.f32.mrb[0].mxu0
  %v1075 = vadd.f32 0.0, %v1074
  %v1076 = vpop.f32.mrb[0].mxu0
  %1077 = vmatprep.mubr.bf16.mxu0 0
  %1078 = vmatmul.mubr.bf16.gmra.mrb[0].mxu0 %v725
  %v1079 = vpop.f32.mrb[0].mxu0
  %v1080 = vadd.f32 0.0, %v1079
  %v1081 = vpop.f32.mrb[0].mxu0
  %v1082 = vpop.f32.mrb[0].mxu0
  %v1083 = vadd.f32 0.0, %v1082
  %v1084 = vpop.f32.mrb[0].mxu0
  %1085 = vmatprep.mubr.bf16.mxu0 0
  %1086 = vmatmul.mubr.bf16.gmra.mrb[0].mxu0 %v728
  %v1087 = vpop.f32.mrb[0].mxu0
  %v1088 = vadd.f32 0.0, %v1087
  %v1089 = vpop.f32.mrb[0].mxu0
  %v1090 = vpop.f32.mrb[0].mxu0
  %v1091 = vadd.f32 0.0, %v1090
  %v1092 = vpop.f32.mrb[0].mxu0
  %1093 = vmatprep.mubr.bf16.mxu0 0
  %1094 = vmatmul.mubr.bf16.gmra.mrb[0].mxu0 %v731
  %v1095 = vpop.f32.mrb[0].mxu0
  %v1096 = vadd.f32 0.0, %v1095
  %v1097 = vpop.f32.mrb[0].mxu0
  %v1098 = vpop.f32.mrb[0].mxu0
  %v1099 = vadd.f32 0.0, %v1098
  %v1100 = vpop.f32.mrb[0].mxu0
  %1101 = vmatprep.mubr.bf16.mxu0 0
  %1102 = vmatmul.mubr.bf16.gmra.mrb[0].mxu0 %v734
  %v1103 = vpop.f32.mrb[0].mxu0
  %v1104 = vadd.f32 0.0, %v1103
  %v1105 = vpop.f32.mrb[0].mxu0
  %v1106 = vpop.f32.mrb[0].mxu0
  %v1107 = vadd.f32 0.0, %v1106
  %v1108 = vpop.f32.mrb[0].mxu0
  %1109 = vmatprep.mubr.bf16.mxu0 0
  %1110 = vmatmul.mubr.bf16.gmra.mrb[0].mxu0 %v737
  %v1111 = vpop.f32.mrb[0].mxu0
  %v1112 = vadd.f32 0.0, %v1111
  %v1113 = vpop.f32.mrb[0].mxu0
  %v1114 = vpop.f32.mrb[0].mxu0
  %v1115 = vadd.f32 0.0, %v1114
  %v1116 = vpop.f32.mrb[0].mxu0
  %1117 = vmatprep.mubr.bf16.mxu0 0
  %1118 = vmatmul.mubr.bf16.gmra.mrb[0].mxu0 %v740
  %v1119 = vpop.f32.mrb[0].mxu0
  %v1120 = vadd.f32 0.0, %v1119
  %v1121 = vpop.f32.mrb[0].mxu0
  %v1122 = vpop.f32.mrb[0].mxu0
  %v1123 = vadd.f32 0.0, %v1122
  %v1124 = vpop.f32.mrb[0].mxu0
  %1125 = vmatprep.mubr.bf16.mxu0 0
  %1126 = vmatmul.mubr.bf16.gmra.mrb[0].mxu0 %v743
  %v1127 = vpop.f32.mrb[0].mxu0
  %v1128 = vadd.f32 0.0, %v1127
  %v1129 = vpop.f32.mrb[0].mxu0
  %v1130 = vpop.f32.mrb[0].mxu0
  %v1131 = vadd.f32 0.0, %v1130
  %v1132 = vpop.f32.mrb[0].mxu0
  %1133 = vmatprep.mubr.bf16.mxu0 0
  %1134 = vmatmul.mubr.bf16.gmra.mrb[0].mxu0 %v746
  %v1135 = vpop.f32.mrb[0].mxu0
  %v1136 = vadd.f32 0.0, %v1135
  %v1137 = vpop.f32.mrb[0].mxu0
  %v1138 = vpop.f32.mrb[0].mxu0
  %v1139 = vadd.f32 0.0, %v1138
  %v1140 = vpop.f32.mrb[0].mxu0
  %1141 = vmatprep.mubr.bf16.mxu0 0
  %1142 = vmatmul.mubr.bf16.gmra.mrb[0].mxu0 %v749
  %v1143 = vpop.f32.mrb[0].mxu0
  %v1144 = vadd.f32 0.0, %v1143
  %v1145 = vpop.f32.mrb[0].mxu0
  %v1146 = vpop.f32.mrb[0].mxu0
  %v1147 = vadd.f32 0.0, %v1146
  %v1148 = vpop.f32.mrb[0].mxu0
  %1149 = vmatprep.mubr.bf16.mxu0 0
  %1150 = vmatmul.mubr.bf16.gmra.mrb[0].mxu0 %v752
  %v1151 = vpop.f32.mrb[0].mxu0
  %v1152 = vadd.f32 0.0, %v1151
  %v1153 = vpop.f32.mrb[0].mxu0
  %v1154 = vpop.f32.mrb[0].mxu0
  %v1155 = vadd.f32 0.0, %v1154
  %v1156 = vpop.f32.mrb[0].mxu0
  %1157 = vmatprep.mubr.bf16.mxu0 0
  %1158 = vmatmul.mubr.bf16.gmra.mrb[0].mxu0 %v755
  %v1159 = vpop.f32.mrb[0].mxu0
  %v1160 = vadd.f32 0.0, %v1159
  %v1161 = vpop.f32.mrb[0].mxu0
  %v1162 = vpop.f32.mrb[0].mxu0
  %v1163 = vadd.f32 0.0, %v1162
  %v1164 = vpop.f32.mrb[0].mxu0
  %1165 = vmatprep.mubr.bf16.mxu0 0
  %1166 = vmatmul.mubr.bf16.gmra.mrb[0].mxu0 %v758
  %v1167 = vpop.f32.mrb[0].mxu0
  %v1168 = vadd.f32 0.0, %v1167
  %v1169 = vpop.f32.mrb[0].mxu0
  %v1170 = vpop.f32.mrb[0].mxu0
  %v1171 = vadd.f32 0.0, %v1170
  %v1172 = vpop.f32.mrb[0].mxu0
  %1173 = vmatprep.mubr.bf16.mxu0 0
  %1174 = vmatmul.mubr.bf16.gmra.mrb[0].mxu0 %v761
  %v1175 = vpop.f32.mrb[0].mxu0
  %v1176 = vadd.f32 0.0, %v1175
  %v1177 = vpop.f32.mrb[0].mxu0
  %v1178 = vpop.f32.mrb[0].mxu0
  %v1179 = vadd.f32 0.0, %v1178
  %v1180 = vpop.f32.mrb[0].mxu0
  %1181 = vmatprep.mubr.bf16.mxu0 0
  %1182 = vmatmul.mubr.bf16.gmra.mrb[0].mxu0 %v764
  %v1183 = vpop.f32.mrb[0].mxu0
  %v1184 = vadd.f32 0.0, %v1183
  %v1185 = vpop.f32.mrb[0].mxu0
  %v1186 = vpop.f32.mrb[0].mxu0
  %v1187 = vadd.f32 0.0, %v1186
  %v1188 = vpop.f32.mrb[0].mxu0
  %1189 = vmatprep.mubr.bf16.mxu0 0
  %1190 = vmatmul.mubr.bf16.gmra.mrb[0].mxu0 %v767
  %v1191 = vpop.f32.mrb[0].mxu0
  %v1192 = vadd.f32 0.0, %v1191
  %v1193 = vpop.f32.mrb[0].mxu0
  %v1194 = vpop.f32.mrb[0].mxu0
  %v1195 = vadd.f32 0.0, %v1194
  %v1196 = vpop.f32.mrb[0].mxu0
  %1197 = vmatprep.mubr.bf16.mxu0 0
  %1198 = vmatmul.mubr.bf16.gmra.mrb[0].mxu0 %v770
  %v1199 = vpop.f32.mrb[0].mxu0
  %v1200 = vadd.f32 0.0, %v1199
  %v1201 = vpop.f32.mrb[0].mxu0
  %v1202 = vpop.f32.mrb[0].mxu0
  %v1203 = vadd.f32 0.0, %v1202
  %v1204 = vpop.f32.mrb[0].mxu0
  %1205 = vmatprep.mubr.bf16.mxu0 0
  %1206 = vmatmul.mubr.bf16.gmra.mrb[0].mxu0 %v773
  %v1207 = vpop.f32.mrb[0].mxu0
  %v1208 = vadd.f32 0.0, %v1207
  %v1209 = vpop.f32.mrb[0].mxu0
  %v1210 = vpop.f32.mrb[0].mxu0
  %v1211 = vadd.f32 0.0, %v1210
  %v1212 = vpop.f32.mrb[0].mxu0
  %1213 = vmatprep.mubr.bf16.mxu0 0
  %1214 = vmatmul.mubr.bf16.gmra.mrb[0].mxu0 %v776
  %v1215 = vpop.f32.mrb[0].mxu0
  %v1216 = vadd.f32 0.0, %v1215
  %v1217 = vpop.f32.mrb[0].mxu0
  %v1218 = vpop.f32.mrb[0].mxu0
  %v1219 = vadd.f32 0.0, %v1218
  %v1220 = vpop.f32.mrb[0].mxu0
  %1221 = vmatprep.mubr.bf16.mxu0 0
  %1222 = vmatmul.mubr.bf16.gmra.mrb[0].mxu0 %v779
  %v1223 = vpop.f32.mrb[0].mxu0
  %v1224 = vadd.f32 0.0, %v1223
  %v1225 = vpop.f32.mrb[0].mxu0
  %v1226 = vpop.f32.mrb[0].mxu0
  %v1227 = vadd.f32 0.0, %v1226
  %v1228 = vpop.f32.mrb[0].mxu0
  %1229 = vmatprep.mubr.bf16.mxu0 0
  %1230 = vmatmul.mubr.bf16.gmra.mrb[0].mxu0 %v782
  %v1231 = vpop.f32.mrb[0].mxu0
  %v1232 = vadd.f32 0.0, %v1231
  %v1233 = vpop.f32.mrb[0].mxu0
  %v1234 = vpop.f32.mrb[0].mxu0
  %v1235 = vadd.f32 0.0, %v1234
  %v1236 = vpop.f32.mrb[0].mxu0
  %1237 = vmatprep.mubr.bf16.mxu0 0
  %1238 = vmatmul.mubr.bf16.gmra.mrb[0].mxu0 %v785
  %v1239 = vpop.f32.mrb[0].mxu0
  %v1240 = vadd.f32 0.0, %v1239
  %v1241 = vpop.f32.mrb[0].mxu0
  %v1242 = vpop.f32.mrb[0].mxu0
  %v1243 = vadd.f32 0.0, %v1242
  %v1244 = vpop.f32.mrb[0].mxu0
  %1245 = vmatprep.mubr.bf16.mxu0 0
  %1246 = vmatmul.mubr.bf16.gmra.mrb[0].mxu0 %v788
  %v1247 = vpop.f32.mrb[0].mxu0
  %v1248 = vadd.f32 0.0, %v1247
  %v1249 = vpop.f32.mrb[0].mxu0
  %v1250 = vpop.f32.mrb[0].mxu0
  %v1251 = vadd.f32 0.0, %v1250
  %v1252 = vpop.f32.mrb[0].mxu0
  %1253 = vmatprep.mubr.bf16.mxu0 0
  %1254 = vmatmul.mubr.bf16.gmra.mrb[0].mxu0 %v791
  %v1255 = vpop.f32.mrb[0].mxu0
  %v1256 = vadd.f32 0.0, %v1255
  %v1257 = vpop.f32.mrb[0].mxu0
  %v1258 = vpop.f32.mrb[0].mxu0
  %v1259 = vadd.f32 0.0, %v1258
  %v1260 = vpop.f32.mrb[0].mxu0
  %1261 = vmatprep.mubr.bf16.mxu0 0
  %1262 = vmatmul.mubr.bf16.gmra.mrb[0].mxu0 %v794
  %v1263 = vpop.f32.mrb[0].mxu0
  %v1264 = vadd.f32 0.0, %v1263
  %v1265 = vpop.f32.mrb[0].mxu0
  %v1266 = vpop.f32.mrb[0].mxu0
  %v1267 = vadd.f32 0.0, %v1266
  %v1268 = vpop.f32.mrb[0].mxu0
  %1269 = vmatprep.mubr.bf16.mxu0 0
  %1270 = vmatmul.mubr.bf16.gmra.mrb[0].mxu0 %v797
  %v1271 = vpop.f32.mrb[0].mxu0
  %v1272 = vadd.f32 0.0, %v1271
  %v1273 = vpop.f32.mrb[0].mxu0
  %v1274 = vpop.f32.mrb[0].mxu0
  %v1275 = vadd.f32 0.0, %v1274
  %v1276 = vpop.f32.mrb[0].mxu0
  %1277 = vmatprep.mubr.bf16.mxu0 0
  %1278 = vmatmul.mubr.bf16.gmra.mrb[0].mxu0 %v800
  %v1279 = vpop.f32.mrb[0].mxu0
  %v1280 = vadd.f32 0.0, %v1279
  %v1281 = vpop.f32.mrb[0].mxu0
  %v1282 = vpop.f32.mrb[0].mxu0
  %v1283 = vadd.f32 0.0, %v1282
  %v1284 = vpop.f32.mrb[0].mxu0
  %1285 = vmatprep.mubr.bf16.mxu0 0
  %1286 = vmatmul.mubr.bf16.gmra.mrb[0].mxu0 %v803
  %v1287 = vpop.f32.mrb[0].mxu0
  %v1288 = vadd.f32 0.0, %v1287
  %v1289 = vpop.f32.mrb[0].mxu0
  %v1290 = vpop.f32.mrb[0].mxu0
  %v1291 = vadd.f32 0.0, %v1290
  %v1292 = vpop.f32.mrb[0].mxu0
  %1293 = vmatprep.mubr.bf16.mxu0 0
  %1294 = vmatmul.mubr.bf16.gmra.mrb[0].mxu0 %v806
  %v1295 = vpop.f32.mrb[0].mxu0
  %v1296 = vadd.f32 0.0, %v1295
  %v1297 = vpop.f32.mrb[0].mxu0
  %v1298 = vpop.f32.mrb[0].mxu0
  %v1299 = vadd.f32 0.0, %v1298
  %v1300 = vpop.f32.mrb[0].mxu0
  %1301 = vmatprep.mubr.bf16.mxu0 0
  %1302 = vmatmul.mubr.bf16.gmra.mrb[0].mxu0 %v809
  %v1303 = vpop.f32.mrb[0].mxu0
  %v1304 = vadd.f32 0.0, %v1303
  %v1305 = vpop.f32.mrb[0].mxu0
  %v1306 = vpop.f32.mrb[0].mxu0
  %v1307 = vadd.f32 0.0, %v1306
  %v1308 = vpop.f32.mrb[0].mxu0
  %1309 = vmatprep.mubr.bf16.mxu0 0
  %1310 = vmatmul.mubr.bf16.gmra.mrb[0].mxu0 %v812
  %v1311 = vpop.f32.mrb[0].mxu0
  %v1312 = vadd.f32 0.0, %v1311
  %v1313 = vpop.f32.mrb[0].mxu0
  %v1314 = vpop.f32.mrb[0].mxu0
  %v1315 = vadd.f32 0.0, %v1314
  %v1316 = vpop.f32.mrb[0].mxu0
  %1317 = vmatprep.mubr.bf16.mxu0 0
  %1318 = vmatmul.mubr.bf16.gmra.mrb[0].mxu0 %v815
  %v1319 = vpop.f32.mrb[0].mxu0
  %v1320 = vadd.f32 0.0, %v1319
  %v1321 = vpop.f32.mrb[0].mxu0
  %v1322 = vpop.f32.mrb[0].mxu0
  %v1323 = vadd.f32 0.0, %v1322
  %v1324 = vpop.f32.mrb[0].mxu0
  %1325 = vmatprep.mubr.bf16.mxu0 0
  %1326 = vmatmul.mubr.bf16.gmra.mrb[0].mxu0 %v818
  %v1327 = vpop.f32.mrb[0].mxu0
  %v1328 = vadd.f32 0.0, %v1327
  %v1329 = vpop.f32.mrb[0].mxu0
  %v1330 = vpop.f32.mrb[0].mxu0
  %v1331 = vadd.f32 0.0, %v1330
  %v1332 = vpop.f32.mrb[0].mxu0
  %1333 = vmatprep.mubr.bf16.mxu0 0
  %1334 = vmatmul.mubr.bf16.gmra.mrb[0].mxu0 %v821
  %v1335 = vpop.f32.mrb[0].mxu0
  %v1336 = vadd.f32 0.0, %v1335
  %v1337 = vpop.f32.mrb[0].mxu0
  %v1338 = vpop.f32.mrb[0].mxu0
  %v1339 = vadd.f32 0.0, %v1338
  %v1340 = vpop.f32.mrb[0].mxu0
  %1341 = vmatprep.mubr.bf16.mxu0 0
  %1342 = vmatmul.mubr.bf16.gmra.mrb[0].mxu0 %v824
  %v1343 = vpop.f32.mrb[0].mxu0
  %v1344 = vadd.f32 0.0, %v1343
  %v1345 = vpop.f32.mrb[0].mxu0
  %v1346 = vpop.f32.mrb[0].mxu0
  %v1347 = vadd.f32 0.0, %v1346
  %v1348 = vpop.f32.mrb[0].mxu0
  %1349 = vmatprep.mubr.bf16.mxu0 0
  %1350 = vmatmul.mubr.bf16.gmra.mrb[0].mxu0 %v827
  %v1351 = vpop.f32.mrb[0].mxu0
  %v1352 = vadd.f32 0.0, %v1351
  %v1353 = vpop.f32.mrb[0].mxu0
  %v1354 = vpop.f32.mrb[0].mxu0
  %v1355 = vadd.f32 0.0, %v1354
  %v1356 = vpop.f32.mrb[0].mxu0
  %1357 = vmatprep.mubr.bf16.mxu0 0
  %1358 = vmatmul.mubr.bf16.gmra.mrb[0].mxu0 %v830
  %v1359 = vpop.f32.mrb[0].mxu0
  %v1360 = vadd.f32 0.0, %v1359
  %v1361 = vpop.f32.mrb[0].mxu0
  %v1362 = vpop.f32.mrb[0].mxu0
  %v1363 = vadd.f32 0.0, %v1362
  %v1364 = vpop.f32.mrb[0].mxu0
  %1365 = vmatprep.mubr.bf16.mxu0 0
  %1366 = vmatmul.mubr.bf16.gmra.mrb[0].mxu0 %v833
  %v1367 = vpop.f32.mrb[0].mxu0
  %v1368 = vadd.f32 0.0, %v1367
  %v1369 = vpop.f32.mrb[0].mxu0
  %v1370 = vpop.f32.mrb[0].mxu0
  %v1371 = vadd.f32 0.0, %v1370
  %v1372 = vpop.f32.mrb[0].mxu0
  %1373 = vmatprep.mubr.bf16.mxu0 0
  %1374 = vmatmul.mubr.bf16.gmra.mrb[0].mxu0 %v836
  %v1375 = vpop.f32.mrb[0].mxu0
  %v1376 = vadd.f32 0.0, %v1375
  %v1377 = vpop.f32.mrb[0].mxu0
  %v1378 = vpop.f32.mrb[0].mxu0
  %v1379 = vadd.f32 0.0, %v1378
  %v1380 = vpop.f32.mrb[0].mxu0
  %1381 = vmatprep.mubr.bf16.mxu0 0
  %1382 = vmatmul.mubr.bf16.gmra.mrb[0].mxu0 %v839
  %v1383 = vpop.f32.mrb[0].mxu0
  %v1384 = vadd.f32 0.0, %v1383
  %v1385 = vpop.f32.mrb[0].mxu0
  %v1386 = vpop.f32.mrb[0].mxu0
  %v1387 = vadd.f32 0.0, %v1386
  %v1388 = vpop.f32.mrb[0].mxu0
  %1389 = vmatprep.mubr.bf16.mxu0 0
  %1390 = vmatmul.mubr.bf16.gmra.mrb[0].mxu0 %v842
  %v1391 = vpop.f32.mrb[0].mxu0
  %v1392 = vadd.f32 0.0, %v1391
  %v1393 = vpop.f32.mrb[0].mxu0
  %v1394 = vpop.f32.mrb[0].mxu0
  %v1395 = vadd.f32 0.0, %v1394
  %v1396 = vpop.f32.mrb[0].mxu0
  %1397 = vmatprep.mubr.bf16.mxu0 0
  %1398 = vmatmul.mubr.bf16.gmra.mrb[0].mxu0 %v845
  %v1399 = vpop.f32.mrb[0].mxu0
  %v1400 = vadd.f32 0.0, %v1399
  %v1401 = vpop.f32.mrb[0].mxu0
  %v1402 = vpop.f32.mrb[0].mxu0
  %v1403 = vadd.f32 0.0, %v1402
  %v1404 = vpop.f32.mrb[0].mxu0
  %1405 = vmatprep.mubr.bf16.mxu0 0
  %1406 = vmatmul.mubr.bf16.gmra.mrb[0].mxu0 %v848
  %v1407 = vpop.f32.mrb[0].mxu0
  %v1408 = vadd.f32 0.0, %v1407
  %v1409 = vpop.f32.mrb[0].mxu0
  %v1410 = vpop.f32.mrb[0].mxu0
  %v1411 = vadd.f32 0.0, %v1410
  %v1412 = vpop.f32.mrb[0].mxu0
  %1413 = vmatprep.mubr.bf16.mxu0 0
  %1414 = vmatmul.mubr.bf16.gmra.mrb[0].mxu0 %v851
  %v1415 = vpop.f32.mrb[0].mxu0
  %v1416 = vadd.f32 0.0, %v1415
  %v1417 = vpop.f32.mrb[0].mxu0
  %v1418 = vpop.f32.mrb[0].mxu0
  %v1419 = vadd.f32 0.0, %v1418
  %v1420 = vpop.f32.mrb[0].mxu0
  %1421 = vmatprep.mubr.bf16.mxu0 0
  %1422 = vmatmul.mubr.bf16.gmra.mrb[0].mxu0 %v854
  %v1423 = vpop.f32.mrb[0].mxu0
  %v1424 = vadd.f32 0.0, %v1423
  %v1425 = vpop.f32.mrb[0].mxu0
  %v1426 = vpop.f32.mrb[0].mxu0
  %v1427 = vadd.f32 0.0, %v1426
  %v1428 = vpop.f32.mrb[0].mxu0
  %1429 = vmatprep.mubr.bf16.mxu0 0
  %1430 = vmatmul.mubr.bf16.gmra.mrb[0].mxu0 %v857
  %v1431 = vpop.f32.mrb[0].mxu0
  %v1432 = vadd.f32 0.0, %v1431
  %v1433 = vpop.f32.mrb[0].mxu0
  %v1434 = vpop.f32.mrb[0].mxu0
  %v1435 = vadd.f32 0.0, %v1434
  %v1436 = vpop.f32.mrb[0].mxu0
  %1437 = vmatprep.mubr.bf16.mxu0 0
  %1438 = vmatmul.mubr.bf16.gmra.mrb[0].mxu0 %v860
  %v1439 = vpop.f32.mrb[0].mxu0
  %v1440 = vadd.f32 0.0, %v1439
  %v1441 = vpop.f32.mrb[0].mxu0
  %v1442 = vpop.f32.mrb[0].mxu0
  %v1443 = vadd.f32 0.0, %v1442
  %v1444 = vpop.f32.mrb[0].mxu0
  %1445 = vmatprep.mubr.bf16.mxu0 0
  %1446 = vmatmul.mubr.bf16.gmra.mrb[0].mxu0 %v863
  %v1447 = vpop.f32.mrb[0].mxu0
  %v1448 = vadd.f32 0.0, %v1447
  %v1449 = vpop.f32.mrb[0].mxu0
  %v1450 = vpop.f32.mrb[0].mxu0
  %v1451 = vadd.f32 0.0, %v1450
  %v1452 = vpop.f32.mrb[0].mxu0
  %1453 = vmatprep.mubr.bf16.mxu0 0
  %1454 = vmatmul.mubr.bf16.gmra.mrb[0].mxu0 %v866
  %v1455 = vpop.f32.mrb[0].mxu0
  %v1456 = vadd.f32 0.0, %v1455
  %v1457 = vpop.f32.mrb[0].mxu0
  %v1458 = vpop.f32.mrb[0].mxu0
  %v1459 = vadd.f32 0.0, %v1458
  %v1460 = vpop.f32.mrb[0].mxu0
  %1461 = vmatprep.mubr.bf16.mxu0 0
  %1462 = vmatmul.mubr.bf16.gmra.mrb[0].mxu0 %v869
  %v1463 = vpop.f32.mrb[0].mxu0
  %v1464 = vadd.f32 0.0, %v1463
  %v1465 = vpop.f32.mrb[0].mxu0
  %v1466 = vpop.f32.mrb[0].mxu0
  %v1467 = vadd.f32 0.0, %v1466
  %v1468 = vpop.f32.mrb[0].mxu0
  %1469 = vmatprep.mubr.bf16.mxu0 0
  %1470 = vmatmul.mubr.bf16.gmra.mrb[0].mxu0 %v872
  %v1471 = vpop.f32.mrb[0].mxu0
  %v1472 = vadd.f32 0.0, %v1471
  %v1473 = vpop.f32.mrb[0].mxu0
  %v1474 = vpop.f32.mrb[0].mxu0
  %v1475 = vadd.f32 0.0, %v1474
  %v1476 = vpop.f32.mrb[0].mxu0
  %1477 = vmatprep.mubr.bf16.mxu0 0
  %1478 = vmatmul.mubr.bf16.gmra.mrb[0].mxu0 %v875
  %v1479 = vpop.f32.mrb[0].mxu0
  %v1480 = vadd.f32 0.0, %v1479
  %v1481 = vpop.f32.mrb[0].mxu0
  %v1482 = vpop.f32.mrb[0].mxu0
  %v1483 = vadd.f32 0.0, %v1482
  %v1484 = vpop.f32.mrb[0].mxu0
  %1485 = vmatprep.mubr.bf16.mxu0 0
  %1486 = vmatmul.mubr.bf16.gmra.mrb[0].mxu0 %v878
  %v1487 = vpop.f32.mrb[0].mxu0
  %v1488 = vadd.f32 0.0, %v1487
  %v1489 = vpop.f32.mrb[0].mxu0
  %v1490 = vpop.f32.mrb[0].mxu0
  %v1491 = vadd.f32 0.0, %v1490
  %v1492 = vpop.f32.mrb[0].mxu0
  %1493 = vmatprep.mubr.bf16.mxu0 0
  %1494 = vmatmul.mubr.bf16.gmra.mrb[0].mxu0 %v881
  %v1495 = vpop.f32.mrb[0].mxu0
  %v1496 = vadd.f32 0.0, %v1495
  %v1497 = vpop.f32.mrb[0].mxu0
  %v1498 = vpop.f32.mrb[0].mxu0
  %v1499 = vadd.f32 0.0, %v1498
  %v1500 = vpop.f32.mrb[0].mxu0
  %1501 = vmatprep.mubr.bf16.mxu0 0
  %1502 = vmatmul.mubr.bf16.gmra.mrb[0].mxu0 %v884
  %v1503 = vpop.f32.mrb[0].mxu0
  %v1504 = vadd.f32 0.0, %v1503
  %v1505 = vpop.f32.mrb[0].mxu0
  %v1506 = vpop.f32.mrb[0].mxu0
  %v1507 = vadd.f32 0.0, %v1506
  %v1508 = vpop.f32.mrb[0].mxu0
  %1509 = vmatprep.mubr.bf16.mxu0 0
  %1510 = vmatmul.mubr.bf16.gmra.mrb[0].mxu0 %v887
  %v1511 = vpop.f32.mrb[0].mxu0
  %v1512 = vadd.f32 0.0, %v1511
  %v1513 = vpop.f32.mrb[0].mxu0
  %v1514 = vpop.f32.mrb[0].mxu0
  %v1515 = vadd.f32 0.0, %v1514
  %v1516 = vpop.f32.mrb[0].mxu0
  %1517 = vmatprep.mubr.bf16.mxu0 0
  %1518 = vmatmul.mubr.bf16.gmra.mrb[0].mxu0 %v890
  %v1519 = vpop.f32.mrb[0].mxu0
  %v1520 = vadd.f32 0.0, %v1519
  %v1521 = vpop.f32.mrb[0].mxu0
  %v1522 = vpop.f32.mrb[0].mxu0
  %v1523 = vadd.f32 0.0, %v1522
  %v1524 = vpop.f32.mrb[0].mxu0
  %1525 = vmatprep.mubr.bf16.mxu0 0
  %1526 = vmatmul.mubr.bf16.gmra.mrb[0].mxu0 %v893
  %v1527 = vpop.f32.mrb[0].mxu0
  %v1528 = vadd.f32 0.0, %v1527
  %v1529 = vpop.f32.mrb[0].mxu0
  %v1530 = vpop.f32.mrb[0].mxu0
  %v1531 = vadd.f32 0.0, %v1530
  %v1532 = vpop.f32.mrb[0].mxu0
  %1533 = vmatprep.mubr.bf16.mxu0 0
  %1534 = vmatmul.mubr.bf16.gmra.mrb[0].mxu0 %v896
  %v1535 = vpop.f32.mrb[0].mxu0
  %v1536 = vadd.f32 0.0, %v1535
  %v1537 = vpop.f32.mrb[0].mxu0
  %v1538 = vpop.f32.mrb[0].mxu0
  %v1539 = vadd.f32 0.0, %v1538
  %v1540 = vpop.f32.mrb[0].mxu0
  %1541 = vmatprep.mubr.bf16.mxu0 0
  %1542 = vmatmul.mubr.bf16.gmra.mrb[0].mxu0 %v899
  %v1543 = vpop.f32.mrb[0].mxu0
  %v1544 = vadd.f32 0.0, %v1543
  %v1545 = vpop.f32.mrb[0].mxu0
  %v1546 = vpop.f32.mrb[0].mxu0
  %v1547 = vadd.f32 0.0, %v1546
  %v1548 = vpop.f32.mrb[0].mxu0
  %1549 = vmatprep.mubr.bf16.mxu0 0
  %1550 = vmatmul.mubr.bf16.gmra.mrb[0].mxu0 %v902
  %v1551 = vpop.f32.mrb[0].mxu0
  %v1552 = vadd.f32 0.0, %v1551
  %v1553 = vpop.f32.mrb[0].mxu0
  %v1554 = vpop.f32.mrb[0].mxu0
  %v1555 = vadd.f32 0.0, %v1554
  %v1556 = vpop.f32.mrb[0].mxu0
  %1557 = vmatprep.mubr.bf16.mxu0 0
  %1558 = vmatmul.mubr.bf16.gmra.mrb[0].mxu0 %v905
  %v1559 = vpop.f32.mrb[0].mxu0
  %v1560 = vadd.f32 0.0, %v1559
  %v1561 = vpop.f32.mrb[0].mxu0
  %v1562 = vpop.f32.mrb[0].mxu0
  %v1563 = vadd.f32 0.0, %v1562
  %v1564 = vpop.f32.mrb[0].mxu0
  %1565 = vmatprep.mubr.bf16.mxu0 0
  %1566 = vmatmul.mubr.bf16.gmra.mrb[0].mxu0 %v908
  %v1567 = vpop.f32.mrb[0].mxu0
  %v1568 = vadd.f32 0.0, %v1567
  %v1569 = vpop.f32.mrb[0].mxu0
  %v1570 = vpop.f32.mrb[0].mxu0
  %v1571 = vadd.f32 0.0, %v1570
  %v1572 = vpop.f32.mrb[0].mxu0
  %1573 = vmatprep.mubr.bf16.mxu0 0
  %1574 = vmatmul.mubr.bf16.gmra.mrb[0].mxu0 %v911
  %v1575 = vpop.f32.mrb[0].mxu0
  %v1576 = vadd.f32 0.0, %v1575
  %v1577 = vpop.f32.mrb[0].mxu0
  %v1578 = vpop.f32.mrb[0].mxu0
  %v1579 = vadd.f32 0.0, %v1578
  %v1580 = vpop.f32.mrb[0].mxu0
  %1581 = vmatprep.mubr.bf16.mxu0 0
  %1582 = vmatmul.mubr.bf16.gmra.mrb[0].mxu0 %v914
  %v1583 = vpop.f32.mrb[0].mxu0
  %v1584 = vadd.f32 0.0, %v1583
  %v1585 = vpop.f32.mrb[0].mxu0
  %v1586 = vpop.f32.mrb[0].mxu0
  %v1587 = vadd.f32 0.0, %v1586
  %v1588 = vpop.f32.mrb[0].mxu0
  %1589 = vmatprep.mubr.bf16.mxu0 0
  %1590 = vmatmul.mubr.bf16.gmra.mrb[0].mxu0 %v917
  %v1591 = vpop.f32.mrb[0].mxu0
  %v1592 = vadd.f32 0.0, %v1591
  %v1593 = vpop.f32.mrb[0].mxu0
  %v1594 = vpop.f32.mrb[0].mxu0
  %v1595 = vadd.f32 0.0, %v1594
  %v1596 = vpop.f32.mrb[0].mxu0
  %1597 = vmatprep.mubr.bf16.mxu0 0
  %1598 = vmatmul.mubr.bf16.gmra.mrb[0].mxu0 %v920
  %v1599 = vpop.f32.mrb[0].mxu0
  %v1600 = vadd.f32 0.0, %v1599
  %v1601 = vpop.f32.mrb[0].mxu0
  %v1602 = vpop.f32.mrb[0].mxu0
  %v1603 = vadd.f32 0.0, %v1602
  %v1604 = vpop.f32.mrb[0].mxu0
  %1605 = vmatprep.mubr.bf16.mxu0 0
  %1606 = vmatmul.mubr.bf16.gmra.mrb[0].mxu0 %v923
  %v1607 = vpop.f32.mrb[0].mxu0
  %v1608 = vadd.f32 0.0, %v1607
  %v1609 = vpop.f32.mrb[0].mxu0
  %v1610 = vpop.f32.mrb[0].mxu0
  %v1611 = vadd.f32 0.0, %v1610
  %v1612 = vpop.f32.mrb[0].mxu0
  %1613 = vmatprep.mubr.bf16.mxu0 0
  %1614 = vmatmul.mubr.bf16.gmra.mrb[0].mxu0 %v926
  %v1615 = vpop.f32.mrb[0].mxu0
  %v1616 = vadd.f32 0.0, %v1615
  %v1617 = vpop.f32.mrb[0].mxu0
  %v1618 = vpop.f32.mrb[0].mxu0
  %v1619 = vadd.f32 0.0, %v1618
  %v1620 = vpop.f32.mrb[0].mxu0
  %1621 = vmatprep.mubr.bf16.mxu0 0
  %1622 = vmatmul.mubr.bf16.gmra.mrb[0].mxu0 %v929
  %v1623 = vpop.f32.mrb[0].mxu0
  %v1624 = vadd.f32 0.0, %v1623
  %v1625 = vpop.f32.mrb[0].mxu0
  %v1626 = vpop.f32.mrb[0].mxu0
  %v1627 = vadd.f32 0.0, %v1626
  %v1628 = vpop.f32.mrb[0].mxu0
  %1629 = vmatprep.mubr.bf16.mxu0 0
  %1630 = vmatmul.mubr.bf16.gmra.mrb[0].mxu0 %v932
  %v1631 = vpop.f32.mrb[0].mxu0
  %v1632 = vadd.f32 0.0, %v1631
  %v1633 = vpop.f32.mrb[0].mxu0
  %v1634 = vpop.f32.mrb[0].mxu0
  %v1635 = vadd.f32 0.0, %v1634
  %v1636 = vpop.f32.mrb[0].mxu0
  %1637 = vmatprep.mubr.bf16.mxu0 0
  %1638 = vmatmul.mubr.bf16.gmra.mrb[0].mxu0 %v935
  %v1639 = vpop.f32.mrb[0].mxu0
  %v1640 = vadd.f32 0.0, %v1639
  %v1641 = vpop.f32.mrb[0].mxu0
  %v1642 = vpop.f32.mrb[0].mxu0
  %v1643 = vadd.f32 0.0, %v1642
  %v1644 = vpop.f32.mrb[0].mxu0
  %1645 = vmatprep.mubr.bf16.mxu0 0
  %1646 = vmatmul.mubr.bf16.gmra.mrb[0].mxu0 %v938
  %v1647 = vpop.f32.mrb[0].mxu0
  %v1648 = vadd.f32 0.0, %v1647
  %v1649 = vpop.f32.mrb[0].mxu0
  %v1650 = vpop.f32.mrb[0].mxu0
  %v1651 = vadd.f32 0.0, %v1650
  %v1652 = vpop.f32.mrb[0].mxu0
  %1653 = vmatprep.mubr.bf16.mxu0 0
  %1654 = vmatmul.mubr.bf16.gmra.mrb[0].mxu0 %v941
  %v1655 = vpop.f32.mrb[0].mxu0
  %v1656 = vadd.f32 0.0, %v1655
  %v1657 = vpop.f32.mrb[0].mxu0
  %v1658 = vpop.f32.mrb[0].mxu0
  %v1659 = vadd.f32 0.0, %v1658
  %v1660 = vpop.f32.mrb[0].mxu0
  %1661 = vmatprep.mubr.bf16.mxu0 0
  %1662 = vmatmul.mubr.bf16.gmra.mrb[0].mxu0 %v944
  %v1663 = vpop.f32.mrb[0].mxu0
  %v1664 = vadd.f32 0.0, %v1663
  %v1665 = vpop.f32.mrb[0].mxu0
  %v1666 = vpop.f32.mrb[0].mxu0
  %v1667 = vadd.f32 0.0, %v1666
  %v1668 = vpop.f32.mrb[0].mxu0
  %1669 = vmatprep.mubr.bf16.mxu0 0
  %1670 = vmatmul.mubr.bf16.gmra.mrb[0].mxu0 %v947
  %v1671 = vpop.f32.mrb[0].mxu0
  %v1672 = vadd.f32 0.0, %v1671
  %v1673 = vpop.f32.mrb[0].mxu0
  %v1674 = vpop.f32.mrb[0].mxu0
  %v1675 = vadd.f32 0.0, %v1674
  %v1676 = vpop.f32.mrb[0].mxu0
  %1677 = vmatprep.mubr.bf16.mxu0 0
  %1678 = vmatmul.mubr.bf16.gmra.mrb[0].mxu0 %v950
  %v1679 = vpop.f32.mrb[0].mxu0
  %v1680 = vadd.f32 0.0, %v1679
  %v1681 = vpop.f32.mrb[0].mxu0
  %v1682 = vpop.f32.mrb[0].mxu0
  %v1683 = vadd.f32 0.0, %v1682
  %v1684 = vpop.f32.mrb[0].mxu0
  %1685 = vmatprep.mubr.bf16.mxu0 0
  %1686 = vmatmul.mubr.bf16.gmra.mrb[0].mxu0 %v953
  %v1687 = vpop.f32.mrb[0].mxu0
  %v1688 = vadd.f32 0.0, %v1687
  %v1689 = vpop.f32.mrb[0].mxu0
  %v1690 = vpop.f32.mrb[0].mxu0
  %v1691 = vadd.f32 0.0, %v1690
  %v1692 = vpop.f32.mrb[0].mxu0
  %1693 = vmatprep.mubr.bf16.mxu0 0
  %1694 = vmatmul.mubr.bf16.gmra.mrb[0].mxu0 %v956
  %v1695 = vpop.f32.mrb[0].mxu0
  %v1696 = vadd.f32 0.0, %v1695
  %v1697 = vpop.f32.mrb[0].mxu0
  %v1698 = vpop.f32.mrb[0].mxu0
  %v1699 = vadd.f32 0.0, %v1698
  %v1700 = vpop.f32.mrb[0].mxu0
  %1701 = vmatprep.mubr.bf16.mxu0 0
  %1702 = vmatmul.mubr.bf16.gmra.mrb[0].mxu0 %v959
  %v1703 = vpop.f32.mrb[0].mxu0
  %v1704 = vadd.f32 0.0, %v1703
  %v1705 = vpop.f32.mrb[0].mxu0
  %v1706 = vpop.f32.mrb[0].mxu0
  %v1707 = vadd.f32 0.0, %v1706
  %v1708 = vpop.f32.mrb[0].mxu0
  %1709 = vmatprep.mubr.bf16.mxu0 0
  %1710 = vmatmul.mubr.bf16.gmra.mrb[0].mxu0 %v962
  %v1711 = vpop.f32.mrb[0].mxu0
  %v1712 = vadd.f32 0.0, %v1711
  %v1713 = vpop.f32.mrb[0].mxu0
  %v1714 = vpop.f32.mrb[0].mxu0
  %v1715 = vadd.f32 0.0, %v1714
  %v1716 = vpop.f32.mrb[0].mxu0
  %1717 = vmatprep.mubr.bf16.mxu0 0
  %1718 = vmatmul.mubr.bf16.gmra.mrb[0].mxu0 %v965
  %v1719 = vpop.f32.mrb[0].mxu0
  %v1720 = vadd.f32 0.0, %v1719
  %v1721 = vpop.f32.mrb[0].mxu0
  %v1722 = vpop.f32.mrb[0].mxu0
  %v1723 = vadd.f32 0.0, %v1722
  %v1724 = vpop.f32.mrb[0].mxu0
  %1725 = vmatprep.mubr.bf16.mxu0 0
  %1726 = vmatmul.mubr.bf16.gmra.mrb[0].mxu0 %v968
  %v1727 = vpop.f32.mrb[0].mxu0
  %v1728 = vadd.f32 0.0, %v1727
  %v1729 = vpop.f32.mrb[0].mxu0
  %v1730 = vpop.f32.mrb[0].mxu0
  %v1731 = vadd.f32 0.0, %v1730
  %v1732 = vpop.f32.mrb[0].mxu0
  %1733 = vmatprep.mubr.bf16.mxu0 0
  %1734 = vmatmul.mubr.bf16.gmra.mrb[0].mxu0 %v971
  %v1735 = vpop.f32.mrb[0].mxu0
  %v1736 = vadd.f32 0.0, %v1735
  %v1737 = vpop.f32.mrb[0].mxu0
  %v1738 = vpop.f32.mrb[0].mxu0
  %v1739 = vadd.f32 0.0, %v1738
  %v1740 = vpop.f32.mrb[0].mxu0
  %1741 = vmatprep.mubr.bf16.mxu0 0
  %1742 = vmatmul.mubr.bf16.gmra.mrb[0].mxu0 %v974
  %v1743 = vpop.f32.mrb[0].mxu0
  %v1744 = vadd.f32 0.0, %v1743
  %v1745 = vpop.f32.mrb[0].mxu0
  %v1746 = vpop.f32.mrb[0].mxu0
  %v1747 = vadd.f32 0.0, %v1746
  %v1748 = vpop.f32.mrb[0].mxu0
  %1749 = vmatprep.mubr.bf16.mxu0 0
  %1750 = vmatmul.mubr.bf16.gmra.mrb[0].mxu0 %v977
  %v1751 = vpop.f32.mrb[0].mxu0
  %v1752 = vadd.f32 0.0, %v1751
  %v1753 = vpop.f32.mrb[0].mxu0
  %v1754 = vpop.f32.mrb[0].mxu0
  %v1755 = vadd.f32 0.0, %v1754
  %v1756 = vpop.f32.mrb[0].mxu0
  %1757 = vmatprep.mubr.bf16.mxu0 0
  %1758 = vmatmul.mubr.bf16.gmra.mrb[0].mxu0 %v980
  %v1759 = vpop.f32.mrb[0].mxu0
  %v1760 = vadd.f32 0.0, %v1759
  %v1761 = vpop.f32.mrb[0].mxu0
  %v1762 = vpop.f32.mrb[0].mxu0
  %v1763 = vadd.f32 0.0, %v1762
  %v1764 = vpop.f32.mrb[0].mxu0
  %1765 = vmatprep.mubr.bf16.mxu0 0
  %1766 = vmatmul.mubr.bf16.gmra.mrb[0].mxu0 %v983
  %v1767 = vpop.f32.mrb[0].mxu0
  %v1768 = vadd.f32 0.0, %v1767
  %v1769 = vpop.f32.mrb[0].mxu0
  %v1770 = vpop.f32.mrb[0].mxu0
  %v1771 = vadd.f32 0.0, %v1770
  %v1772 = vpop.f32.mrb[0].mxu0
  %1773 = vmatprep.mubr.bf16.mxu0 0
  %1774 = vmatmul.mubr.bf16.gmra.mrb[0].mxu0 %v986
  %v1775 = vpop.f32.mrb[0].mxu0
  %v1776 = vadd.f32 0.0, %v1775
  %v1777 = vpop.f32.mrb[0].mxu0
  %v1778 = vpop.f32.mrb[0].mxu0
  %v1779 = vadd.f32 0.0, %v1778
  %v1780 = vpop.f32.mrb[0].mxu0
  %1781 = vmatprep.mubr.bf16.mxu0 0
  %1782 = vmatmul.mubr.bf16.gmra.mrb[0].mxu0 %v989
  %v1783 = vpop.f32.mrb[0].mxu0
  %v1784 = vadd.f32 0.0, %v1783
  %v1785 = vpop.f32.mrb[0].mxu0
  %v1786 = vpop.f32.mrb[0].mxu0
  %v1787 = vadd.f32 0.0, %v1786
  %v1788 = vpop.f32.mrb[0].mxu0
  %1789 = vmatprep.mubr.bf16.mxu0 0
  %1790 = vmatmul.mubr.bf16.gmra.mrb[0].mxu0 %v992
  %v1791 = vpop.f32.mrb[0].mxu0
  %v1792 = vadd.f32 0.0, %v1791
  %v1793 = vpop.f32.mrb[0].mxu0
  %v1794 = vpop.f32.mrb[0].mxu0
  %v1795 = vadd.f32 0.0, %v1794
  %v1796 = vpop.f32.mrb[0].mxu0
  %1797 = vmatprep.mubr.bf16.mxu0 0
  %1798 = vmatmul.mubr.bf16.gmra.mrb[0].mxu0 %v995
  %v1799 = vpop.f32.mrb[0].mxu0
  %v1800 = vadd.f32 0.0, %v1799
  %v1801 = vpop.f32.mrb[0].mxu0
  %v1802 = vpop.f32.mrb[0].mxu0
  %v1803 = vadd.f32 0.0, %v1802
  %v1804 = vpop.f32.mrb[0].mxu0
  %1805 = vmatprep.mubr.bf16.mxu0 0
  %1806 = vmatmul.mubr.bf16.gmra.mrb[0].mxu0 %v998
  %v1807 = vpop.f32.mrb[0].mxu0
  %v1808 = vadd.f32 0.0, %v1807
  %v1809 = vpop.f32.mrb[0].mxu0
  %v1810 = vpop.f32.mrb[0].mxu0
  %v1811 = vadd.f32 0.0, %v1810
  %v1812 = vpop.f32.mrb[0].mxu0
  %1813 = vmatprep.mubr.bf16.mxu0 0
  %1814 = vmatmul.mubr.bf16.gmra.mrb[0].mxu0 %v1001
  %v1815 = vpop.f32.mrb[0].mxu0
  %v1816 = vadd.f32 0.0, %v1815
  %v1817 = vpop.f32.mrb[0].mxu0
  %v1818 = vpop.f32.mrb[0].mxu0
  %v1819 = vadd.f32 0.0, %v1818
  %v1820 = vpop.f32.mrb[0].mxu0
  %1821 = vmatprep.mubr.bf16.mxu0 0
  %1822 = vmatmul.mubr.bf16.gmra.mrb[0].mxu0 %v1004
  %v1823 = vpop.f32.mrb[0].mxu0
  %v1824 = vadd.f32 0.0, %v1823
  %v1825 = vpop.f32.mrb[0].mxu0
  %v1826 = vpop.f32.mrb[0].mxu0
  %v1827 = vadd.f32 0.0, %v1826
  %v1828 = vpop.f32.mrb[0].mxu0
  %1829 = vdwg.mxu0
  %vm1830 = vcmask 523264
  %v1831 = vsel %vm1830, %v1048, 0.0
  %v1832 = vsel %vm1830, %v1051, 0.0
  %v1833 = vadd.f32 %v1831, %v1832
  %v1834 = vsel %vm1830, %v1056, 0.0
  %v1835 = vadd.f32 %v1833, %v1834
  %v1836 = vsel %vm1830, %v1059, 0.0
  %v1837 = vadd.f32 %v1835, %v1836
  %v1838 = vsel %vm1830, %v1064, 0.0
  %v1839 = vadd.f32 %v1837, %v1838
  %v1840 = vsel %vm1830, %v1067, 0.0
  %v1841 = vadd.f32 %v1839, %v1840
  %v1842 = vsel %vm1830, %v1072, 0.0
  %v1843 = vadd.f32 %v1841, %v1842
  %v1844 = vsel %vm1830, %v1075, 0.0
  %v1845 = vadd.f32 %v1843, %v1844
  %v1846 = vsel %vm1830, %v1080, 0.0
  %v1847 = vadd.f32 %v1845, %v1846
  %v1848 = vsel %vm1830, %v1083, 0.0
  %v1849 = vadd.f32 %v1847, %v1848
  %v1850 = vsel %vm1830, %v1088, 0.0
  %v1851 = vadd.f32 %v1849, %v1850
  %v1852 = vsel %vm1830, %v1091, 0.0
  %v1853 = vadd.f32 %v1851, %v1852
  %v1854 = vsel %vm1830, %v1096, 0.0
  %v1855 = vadd.f32 %v1853, %v1854
  %v1856 = vsel %vm1830, %v1099, 0.0
  %v1857 = vadd.f32 %v1855, %v1856
  %v1858 = vsel %vm1830, %v1104, 0.0
  %v1859 = vadd.f32 %v1857, %v1858
  %v1860 = vsel %vm1830, %v1107, 0.0
  %v1861 = vadd.f32 %v1859, %v1860
  %v1862 = vsel %vm1830, %v1112, 0.0
  %v1863 = vadd.f32 %v1861, %v1862
  %v1864 = vsel %vm1830, %v1115, 0.0
  %v1865 = vadd.f32 %v1863, %v1864
  %v1866 = vsel %vm1830, %v1120, 0.0
  %v1867 = vadd.f32 %v1865, %v1866
  %v1868 = vsel %vm1830, %v1123, 0.0
  %v1869 = vadd.f32 %v1867, %v1868
  %v1870 = vsel %vm1830, %v1128, 0.0
  %v1871 = vadd.f32 %v1869, %v1870
  %v1872 = vsel %vm1830, %v1131, 0.0
  %v1873 = vadd.f32 %v1871, %v1872
  %v1874 = vsel %vm1830, %v1136, 0.0
  %v1875 = vadd.f32 %v1873, %v1874
  %v1876 = vsel %vm1830, %v1139, 0.0
  %v1877 = vadd.f32 %v1875, %v1876
  %v1878 = vsel %vm1830, %v1144, 0.0
  %v1879 = vadd.f32 %v1877, %v1878
  %v1880 = vsel %vm1830, %v1147, 0.0
  %v1881 = vadd.f32 %v1879, %v1880
  %v1882 = vsel %vm1830, %v1152, 0.0
  %v1883 = vadd.f32 %v1881, %v1882
  %v1884 = vsel %vm1830, %v1155, 0.0
  %v1885 = vadd.f32 %v1883, %v1884
  %v1886 = vsel %vm1830, %v1160, 0.0
  %v1887 = vadd.f32 %v1885, %v1886
  %v1888 = vsel %vm1830, %v1163, 0.0
  %v1889 = vadd.f32 %v1887, %v1888
  %v1890 = vsel %vm1830, %v1168, 0.0
  %v1891 = vadd.f32 %v1889, %v1890
  %v1892 = vsel %vm1830, %v1171, 0.0
  %v1893 = vadd.f32 %v1891, %v1892
  %v1894 = vsel %vm1830, %v1176, 0.0
  %v1895 = vadd.f32 %v1893, %v1894
  %v1896 = vsel %vm1830, %v1179, 0.0
  %v1897 = vadd.f32 %v1895, %v1896
  %v1898 = vsel %vm1830, %v1184, 0.0
  %v1899 = vadd.f32 %v1897, %v1898
  %v1900 = vsel %vm1830, %v1187, 0.0
  %v1901 = vadd.f32 %v1899, %v1900
  %v1902 = vsel %vm1830, %v1192, 0.0
  %v1903 = vadd.f32 %v1901, %v1902
  %v1904 = vsel %vm1830, %v1195, 0.0
  %v1905 = vadd.f32 %v1903, %v1904
  %v1906 = vsel %vm1830, %v1200, 0.0
  %v1907 = vadd.f32 %v1905, %v1906
  %v1908 = vsel %vm1830, %v1203, 0.0
  %v1909 = vadd.f32 %v1907, %v1908
  %v1910 = vsel %vm1830, %v1208, 0.0
  %v1911 = vadd.f32 %v1909, %v1910
  %v1912 = vsel %vm1830, %v1211, 0.0
  %v1913 = vadd.f32 %v1911, %v1912
  %v1914 = vsel %vm1830, %v1216, 0.0
  %v1915 = vadd.f32 %v1913, %v1914
  %v1916 = vsel %vm1830, %v1219, 0.0
  %v1917 = vadd.f32 %v1915, %v1916
  %v1918 = vsel %vm1830, %v1224, 0.0
  %v1919 = vadd.f32 %v1917, %v1918
  %v1920 = vsel %vm1830, %v1227, 0.0
  %v1921 = vadd.f32 %v1919, %v1920
  %v1922 = vsel %vm1830, %v1232, 0.0
  %v1923 = vadd.f32 %v1921, %v1922
  %v1924 = vsel %vm1830, %v1235, 0.0
  %v1925 = vadd.f32 %v1923, %v1924
  %v1926 = vsel %vm1830, %v1240, 0.0
  %v1927 = vadd.f32 %v1925, %v1926
  %v1928 = vsel %vm1830, %v1243, 0.0
  %v1929 = vadd.f32 %v1927, %v1928
  %v1930 = vsel %vm1830, %v1248, 0.0
  %v1931 = vadd.f32 %v1929, %v1930
  %v1932 = vsel %vm1830, %v1251, 0.0
  %v1933 = vadd.f32 %v1931, %v1932
  %v1934 = vsel %vm1830, %v1256, 0.0
  %v1935 = vadd.f32 %v1933, %v1934
  %v1936 = vsel %vm1830, %v1259, 0.0
  %v1937 = vadd.f32 %v1935, %v1936
  %v1938 = vsel %vm1830, %v1264, 0.0
  %v1939 = vadd.f32 %v1937, %v1938
  %v1940 = vsel %vm1830, %v1267, 0.0
  %v1941 = vadd.f32 %v1939, %v1940
  %v1942 = vsel %vm1830, %v1272, 0.0
  %v1943 = vadd.f32 %v1941, %v1942
  %v1944 = vsel %vm1830, %v1275, 0.0
  %v1945 = vadd.f32 %v1943, %v1944
  %v1946 = vsel %vm1830, %v1280, 0.0
  %v1947 = vadd.f32 %v1945, %v1946
  %v1948 = vsel %vm1830, %v1283, 0.0
  %v1949 = vadd.f32 %v1947, %v1948
  %v1950 = vsel %vm1830, %v1288, 0.0
  %v1951 = vadd.f32 %v1949, %v1950
  %v1952 = vsel %vm1830, %v1291, 0.0
  %v1953 = vadd.f32 %v1951, %v1952
  %v1954 = vsel %vm1830, %v1296, 0.0
  %v1955 = vadd.f32 %v1953, %v1954
  %v1956 = vsel %vm1830, %v1299, 0.0
  %v1957 = vadd.f32 %v1955, %v1956
  %v1958 = vsel %vm1830, %v1304, 0.0
  %v1959 = vadd.f32 %v1957, %v1958
  %v1960 = vsel %vm1830, %v1307, 0.0
  %v1961 = vadd.f32 %v1959, %v1960
  %v1962 = vsel %vm1830, %v1312, 0.0
  %v1963 = vadd.f32 %v1961, %v1962
  %v1964 = vsel %vm1830, %v1315, 0.0
  %v1965 = vadd.f32 %v1963, %v1964
  %v1966 = vsel %vm1830, %v1320, 0.0
  %v1967 = vadd.f32 %v1965, %v1966
  %v1968 = vsel %vm1830, %v1323, 0.0
  %v1969 = vadd.f32 %v1967, %v1968
  %v1970 = vsel %vm1830, %v1328, 0.0
  %v1971 = vadd.f32 %v1969, %v1970
  %v1972 = vsel %vm1830, %v1331, 0.0
  %v1973 = vadd.f32 %v1971, %v1972
  %v1974 = vsel %vm1830, %v1336, 0.0
  %v1975 = vadd.f32 %v1973, %v1974
  %v1976 = vsel %vm1830, %v1339, 0.0
  %v1977 = vadd.f32 %v1975, %v1976
  %v1978 = vsel %vm1830, %v1344, 0.0
  %v1979 = vadd.f32 %v1977, %v1978
  %v1980 = vsel %vm1830, %v1347, 0.0
  %v1981 = vadd.f32 %v1979, %v1980
  %v1982 = vsel %vm1830, %v1352, 0.0
  %v1983 = vadd.f32 %v1981, %v1982
  %v1984 = vsel %vm1830, %v1355, 0.0
  %v1985 = vadd.f32 %v1983, %v1984
  %v1986 = vsel %vm1830, %v1360, 0.0
  %v1987 = vadd.f32 %v1985, %v1986
  %v1988 = vsel %vm1830, %v1363, 0.0
  %v1989 = vadd.f32 %v1987, %v1988
  %v1990 = vsel %vm1830, %v1368, 0.0
  %v1991 = vadd.f32 %v1989, %v1990
  %v1992 = vsel %vm1830, %v1371, 0.0
  %v1993 = vadd.f32 %v1991, %v1992
  %v1994 = vsel %vm1830, %v1376, 0.0
  %v1995 = vadd.f32 %v1993, %v1994
  %v1996 = vsel %vm1830, %v1379, 0.0
  %v1997 = vadd.f32 %v1995, %v1996
  %v1998 = vsel %vm1830, %v1384, 0.0
  %v1999 = vadd.f32 %v1997, %v1998
  %v2000 = vsel %vm1830, %v1387, 0.0
  %v2001 = vadd.f32 %v1999, %v2000
  %v2002 = vsel %vm1830, %v1392, 0.0
  %v2003 = vadd.f32 %v2001, %v2002
  %v2004 = vsel %vm1830, %v1395, 0.0
  %v2005 = vadd.f32 %v2003, %v2004
  %v2006 = vsel %vm1830, %v1400, 0.0
  %v2007 = vadd.f32 %v2005, %v2006
  %v2008 = vsel %vm1830, %v1403, 0.0
  %v2009 = vadd.f32 %v2007, %v2008
  %v2010 = vsel %vm1830, %v1408, 0.0
  %v2011 = vadd.f32 %v2009, %v2010
  %v2012 = vsel %vm1830, %v1411, 0.0
  %v2013 = vadd.f32 %v2011, %v2012
  %v2014 = vsel %vm1830, %v1416, 0.0
  %v2015 = vadd.f32 %v2013, %v2014
  %v2016 = vsel %vm1830, %v1419, 0.0
  %v2017 = vadd.f32 %v2015, %v2016
  %v2018 = vsel %vm1830, %v1424, 0.0
  %v2019 = vadd.f32 %v2017, %v2018
  %v2020 = vsel %vm1830, %v1427, 0.0
  %v2021 = vadd.f32 %v2019, %v2020
  %v2022 = vsel %vm1830, %v1432, 0.0
  %v2023 = vadd.f32 %v2021, %v2022
  %v2024 = vsel %vm1830, %v1435, 0.0
  %v2025 = vadd.f32 %v2023, %v2024
  %v2026 = vsel %vm1830, %v1440, 0.0
  %v2027 = vadd.f32 %v2025, %v2026
  %v2028 = vsel %vm1830, %v1443, 0.0
  %v2029 = vadd.f32 %v2027, %v2028
  %v2030 = vsel %vm1830, %v1448, 0.0
  %v2031 = vadd.f32 %v2029, %v2030
  %v2032 = vsel %vm1830, %v1451, 0.0
  %v2033 = vadd.f32 %v2031, %v2032
  %v2034 = vsel %vm1830, %v1456, 0.0
  %v2035 = vadd.f32 %v2033, %v2034
  %v2036 = vsel %vm1830, %v1459, 0.0
  %v2037 = vadd.f32 %v2035, %v2036
  %v2038 = vsel %vm1830, %v1464, 0.0
  %v2039 = vadd.f32 %v2037, %v2038
  %v2040 = vsel %vm1830, %v1467, 0.0
  %v2041 = vadd.f32 %v2039, %v2040
  %v2042 = vsel %vm1830, %v1472, 0.0
  %v2043 = vadd.f32 %v2041, %v2042
  %v2044 = vsel %vm1830, %v1475, 0.0
  %v2045 = vadd.f32 %v2043, %v2044
  %v2046 = vsel %vm1830, %v1480, 0.0
  %v2047 = vadd.f32 %v2045, %v2046
  %v2048 = vsel %vm1830, %v1483, 0.0
  %v2049 = vadd.f32 %v2047, %v2048
  %v2050 = vsel %vm1830, %v1488, 0.0
  %v2051 = vadd.f32 %v2049, %v2050
  %v2052 = vsel %vm1830, %v1491, 0.0
  %v2053 = vadd.f32 %v2051, %v2052
  %v2054 = vsel %vm1830, %v1496, 0.0
  %v2055 = vadd.f32 %v2053, %v2054
  %v2056 = vsel %vm1830, %v1499, 0.0
  %v2057 = vadd.f32 %v2055, %v2056
  %v2058 = vsel %vm1830, %v1504, 0.0
  %v2059 = vadd.f32 %v2057, %v2058
  %v2060 = vsel %vm1830, %v1507, 0.0
  %v2061 = vadd.f32 %v2059, %v2060
  %v2062 = vsel %vm1830, %v1512, 0.0
  %v2063 = vadd.f32 %v2061, %v2062
  %v2064 = vsel %vm1830, %v1515, 0.0
  %v2065 = vadd.f32 %v2063, %v2064
  %v2066 = vsel %vm1830, %v1520, 0.0
  %v2067 = vadd.f32 %v2065, %v2066
  %v2068 = vsel %vm1830, %v1523, 0.0
  %v2069 = vadd.f32 %v2067, %v2068
  %v2070 = vsel %vm1830, %v1528, 0.0
  %v2071 = vadd.f32 %v2069, %v2070
  %v2072 = vsel %vm1830, %v1531, 0.0
  %v2073 = vadd.f32 %v2071, %v2072
  %v2074 = vsel %vm1830, %v1536, 0.0
  %v2075 = vadd.f32 %v2073, %v2074
  %v2076 = vsel %vm1830, %v1539, 0.0
  %v2077 = vadd.f32 %v2075, %v2076
  %v2078 = vsel %vm1830, %v1544, 0.0
  %v2079 = vadd.f32 %v2077, %v2078
  %v2080 = vsel %vm1830, %v1547, 0.0
  %v2081 = vadd.f32 %v2079, %v2080
  %v2082 = vsel %vm1830, %v1552, 0.0
  %v2083 = vadd.f32 %v2081, %v2082
  %v2084 = vsel %vm1830, %v1555, 0.0
  %v2085 = vadd.f32 %v2083, %v2084
  %v2086 = vsel %vm1830, %v1560, 0.0
  %v2087 = vadd.f32 %v2085, %v2086
  %v2088 = vsel %vm1830, %v1563, 0.0
  %v2089 = vadd.f32 %v2087, %v2088
  %v2090 = vsel %vm1830, %v1568, 0.0
  %v2091 = vadd.f32 %v2089, %v2090
  %v2092 = vsel %vm1830, %v1571, 0.0
  %v2093 = vadd.f32 %v2091, %v2092
  %v2094 = vsel %vm1830, %v1576, 0.0
  %v2095 = vadd.f32 %v2093, %v2094
  %v2096 = vsel %vm1830, %v1579, 0.0
  %v2097 = vadd.f32 %v2095, %v2096
  %v2098 = vsel %vm1830, %v1584, 0.0
  %v2099 = vadd.f32 %v2097, %v2098
  %v2100 = vsel %vm1830, %v1587, 0.0
  %v2101 = vadd.f32 %v2099, %v2100
  %v2102 = vsel %vm1830, %v1592, 0.0
  %v2103 = vadd.f32 %v2101, %v2102
  %v2104 = vsel %vm1830, %v1595, 0.0
  %v2105 = vadd.f32 %v2103, %v2104
  %v2106 = vsel %vm1830, %v1600, 0.0
  %v2107 = vadd.f32 %v2105, %v2106
  %v2108 = vsel %vm1830, %v1603, 0.0
  %v2109 = vadd.f32 %v2107, %v2108
  %v2110 = vsel %vm1830, %v1608, 0.0
  %v2111 = vadd.f32 %v2109, %v2110
  %v2112 = vsel %vm1830, %v1611, 0.0
  %v2113 = vadd.f32 %v2111, %v2112
  %v2114 = vsel %vm1830, %v1616, 0.0
  %v2115 = vadd.f32 %v2113, %v2114
  %v2116 = vsel %vm1830, %v1619, 0.0
  %v2117 = vadd.f32 %v2115, %v2116
  %v2118 = vsel %vm1830, %v1624, 0.0
  %v2119 = vadd.f32 %v2117, %v2118
  %v2120 = vsel %vm1830, %v1627, 0.0
  %v2121 = vadd.f32 %v2119, %v2120
  %v2122 = vsel %vm1830, %v1632, 0.0
  %v2123 = vadd.f32 %v2121, %v2122
  %v2124 = vsel %vm1830, %v1635, 0.0
  %v2125 = vadd.f32 %v2123, %v2124
  %v2126 = vsel %vm1830, %v1640, 0.0
  %v2127 = vadd.f32 %v2125, %v2126
  %v2128 = vsel %vm1830, %v1643, 0.0
  %v2129 = vadd.f32 %v2127, %v2128
  %v2130 = vsel %vm1830, %v1648, 0.0
  %v2131 = vadd.f32 %v2129, %v2130
  %v2132 = vsel %vm1830, %v1651, 0.0
  %v2133 = vadd.f32 %v2131, %v2132
  %v2134 = vsel %vm1830, %v1656, 0.0
  %v2135 = vadd.f32 %v2133, %v2134
  %v2136 = vsel %vm1830, %v1659, 0.0
  %v2137 = vadd.f32 %v2135, %v2136
  %v2138 = vsel %vm1830, %v1664, 0.0
  %v2139 = vadd.f32 %v2137, %v2138
  %v2140 = vsel %vm1830, %v1667, 0.0
  %v2141 = vadd.f32 %v2139, %v2140
  %v2142 = vsel %vm1830, %v1672, 0.0
  %v2143 = vadd.f32 %v2141, %v2142
  %v2144 = vsel %vm1830, %v1675, 0.0
  %v2145 = vadd.f32 %v2143, %v2144
  %v2146 = vsel %vm1830, %v1680, 0.0
  %v2147 = vadd.f32 %v2145, %v2146
  %v2148 = vsel %vm1830, %v1683, 0.0
  %v2149 = vadd.f32 %v2147, %v2148
  %v2150 = vsel %vm1830, %v1688, 0.0
  %v2151 = vadd.f32 %v2149, %v2150
  %v2152 = vsel %vm1830, %v1691, 0.0
  %v2153 = vadd.f32 %v2151, %v2152
  %v2154 = vsel %vm1830, %v1696, 0.0
  %v2155 = vadd.f32 %v2153, %v2154
  %v2156 = vsel %vm1830, %v1699, 0.0
  %v2157 = vadd.f32 %v2155, %v2156
  %v2158 = vsel %vm1830, %v1704, 0.0
  %v2159 = vadd.f32 %v2157, %v2158
  %v2160 = vsel %vm1830, %v1707, 0.0
  %v2161 = vadd.f32 %v2159, %v2160
  %v2162 = vsel %vm1830, %v1712, 0.0
  %v2163 = vadd.f32 %v2161, %v2162
  %v2164 = vsel %vm1830, %v1715, 0.0
  %v2165 = vadd.f32 %v2163, %v2164
  %v2166 = vsel %vm1830, %v1720, 0.0
  %v2167 = vadd.f32 %v2165, %v2166
  %v2168 = vsel %vm1830, %v1723, 0.0
  %v2169 = vadd.f32 %v2167, %v2168
  %v2170 = vsel %vm1830, %v1728, 0.0
  %v2171 = vadd.f32 %v2169, %v2170
  %v2172 = vsel %vm1830, %v1731, 0.0
  %v2173 = vadd.f32 %v2171, %v2172
  %v2174 = vsel %vm1830, %v1736, 0.0
  %v2175 = vadd.f32 %v2173, %v2174
  %v2176 = vsel %vm1830, %v1739, 0.0
  %v2177 = vadd.f32 %v2175, %v2176
  %v2178 = vsel %vm1830, %v1744, 0.0
  %v2179 = vadd.f32 %v2177, %v2178
  %v2180 = vsel %vm1830, %v1747, 0.0
  %v2181 = vadd.f32 %v2179, %v2180
  %v2182 = vsel %vm1830, %v1752, 0.0
  %v2183 = vadd.f32 %v2181, %v2182
  %v2184 = vsel %vm1830, %v1755, 0.0
  %v2185 = vadd.f32 %v2183, %v2184
  %v2186 = vsel %vm1830, %v1760, 0.0
  %v2187 = vadd.f32 %v2185, %v2186
  %v2188 = vsel %vm1830, %v1763, 0.0
  %v2189 = vadd.f32 %v2187, %v2188
  %v2190 = vsel %vm1830, %v1768, 0.0
  %v2191 = vadd.f32 %v2189, %v2190
  %v2192 = vsel %vm1830, %v1771, 0.0
  %v2193 = vadd.f32 %v2191, %v2192
  %v2194 = vsel %vm1830, %v1776, 0.0
  %v2195 = vadd.f32 %v2193, %v2194
  %v2196 = vsel %vm1830, %v1779, 0.0
  %v2197 = vadd.f32 %v2195, %v2196
  %v2198 = vsel %vm1830, %v1784, 0.0
  %v2199 = vadd.f32 %v2197, %v2198
  %v2200 = vsel %vm1830, %v1787, 0.0
  %v2201 = vadd.f32 %v2199, %v2200
  %v2202 = vsel %vm1830, %v1792, 0.0
  %v2203 = vadd.f32 %v2201, %v2202
  %v2204 = vsel %vm1830, %v1795, 0.0
  %v2205 = vadd.f32 %v2203, %v2204
  %v2206 = vsel %vm1830, %v1800, 0.0
  %v2207 = vadd.f32 %v2205, %v2206
  %v2208 = vsel %vm1830, %v1803, 0.0
  %v2209 = vadd.f32 %v2207, %v2208
  %v2210 = vsel %vm1830, %v1808, 0.0
  %v2211 = vadd.f32 %v2209, %v2210
  %v2212 = vsel %vm1830, %v1811, 0.0
  %v2213 = vadd.f32 %v2211, %v2212
  %v2214 = vsel %vm1830, %v1816, 0.0
  %v2215 = vadd.f32 %v2213, %v2214
  %v2216 = vsel %vm1830, %v1819, 0.0
  %v2217 = vadd.f32 %v2215, %v2216
  %v2218 = vsel %vm1830, %v1824, 0.0
  %v2219 = vadd.f32 %v2217, %v2218
  %v2220 = vsel %vm1830, %v1827, 0.0
  %v2221 = vadd.f32 %v2219, %v2220
  %v2222 = vrot.slane %v2221, 4
  %v2223 = vadd.f32 %v2221, %v2222
  %v2224 = vrot.slane %v2223, 2
  %v2225 = vadd.f32 %v2223, %v2224
  %v2226 = vrot.slane %v2225, 1
  %v2227 = vadd.f32 %v2225, %v2226
  %v2228 = vrcp.pop 1568.0
  %v2229 = vmul.f32 %v2227, %v2228
  %v2230 = vsub.f32 %v1048, %v2229
  %v2231 = vsub.f32 %v1051, %v2229
  %v2232 = vsub.f32 %v1056, %v2229
  %v2233 = vsub.f32 %v1059, %v2229
  %v2234 = vsub.f32 %v1064, %v2229
  %v2235 = vsub.f32 %v1067, %v2229
  %v2236 = vsub.f32 %v1072, %v2229
  %v2237 = vsub.f32 %v1075, %v2229
  %v2238 = vsub.f32 %v1080, %v2229
  %v2239 = vsub.f32 %v1083, %v2229
  %v2240 = vsub.f32 %v1088, %v2229
  %v2241 = vsub.f32 %v1091, %v2229
  %v2242 = vsub.f32 %v1096, %v2229
  %v2243 = vsub.f32 %v1099, %v2229
  %v2244 = vsub.f32 %v1104, %v2229
  %v2245 = vsub.f32 %v1107, %v2229
  %v2246 = vsub.f32 %v1112, %v2229
  %v2247 = vsub.f32 %v1115, %v2229
  %v2248 = vsub.f32 %v1120, %v2229
  %v2249 = vsub.f32 %v1123, %v2229
  %v2250 = vsub.f32 %v1128, %v2229
  %v2251 = vsub.f32 %v1131, %v2229
  %v2252 = vsub.f32 %v1136, %v2229
  %v2253 = vsub.f32 %v1139, %v2229
  %v2254 = vsub.f32 %v1144, %v2229
  %v2255 = vsub.f32 %v1147, %v2229
  %v2256 = vsub.f32 %v1152, %v2229
  %v2257 = vsub.f32 %v1155, %v2229
  %v2258 = vsub.f32 %v1160, %v2229
  %v2259 = vsub.f32 %v1163, %v2229
  %v2260 = vsub.f32 %v1168, %v2229
  %v2261 = vsub.f32 %v1171, %v2229
  %v2262 = vsub.f32 %v1176, %v2229
  %v2263 = vsub.f32 %v1179, %v2229
  %v2264 = vsub.f32 %v1184, %v2229
  %v2265 = vsub.f32 %v1187, %v2229
  %v2266 = vsub.f32 %v1192, %v2229
  %v2267 = vsub.f32 %v1195, %v2229
  %v2268 = vsub.f32 %v1200, %v2229
  %v2269 = vsub.f32 %v1203, %v2229
  %v2270 = vsub.f32 %v1208, %v2229
  %v2271 = vsub.f32 %v1211, %v2229
  %v2272 = vsub.f32 %v1216, %v2229
  %v2273 = vsub.f32 %v1219, %v2229
  %v2274 = vsub.f32 %v1224, %v2229
  %v2275 = vsub.f32 %v1227, %v2229
  %v2276 = vsub.f32 %v1232, %v2229
  %v2277 = vsub.f32 %v1235, %v2229
  %v2278 = vsub.f32 %v1240, %v2229
  %v2279 = vsub.f32 %v1243, %v2229
  %v2280 = vsub.f32 %v1248, %v2229
  %v2281 = vsub.f32 %v1251, %v2229
  %v2282 = vsub.f32 %v1256, %v2229
  %v2283 = vsub.f32 %v1259, %v2229
  %v2284 = vsub.f32 %v1264, %v2229
  %v2285 = vsub.f32 %v1267, %v2229
  %v2286 = vsub.f32 %v1272, %v2229
  %v2287 = vsub.f32 %v1275, %v2229
  %v2288 = vsub.f32 %v1280, %v2229
  %v2289 = vsub.f32 %v1283, %v2229
  %v2290 = vsub.f32 %v1288, %v2229
  %v2291 = vsub.f32 %v1291, %v2229
  %v2292 = vsub.f32 %v1296, %v2229
  %v2293 = vsub.f32 %v1299, %v2229
  %v2294 = vsub.f32 %v1304, %v2229
  %v2295 = vsub.f32 %v1307, %v2229
  %v2296 = vsub.f32 %v1312, %v2229
  %v2297 = vsub.f32 %v1315, %v2229
  %v2298 = vsub.f32 %v1320, %v2229
  %v2299 = vsub.f32 %v1323, %v2229
  %v2300 = vsub.f32 %v1328, %v2229
  %v2301 = vsub.f32 %v1331, %v2229
  %v2302 = vsub.f32 %v1336, %v2229
  %v2303 = vsub.f32 %v1339, %v2229
  %v2304 = vsub.f32 %v1344, %v2229
  %v2305 = vsub.f32 %v1347, %v2229
  %v2306 = vsub.f32 %v1352, %v2229
  %v2307 = vsub.f32 %v1355, %v2229
  %v2308 = vsub.f32 %v1360, %v2229
  %v2309 = vsub.f32 %v1363, %v2229
  %v2310 = vsub.f32 %v1368, %v2229
  %v2311 = vsub.f32 %v1371, %v2229
  %v2312 = vsub.f32 %v1376, %v2229
  %v2313 = vsub.f32 %v1379, %v2229
  %v2314 = vsub.f32 %v1384, %v2229
  %v2315 = vsub.f32 %v1387, %v2229
  %v2316 = vsub.f32 %v1392, %v2229
  %v2317 = vsub.f32 %v1395, %v2229
  %v2318 = vsub.f32 %v1400, %v2229
  %v2319 = vsub.f32 %v1403, %v2229
  %v2320 = vsub.f32 %v1408, %v2229
  %v2321 = vsub.f32 %v1411, %v2229
  %v2322 = vsub.f32 %v1416, %v2229
  %v2323 = vsub.f32 %v1419, %v2229
  %v2324 = vsub.f32 %v1424, %v2229
  %v2325 = vsub.f32 %v1427, %v2229
  %v2326 = vsub.f32 %v1432, %v2229
  %v2327 = vsub.f32 %v1435, %v2229
  %v2328 = vsub.f32 %v1440, %v2229
  %v2329 = vsub.f32 %v1443, %v2229
  %v2330 = vsub.f32 %v1448, %v2229
  %v2331 = vsub.f32 %v1451, %v2229
  %v2332 = vsub.f32 %v1456, %v2229
  %v2333 = vsub.f32 %v1459, %v2229
  %v2334 = vsub.f32 %v1464, %v2229
  %v2335 = vsub.f32 %v1467, %v2229
  %v2336 = vsub.f32 %v1472, %v2229
  %v2337 = vsub.f32 %v1475, %v2229
  %v2338 = vsub.f32 %v1480, %v2229
  %v2339 = vsub.f32 %v1483, %v2229
  %v2340 = vsub.f32 %v1488, %v2229
  %v2341 = vsub.f32 %v1491, %v2229
  %v2342 = vsub.f32 %v1496, %v2229
  %v2343 = vsub.f32 %v1499, %v2229
  %v2344 = vsub.f32 %v1504, %v2229
  %v2345 = vsub.f32 %v1507, %v2229
  %v2346 = vsub.f32 %v1512, %v2229
  %v2347 = vsub.f32 %v1515, %v2229
  %v2348 = vsub.f32 %v1520, %v2229
  %v2349 = vsub.f32 %v1523, %v2229
  %v2350 = vsub.f32 %v1528, %v2229
  %v2351 = vsub.f32 %v1531, %v2229
  %v2352 = vsub.f32 %v1536, %v2229
  %v2353 = vsub.f32 %v1539, %v2229
  %v2354 = vsub.f32 %v1544, %v2229
  %v2355 = vsub.f32 %v1547, %v2229
  %v2356 = vsub.f32 %v1552, %v2229
  %v2357 = vsub.f32 %v1555, %v2229
  %v2358 = vsub.f32 %v1560, %v2229
  %v2359 = vsub.f32 %v1563, %v2229
  %v2360 = vsub.f32 %v1568, %v2229
  %v2361 = vsub.f32 %v1571, %v2229
  %v2362 = vsub.f32 %v1576, %v2229
  %v2363 = vsub.f32 %v1579, %v2229
  %v2364 = vsub.f32 %v1584, %v2229
  %v2365 = vsub.f32 %v1587, %v2229
  %v2366 = vsub.f32 %v1592, %v2229
  %v2367 = vsub.f32 %v1595, %v2229
  %v2368 = vsub.f32 %v1600, %v2229
  %v2369 = vsub.f32 %v1603, %v2229
  %v2370 = vsub.f32 %v1608, %v2229
  %v2371 = vsub.f32 %v1611, %v2229
  %v2372 = vsub.f32 %v1616, %v2229
  %v2373 = vsub.f32 %v1619, %v2229
  %v2374 = vsub.f32 %v1624, %v2229
  %v2375 = vsub.f32 %v1627, %v2229
  %v2376 = vsub.f32 %v1632, %v2229
  %v2377 = vsub.f32 %v1635, %v2229
  %v2378 = vsub.f32 %v1640, %v2229
  %v2379 = vsub.f32 %v1643, %v2229
  %v2380 = vsub.f32 %v1648, %v2229
  %v2381 = vsub.f32 %v1651, %v2229
  %v2382 = vsub.f32 %v1656, %v2229
  %v2383 = vsub.f32 %v1659, %v2229
  %v2384 = vsub.f32 %v1664, %v2229
  %v2385 = vsub.f32 %v1667, %v2229
  %v2386 = vsub.f32 %v1672, %v2229
  %v2387 = vsub.f32 %v1675, %v2229
  %v2388 = vsub.f32 %v1680, %v2229
  %v2389 = vsub.f32 %v1683, %v2229
  %v2390 = vsub.f32 %v1688, %v2229
  %v2391 = vsub.f32 %v1691, %v2229
  %v2392 = vsub.f32 %v1696, %v2229
  %v2393 = vsub.f32 %v1699, %v2229
  %v2394 = vsub.f32 %v1704, %v2229
  %v2395 = vsub.f32 %v1707, %v2229
  %v2396 = vsub.f32 %v1712, %v2229
  %v2397 = vsub.f32 %v1715, %v2229
  %v2398 = vsub.f32 %v1720, %v2229
  %v2399 = vsub.f32 %v1723, %v2229
  %v2400 = vsub.f32 %v1728, %v2229
  %v2401 = vsub.f32 %v1731, %v2229
  %v2402 = vsub.f32 %v1736, %v2229
  %v2403 = vsub.f32 %v1739, %v2229
  %v2404 = vsub.f32 %v1744, %v2229
  %v2405 = vsub.f32 %v1747, %v2229
  %v2406 = vsub.f32 %v1752, %v2229
  %v2407 = vsub.f32 %v1755, %v2229
  %v2408 = vsub.f32 %v1760, %v2229
  %v2409 = vsub.f32 %v1763, %v2229
  %v2410 = vsub.f32 %v1768, %v2229
  %v2411 = vsub.f32 %v1771, %v2229
  %v2412 = vsub.f32 %v1776, %v2229
  %v2413 = vsub.f32 %v1779, %v2229
  %v2414 = vsub.f32 %v1784, %v2229
  %v2415 = vsub.f32 %v1787, %v2229
  %v2416 = vsub.f32 %v1792, %v2229
  %v2417 = vsub.f32 %v1795, %v2229
  %v2418 = vsub.f32 %v1800, %v2229
  %v2419 = vsub.f32 %v1803, %v2229
  %v2420 = vsub.f32 %v1808, %v2229
  %v2421 = vsub.f32 %v1811, %v2229
  %v2422 = vsub.f32 %v1816, %v2229
  %v2423 = vsub.f32 %v1819, %v2229
  %v2424 = vsub.f32 %v1824, %v2229
  %v2425 = vsub.f32 %v1827, %v2229
  %v2426 = vmul.f32 %v2230, %v2230
  %v2427 = vmul.f32 %v2231, %v2231
  %v2428 = vmul.f32 %v2232, %v2232
  %v2429 = vmul.f32 %v2233, %v2233
  %v2430 = vmul.f32 %v2234, %v2234
  %v2431 = vmul.f32 %v2235, %v2235
  %v2432 = vmul.f32 %v2236, %v2236
  %v2433 = vmul.f32 %v2237, %v2237
  %v2434 = vmul.f32 %v2238, %v2238
  %v2435 = vmul.f32 %v2239, %v2239
  %v2436 = vmul.f32 %v2240, %v2240
  %v2437 = vmul.f32 %v2241, %v2241
  %v2438 = vmul.f32 %v2242, %v2242
  %v2439 = vmul.f32 %v2243, %v2243
  %v2440 = vmul.f32 %v2244, %v2244
  %v2441 = vmul.f32 %v2245, %v2245
  %v2442 = vmul.f32 %v2246, %v2246
  %v2443 = vmul.f32 %v2247, %v2247
  %v2444 = vmul.f32 %v2248, %v2248
  %v2445 = vmul.f32 %v2249, %v2249
  %v2446 = vmul.f32 %v2250, %v2250
  %v2447 = vmul.f32 %v2251, %v2251
  %v2448 = vmul.f32 %v2252, %v2252
  %v2449 = vmul.f32 %v2253, %v2253
  %v2450 = vmul.f32 %v2254, %v2254
  %v2451 = vmul.f32 %v2255, %v2255
  %v2452 = vmul.f32 %v2256, %v2256
  %v2453 = vmul.f32 %v2257, %v2257
  %v2454 = vmul.f32 %v2258, %v2258
  %v2455 = vmul.f32 %v2259, %v2259
  %v2456 = vmul.f32 %v2260, %v2260
  %v2457 = vmul.f32 %v2261, %v2261
  %v2458 = vmul.f32 %v2262, %v2262
  %v2459 = vmul.f32 %v2263, %v2263
  %v2460 = vmul.f32 %v2264, %v2264
  %v2461 = vmul.f32 %v2265, %v2265
  %v2462 = vmul.f32 %v2266, %v2266
  %v2463 = vmul.f32 %v2267, %v2267
  %v2464 = vmul.f32 %v2268, %v2268
  %v2465 = vmul.f32 %v2269, %v2269
  %v2466 = vmul.f32 %v2270, %v2270
  %v2467 = vmul.f32 %v2271, %v2271
  %v2468 = vmul.f32 %v2272, %v2272
  %v2469 = vmul.f32 %v2273, %v2273
  %v2470 = vmul.f32 %v2274, %v2274
  %v2471 = vmul.f32 %v2275, %v2275
  %v2472 = vmul.f32 %v2276, %v2276
  %v2473 = vmul.f32 %v2277, %v2277
  %v2474 = vmul.f32 %v2278, %v2278
  %v2475 = vmul.f32 %v2279, %v2279
  %v2476 = vmul.f32 %v2280, %v2280
  %v2477 = vmul.f32 %v2281, %v2281
  %v2478 = vmul.f32 %v2282, %v2282
  %v2479 = vmul.f32 %v2283, %v2283
  %v2480 = vmul.f32 %v2284, %v2284
  %v2481 = vmul.f32 %v2285, %v2285
  %v2482 = vmul.f32 %v2286, %v2286
  %v2483 = vmul.f32 %v2287, %v2287
  %v2484 = vmul.f32 %v2288, %v2288
  %v2485 = vmul.f32 %v2289, %v2289
  %v2486 = vmul.f32 %v2290, %v2290
  %v2487 = vmul.f32 %v2291, %v2291
  %v2488 = vmul.f32 %v2292, %v2292
  %v2489 = vmul.f32 %v2293, %v2293
  %v2490 = vmul.f32 %v2294, %v2294
  %v2491 = vmul.f32 %v2295, %v2295
  %v2492 = vmul.f32 %v2296, %v2296
  %v2493 = vmul.f32 %v2297, %v2297
  %v2494 = vmul.f32 %v2298, %v2298
  %v2495 = vmul.f32 %v2299, %v2299
  %v2496 = vmul.f32 %v2300, %v2300
  %v2497 = vmul.f32 %v2301, %v2301
  %v2498 = vmul.f32 %v2302, %v2302
  %v2499 = vmul.f32 %v2303, %v2303
  %v2500 = vmul.f32 %v2304, %v2304
  %v2501 = vmul.f32 %v2305, %v2305
  %v2502 = vmul.f32 %v2306, %v2306
  %v2503 = vmul.f32 %v2307, %v2307
  %v2504 = vmul.f32 %v2308, %v2308
  %v2505 = vmul.f32 %v2309, %v2309
  %v2506 = vmul.f32 %v2310, %v2310
  %v2507 = vmul.f32 %v2311, %v2311
  %v2508 = vmul.f32 %v2312, %v2312
  %v2509 = vmul.f32 %v2313, %v2313
  %v2510 = vmul.f32 %v2314, %v2314
  %v2511 = vmul.f32 %v2315, %v2315
  %v2512 = vmul.f32 %v2316, %v2316
  %v2513 = vmul.f32 %v2317, %v2317
  %v2514 = vmul.f32 %v2318, %v2318
  %v2515 = vmul.f32 %v2319, %v2319
  %v2516 = vmul.f32 %v2320, %v2320
  %v2517 = vmul.f32 %v2321, %v2321
  %v2518 = vmul.f32 %v2322, %v2322
  %v2519 = vmul.f32 %v2323, %v2323
  %v2520 = vmul.f32 %v2324, %v2324
  %v2521 = vmul.f32 %v2325, %v2325
  %v2522 = vmul.f32 %v2326, %v2326
  %v2523 = vmul.f32 %v2327, %v2327
  %v2524 = vmul.f32 %v2328, %v2328
  %v2525 = vmul.f32 %v2329, %v2329
  %v2526 = vmul.f32 %v2330, %v2330
  %v2527 = vmul.f32 %v2331, %v2331
  %v2528 = vmul.f32 %v2332, %v2332
  %v2529 = vmul.f32 %v2333, %v2333
  %v2530 = vmul.f32 %v2334, %v2334
  %v2531 = vmul.f32 %v2335, %v2335
  %v2532 = vmul.f32 %v2336, %v2336
  %v2533 = vmul.f32 %v2337, %v2337
  %v2534 = vmul.f32 %v2338, %v2338
  %v2535 = vmul.f32 %v2339, %v2339
  %v2536 = vmul.f32 %v2340, %v2340
  %v2537 = vmul.f32 %v2341, %v2341
  %v2538 = vmul.f32 %v2342, %v2342
  %v2539 = vmul.f32 %v2343, %v2343
  %v2540 = vmul.f32 %v2344, %v2344
  %v2541 = vmul.f32 %v2345, %v2345
  %v2542 = vmul.f32 %v2346, %v2346
  %v2543 = vmul.f32 %v2347, %v2347
  %v2544 = vmul.f32 %v2348, %v2348
  %v2545 = vmul.f32 %v2349, %v2349
  %v2546 = vmul.f32 %v2350, %v2350
  %v2547 = vmul.f32 %v2351, %v2351
  %v2548 = vmul.f32 %v2352, %v2352
  %v2549 = vmul.f32 %v2353, %v2353
  %v2550 = vmul.f32 %v2354, %v2354
  %v2551 = vmul.f32 %v2355, %v2355
  %v2552 = vmul.f32 %v2356, %v2356
  %v2553 = vmul.f32 %v2357, %v2357
  %v2554 = vmul.f32 %v2358, %v2358
  %v2555 = vmul.f32 %v2359, %v2359
  %v2556 = vmul.f32 %v2360, %v2360
  %v2557 = vmul.f32 %v2361, %v2361
  %v2558 = vmul.f32 %v2362, %v2362
  %v2559 = vmul.f32 %v2363, %v2363
  %v2560 = vmul.f32 %v2364, %v2364
  %v2561 = vmul.f32 %v2365, %v2365
  %v2562 = vmul.f32 %v2366, %v2366
  %v2563 = vmul.f32 %v2367, %v2367
  %v2564 = vmul.f32 %v2368, %v2368
  %v2565 = vmul.f32 %v2369, %v2369
  %v2566 = vmul.f32 %v2370, %v2370
  %v2567 = vmul.f32 %v2371, %v2371
  %v2568 = vmul.f32 %v2372, %v2372
  %v2569 = vmul.f32 %v2373, %v2373
  %v2570 = vmul.f32 %v2374, %v2374
  %v2571 = vmul.f32 %v2375, %v2375
  %v2572 = vmul.f32 %v2376, %v2376
  %v2573 = vmul.f32 %v2377, %v2377
  %v2574 = vmul.f32 %v2378, %v2378
  %v2575 = vmul.f32 %v2379, %v2379
  %v2576 = vmul.f32 %v2380, %v2380
  %v2577 = vmul.f32 %v2381, %v2381
  %v2578 = vmul.f32 %v2382, %v2382
  %v2579 = vmul.f32 %v2383, %v2383
  %v2580 = vmul.f32 %v2384, %v2384
  %v2581 = vmul.f32 %v2385, %v2385
  %v2582 = vmul.f32 %v2386, %v2386
  %v2583 = vmul.f32 %v2387, %v2387
  %v2584 = vmul.f32 %v2388, %v2388
  %v2585 = vmul.f32 %v2389, %v2389
  %v2586 = vmul.f32 %v2390, %v2390
  %v2587 = vmul.f32 %v2391, %v2391
  %v2588 = vmul.f32 %v2392, %v2392
  %v2589 = vmul.f32 %v2393, %v2393
  %v2590 = vmul.f32 %v2394, %v2394
  %v2591 = vmul.f32 %v2395, %v2395
  %v2592 = vmul.f32 %v2396, %v2396
  %v2593 = vmul.f32 %v2397, %v2397
  %v2594 = vmul.f32 %v2398, %v2398
  %v2595 = vmul.f32 %v2399, %v2399
  %v2596 = vmul.f32 %v2400, %v2400
  %v2597 = vmul.f32 %v2401, %v2401
  %v2598 = vmul.f32 %v2402, %v2402
  %v2599 = vmul.f32 %v2403, %v2403
  %v2600 = vmul.f32 %v2404, %v2404
  %v2601 = vmul.f32 %v2405, %v2405
  %v2602 = vmul.f32 %v2406, %v2406
  %v2603 = vmul.f32 %v2407, %v2407
  %v2604 = vmul.f32 %v2408, %v2408
  %v2605 = vmul.f32 %v2409, %v2409
  %v2606 = vmul.f32 %v2410, %v2410
  %v2607 = vmul.f32 %v2411, %v2411
  %v2608 = vmul.f32 %v2412, %v2412
  %v2609 = vmul.f32 %v2413, %v2413
  %v2610 = vmul.f32 %v2414, %v2414
  %v2611 = vmul.f32 %v2415, %v2415
  %v2612 = vmul.f32 %v2416, %v2416
  %v2613 = vmul.f32 %v2417, %v2417
  %v2614 = vmul.f32 %v2418, %v2418
  %v2615 = vmul.f32 %v2419, %v2419
  %v2616 = vmul.f32 %v2420, %v2420
  %v2617 = vmul.f32 %v2421, %v2421
  %v2618 = vmul.f32 %v2422, %v2422
  %v2619 = vmul.f32 %v2423, %v2423
  %v2620 = vmul.f32 %v2424, %v2424
  %v2621 = vmul.f32 %v2425, %v2425
  %v2622 = vsel %vm1830, %v2426, 0.0
  %v2623 = vsel %vm1830, %v2427, 0.0
  %v2624 = vadd.f32 %v2622, %v2623
  %v2625 = vsel %vm1830, %v2428, 0.0
  %v2626 = vadd.f32 %v2624, %v2625
  %v2627 = vsel %vm1830, %v2429, 0.0
  %v2628 = vadd.f32 %v2626, %v2627
  %v2629 = vsel %vm1830, %v2430, 0.0
  %v2630 = vadd.f32 %v2628, %v2629
  %v2631 = vsel %vm1830, %v2431, 0.0
  %v2632 = vadd.f32 %v2630, %v2631
  %v2633 = vsel %vm1830, %v2432, 0.0
  %v2634 = vadd.f32 %v2632, %v2633
  %v2635 = vsel %vm1830, %v2433, 0.0
  %v2636 = vadd.f32 %v2634, %v2635
  %v2637 = vsel %vm1830, %v2434, 0.0
  %v2638 = vadd.f32 %v2636, %v2637
  %v2639 = vsel %vm1830, %v2435, 0.0
  %v2640 = vadd.f32 %v2638, %v2639
  %v2641 = vsel %vm1830, %v2436, 0.0
  %v2642 = vadd.f32 %v2640, %v2641
  %v2643 = vsel %vm1830, %v2437, 0.0
  %v2644 = vadd.f32 %v2642, %v2643
  %v2645 = vsel %vm1830, %v2438, 0.0
  %v2646 = vadd.f32 %v2644, %v2645
  %v2647 = vsel %vm1830, %v2439, 0.0
  %v2648 = vadd.f32 %v2646, %v2647
  %v2649 = vsel %vm1830, %v2440, 0.0
  %v2650 = vadd.f32 %v2648, %v2649
  %v2651 = vsel %vm1830, %v2441, 0.0
  %v2652 = vadd.f32 %v2650, %v2651
  %v2653 = vsel %vm1830, %v2442, 0.0
  %v2654 = vadd.f32 %v2652, %v2653
  %v2655 = vsel %vm1830, %v2443, 0.0
  %v2656 = vadd.f32 %v2654, %v2655
  %v2657 = vsel %vm1830, %v2444, 0.0
  %v2658 = vadd.f32 %v2656, %v2657
  %v2659 = vsel %vm1830, %v2445, 0.0
  %v2660 = vadd.f32 %v2658, %v2659
  %v2661 = vsel %vm1830, %v2446, 0.0
  %v2662 = vadd.f32 %v2660, %v2661
  %v2663 = vsel %vm1830, %v2447, 0.0
  %v2664 = vadd.f32 %v2662, %v2663
  %v2665 = vsel %vm1830, %v2448, 0.0
  %v2666 = vadd.f32 %v2664, %v2665
  %v2667 = vsel %vm1830, %v2449, 0.0
  %v2668 = vadd.f32 %v2666, %v2667
  %v2669 = vsel %vm1830, %v2450, 0.0
  %v2670 = vadd.f32 %v2668, %v2669
  %v2671 = vsel %vm1830, %v2451, 0.0
  %v2672 = vadd.f32 %v2670, %v2671
  %v2673 = vsel %vm1830, %v2452, 0.0
  %v2674 = vadd.f32 %v2672, %v2673
  %v2675 = vsel %vm1830, %v2453, 0.0
  %v2676 = vadd.f32 %v2674, %v2675
  %v2677 = vsel %vm1830, %v2454, 0.0
  %v2678 = vadd.f32 %v2676, %v2677
  %v2679 = vsel %vm1830, %v2455, 0.0
  %v2680 = vadd.f32 %v2678, %v2679
  %v2681 = vsel %vm1830, %v2456, 0.0
  %v2682 = vadd.f32 %v2680, %v2681
  %v2683 = vsel %vm1830, %v2457, 0.0
  %v2684 = vadd.f32 %v2682, %v2683
  %v2685 = vsel %vm1830, %v2458, 0.0
  %v2686 = vadd.f32 %v2684, %v2685
  %v2687 = vsel %vm1830, %v2459, 0.0
  %v2688 = vadd.f32 %v2686, %v2687
  %v2689 = vsel %vm1830, %v2460, 0.0
  %v2690 = vadd.f32 %v2688, %v2689
  %v2691 = vsel %vm1830, %v2461, 0.0
  %v2692 = vadd.f32 %v2690, %v2691
  %v2693 = vsel %vm1830, %v2462, 0.0
  %v2694 = vadd.f32 %v2692, %v2693
  %v2695 = vsel %vm1830, %v2463, 0.0
  %v2696 = vadd.f32 %v2694, %v2695
  %v2697 = vsel %vm1830, %v2464, 0.0
  %v2698 = vadd.f32 %v2696, %v2697
  %v2699 = vsel %vm1830, %v2465, 0.0
  %v2700 = vadd.f32 %v2698, %v2699
  %v2701 = vsel %vm1830, %v2466, 0.0
  %v2702 = vadd.f32 %v2700, %v2701
  %v2703 = vsel %vm1830, %v2467, 0.0
  %v2704 = vadd.f32 %v2702, %v2703
  %v2705 = vsel %vm1830, %v2468, 0.0
  %v2706 = vadd.f32 %v2704, %v2705
  %v2707 = vsel %vm1830, %v2469, 0.0
  %v2708 = vadd.f32 %v2706, %v2707
  %v2709 = vsel %vm1830, %v2470, 0.0
  %v2710 = vadd.f32 %v2708, %v2709
  %v2711 = vsel %vm1830, %v2471, 0.0
  %v2712 = vadd.f32 %v2710, %v2711
  %v2713 = vsel %vm1830, %v2472, 0.0
  %v2714 = vadd.f32 %v2712, %v2713
  %v2715 = vsel %vm1830, %v2473, 0.0
  %v2716 = vadd.f32 %v2714, %v2715
  %v2717 = vsel %vm1830, %v2474, 0.0
  %v2718 = vadd.f32 %v2716, %v2717
  %v2719 = vsel %vm1830, %v2475, 0.0
  %v2720 = vadd.f32 %v2718, %v2719
  %v2721 = vsel %vm1830, %v2476, 0.0
  %v2722 = vadd.f32 %v2720, %v2721
  %v2723 = vsel %vm1830, %v2477, 0.0
  %v2724 = vadd.f32 %v2722, %v2723
  %v2725 = vsel %vm1830, %v2478, 0.0
  %v2726 = vadd.f32 %v2724, %v2725
  %v2727 = vsel %vm1830, %v2479, 0.0
  %v2728 = vadd.f32 %v2726, %v2727
  %v2729 = vsel %vm1830, %v2480, 0.0
  %v2730 = vadd.f32 %v2728, %v2729
  %v2731 = vsel %vm1830, %v2481, 0.0
  %v2732 = vadd.f32 %v2730, %v2731
  %v2733 = vsel %vm1830, %v2482, 0.0
  %v2734 = vadd.f32 %v2732, %v2733
  %v2735 = vsel %vm1830, %v2483, 0.0
  %v2736 = vadd.f32 %v2734, %v2735
  %v2737 = vsel %vm1830, %v2484, 0.0
  %v2738 = vadd.f32 %v2736, %v2737
  %v2739 = vsel %vm1830, %v2485, 0.0
  %v2740 = vadd.f32 %v2738, %v2739
  %v2741 = vsel %vm1830, %v2486, 0.0
  %v2742 = vadd.f32 %v2740, %v2741
  %v2743 = vsel %vm1830, %v2487, 0.0
  %v2744 = vadd.f32 %v2742, %v2743
  %v2745 = vsel %vm1830, %v2488, 0.0
  %v2746 = vadd.f32 %v2744, %v2745
  %v2747 = vsel %vm1830, %v2489, 0.0
  %v2748 = vadd.f32 %v2746, %v2747
  %v2749 = vsel %vm1830, %v2490, 0.0
  %v2750 = vadd.f32 %v2748, %v2749
  %v2751 = vsel %vm1830, %v2491, 0.0
  %v2752 = vadd.f32 %v2750, %v2751
  %v2753 = vsel %vm1830, %v2492, 0.0
  %v2754 = vadd.f32 %v2752, %v2753
  %v2755 = vsel %vm1830, %v2493, 0.0
  %v2756 = vadd.f32 %v2754, %v2755
  %v2757 = vsel %vm1830, %v2494, 0.0
  %v2758 = vadd.f32 %v2756, %v2757
  %v2759 = vsel %vm1830, %v2495, 0.0
  %v2760 = vadd.f32 %v2758, %v2759
  %v2761 = vsel %vm1830, %v2496, 0.0
  %v2762 = vadd.f32 %v2760, %v2761
  %v2763 = vsel %vm1830, %v2497, 0.0
  %v2764 = vadd.f32 %v2762, %v2763
  %v2765 = vsel %vm1830, %v2498, 0.0
  %v2766 = vadd.f32 %v2764, %v2765
  %v2767 = vsel %vm1830, %v2499, 0.0
  %v2768 = vadd.f32 %v2766, %v2767
  %v2769 = vsel %vm1830, %v2500, 0.0
  %v2770 = vadd.f32 %v2768, %v2769
  %v2771 = vsel %vm1830, %v2501, 0.0
  %v2772 = vadd.f32 %v2770, %v2771
  %v2773 = vsel %vm1830, %v2502, 0.0
  %v2774 = vadd.f32 %v2772, %v2773
  %v2775 = vsel %vm1830, %v2503, 0.0
  %v2776 = vadd.f32 %v2774, %v2775
  %v2777 = vsel %vm1830, %v2504, 0.0
  %v2778 = vadd.f32 %v2776, %v2777
  %v2779 = vsel %vm1830, %v2505, 0.0
  %v2780 = vadd.f32 %v2778, %v2779
  %v2781 = vsel %vm1830, %v2506, 0.0
  %v2782 = vadd.f32 %v2780, %v2781
  %v2783 = vsel %vm1830, %v2507, 0.0
  %v2784 = vadd.f32 %v2782, %v2783
  %v2785 = vsel %vm1830, %v2508, 0.0
  %v2786 = vadd.f32 %v2784, %v2785
  %v2787 = vsel %vm1830, %v2509, 0.0
  %v2788 = vadd.f32 %v2786, %v2787
  %v2789 = vsel %vm1830, %v2510, 0.0
  %v2790 = vadd.f32 %v2788, %v2789
  %v2791 = vsel %vm1830, %v2511, 0.0
  %v2792 = vadd.f32 %v2790, %v2791
  %v2793 = vsel %vm1830, %v2512, 0.0
  %v2794 = vadd.f32 %v2792, %v2793
  %v2795 = vsel %vm1830, %v2513, 0.0
  %v2796 = vadd.f32 %v2794, %v2795
  %v2797 = vsel %vm1830, %v2514, 0.0
  %v2798 = vadd.f32 %v2796, %v2797
  %v2799 = vsel %vm1830, %v2515, 0.0
  %v2800 = vadd.f32 %v2798, %v2799
  %v2801 = vsel %vm1830, %v2516, 0.0
  %v2802 = vadd.f32 %v2800, %v2801
  %v2803 = vsel %vm1830, %v2517, 0.0
  %v2804 = vadd.f32 %v2802, %v2803
  %v2805 = vsel %vm1830, %v2518, 0.0
  %v2806 = vadd.f32 %v2804, %v2805
  %v2807 = vsel %vm1830, %v2519, 0.0
  %v2808 = vadd.f32 %v2806, %v2807
  %v2809 = vsel %vm1830, %v2520, 0.0
  %v2810 = vadd.f32 %v2808, %v2809
  %v2811 = vsel %vm1830, %v2521, 0.0
  %v2812 = vadd.f32 %v2810, %v2811
  %v2813 = vsel %vm1830, %v2522, 0.0
  %v2814 = vadd.f32 %v2812, %v2813
  %v2815 = vsel %vm1830, %v2523, 0.0
  %v2816 = vadd.f32 %v2814, %v2815
  %v2817 = vsel %vm1830, %v2524, 0.0
  %v2818 = vadd.f32 %v2816, %v2817
  %v2819 = vsel %vm1830, %v2525, 0.0
  %v2820 = vadd.f32 %v2818, %v2819
  %v2821 = vsel %vm1830, %v2526, 0.0
  %v2822 = vadd.f32 %v2820, %v2821
  %v2823 = vsel %vm1830, %v2527, 0.0
  %v2824 = vadd.f32 %v2822, %v2823
  %v2825 = vsel %vm1830, %v2528, 0.0
  %v2826 = vadd.f32 %v2824, %v2825
  %v2827 = vsel %vm1830, %v2529, 0.0
  %v2828 = vadd.f32 %v2826, %v2827
  %v2829 = vsel %vm1830, %v2530, 0.0
  %v2830 = vadd.f32 %v2828, %v2829
  %v2831 = vsel %vm1830, %v2531, 0.0
  %v2832 = vadd.f32 %v2830, %v2831
  %v2833 = vsel %vm1830, %v2532, 0.0
  %v2834 = vadd.f32 %v2832, %v2833
  %v2835 = vsel %vm1830, %v2533, 0.0
  %v2836 = vadd.f32 %v2834, %v2835
  %v2837 = vsel %vm1830, %v2534, 0.0
  %v2838 = vadd.f32 %v2836, %v2837
  %v2839 = vsel %vm1830, %v2535, 0.0
  %v2840 = vadd.f32 %v2838, %v2839
  %v2841 = vsel %vm1830, %v2536, 0.0
  %v2842 = vadd.f32 %v2840, %v2841
  %v2843 = vsel %vm1830, %v2537, 0.0
  %v2844 = vadd.f32 %v2842, %v2843
  %v2845 = vsel %vm1830, %v2538, 0.0
  %v2846 = vadd.f32 %v2844, %v2845
  %v2847 = vsel %vm1830, %v2539, 0.0
  %v2848 = vadd.f32 %v2846, %v2847
  %v2849 = vsel %vm1830, %v2540, 0.0
  %v2850 = vadd.f32 %v2848, %v2849
  %v2851 = vsel %vm1830, %v2541, 0.0
  %v2852 = vadd.f32 %v2850, %v2851
  %v2853 = vsel %vm1830, %v2542, 0.0
  %v2854 = vadd.f32 %v2852, %v2853
  %v2855 = vsel %vm1830, %v2543, 0.0
  %v2856 = vadd.f32 %v2854, %v2855
  %v2857 = vsel %vm1830, %v2544, 0.0
  %v2858 = vadd.f32 %v2856, %v2857
  %v2859 = vsel %vm1830, %v2545, 0.0
  %v2860 = vadd.f32 %v2858, %v2859
  %v2861 = vsel %vm1830, %v2546, 0.0
  %v2862 = vadd.f32 %v2860, %v2861
  %v2863 = vsel %vm1830, %v2547, 0.0
  %v2864 = vadd.f32 %v2862, %v2863
  %v2865 = vsel %vm1830, %v2548, 0.0
  %v2866 = vadd.f32 %v2864, %v2865
  %v2867 = vsel %vm1830, %v2549, 0.0
  %v2868 = vadd.f32 %v2866, %v2867
  %v2869 = vsel %vm1830, %v2550, 0.0
  %v2870 = vadd.f32 %v2868, %v2869
  %v2871 = vsel %vm1830, %v2551, 0.0
  %v2872 = vadd.f32 %v2870, %v2871
  %v2873 = vsel %vm1830, %v2552, 0.0
  %v2874 = vadd.f32 %v2872, %v2873
  %v2875 = vsel %vm1830, %v2553, 0.0
  %v2876 = vadd.f32 %v2874, %v2875
  %v2877 = vsel %vm1830, %v2554, 0.0
  %v2878 = vadd.f32 %v2876, %v2877
  %v2879 = vsel %vm1830, %v2555, 0.0
  %v2880 = vadd.f32 %v2878, %v2879
  %v2881 = vsel %vm1830, %v2556, 0.0
  %v2882 = vadd.f32 %v2880, %v2881
  %v2883 = vsel %vm1830, %v2557, 0.0
  %v2884 = vadd.f32 %v2882, %v2883
  %v2885 = vsel %vm1830, %v2558, 0.0
  %v2886 = vadd.f32 %v2884, %v2885
  %v2887 = vsel %vm1830, %v2559, 0.0
  %v2888 = vadd.f32 %v2886, %v2887
  %v2889 = vsel %vm1830, %v2560, 0.0
  %v2890 = vadd.f32 %v2888, %v2889
  %v2891 = vsel %vm1830, %v2561, 0.0
  %v2892 = vadd.f32 %v2890, %v2891
  %v2893 = vsel %vm1830, %v2562, 0.0
  %v2894 = vadd.f32 %v2892, %v2893
  %v2895 = vsel %vm1830, %v2563, 0.0
  %v2896 = vadd.f32 %v2894, %v2895
  %v2897 = vsel %vm1830, %v2564, 0.0
  %v2898 = vadd.f32 %v2896, %v2897
  %v2899 = vsel %vm1830, %v2565, 0.0
  %v2900 = vadd.f32 %v2898, %v2899
  %v2901 = vsel %vm1830, %v2566, 0.0
  %v2902 = vadd.f32 %v2900, %v2901
  %v2903 = vsel %vm1830, %v2567, 0.0
  %v2904 = vadd.f32 %v2902, %v2903
  %v2905 = vsel %vm1830, %v2568, 0.0
  %v2906 = vadd.f32 %v2904, %v2905
  %v2907 = vsel %vm1830, %v2569, 0.0
  %v2908 = vadd.f32 %v2906, %v2907
  %v2909 = vsel %vm1830, %v2570, 0.0
  %v2910 = vadd.f32 %v2908, %v2909
  %v2911 = vsel %vm1830, %v2571, 0.0
  %v2912 = vadd.f32 %v2910, %v2911
  %v2913 = vsel %vm1830, %v2572, 0.0
  %v2914 = vadd.f32 %v2912, %v2913
  %v2915 = vsel %vm1830, %v2573, 0.0
  %v2916 = vadd.f32 %v2914, %v2915
  %v2917 = vsel %vm1830, %v2574, 0.0
  %v2918 = vadd.f32 %v2916, %v2917
  %v2919 = vsel %vm1830, %v2575, 0.0
  %v2920 = vadd.f32 %v2918, %v2919
  %v2921 = vsel %vm1830, %v2576, 0.0
  %v2922 = vadd.f32 %v2920, %v2921
  %v2923 = vsel %vm1830, %v2577, 0.0
  %v2924 = vadd.f32 %v2922, %v2923
  %v2925 = vsel %vm1830, %v2578, 0.0
  %v2926 = vadd.f32 %v2924, %v2925
  %v2927 = vsel %vm1830, %v2579, 0.0
  %v2928 = vadd.f32 %v2926, %v2927
  %v2929 = vsel %vm1830, %v2580, 0.0
  %v2930 = vadd.f32 %v2928, %v2929
  %v2931 = vsel %vm1830, %v2581, 0.0
  %v2932 = vadd.f32 %v2930, %v2931
  %v2933 = vsel %vm1830, %v2582, 0.0
  %v2934 = vadd.f32 %v2932, %v2933
  %v2935 = vsel %vm1830, %v2583, 0.0
  %v2936 = vadd.f32 %v2934, %v2935
  %v2937 = vsel %vm1830, %v2584, 0.0
  %v2938 = vadd.f32 %v2936, %v2937
  %v2939 = vsel %vm1830, %v2585, 0.0
  %v2940 = vadd.f32 %v2938, %v2939
  %v2941 = vsel %vm1830, %v2586, 0.0
  %v2942 = vadd.f32 %v2940, %v2941
  %v2943 = vsel %vm1830, %v2587, 0.0
  %v2944 = vadd.f32 %v2942, %v2943
  %v2945 = vsel %vm1830, %v2588, 0.0
  %v2946 = vadd.f32 %v2944, %v2945
  %v2947 = vsel %vm1830, %v2589, 0.0
  %v2948 = vadd.f32 %v2946, %v2947
  %v2949 = vsel %vm1830, %v2590, 0.0
  %v2950 = vadd.f32 %v2948, %v2949
  %v2951 = vsel %vm1830, %v2591, 0.0
  %v2952 = vadd.f32 %v2950, %v2951
  %v2953 = vsel %vm1830, %v2592, 0.0
  %v2954 = vadd.f32 %v2952, %v2953
  %v2955 = vsel %vm1830, %v2593, 0.0
  %v2956 = vadd.f32 %v2954, %v2955
  %v2957 = vsel %vm1830, %v2594, 0.0
  %v2958 = vadd.f32 %v2956, %v2957
  %v2959 = vsel %vm1830, %v2595, 0.0
  %v2960 = vadd.f32 %v2958, %v2959
  %v2961 = vsel %vm1830, %v2596, 0.0
  %v2962 = vadd.f32 %v2960, %v2961
  %v2963 = vsel %vm1830, %v2597, 0.0
  %v2964 = vadd.f32 %v2962, %v2963
  %v2965 = vsel %vm1830, %v2598, 0.0
  %v2966 = vadd.f32 %v2964, %v2965
  %v2967 = vsel %vm1830, %v2599, 0.0
  %v2968 = vadd.f32 %v2966, %v2967
  %v2969 = vsel %vm1830, %v2600, 0.0
  %v2970 = vadd.f32 %v2968, %v2969
  %v2971 = vsel %vm1830, %v2601, 0.0
  %v2972 = vadd.f32 %v2970, %v2971
  %v2973 = vsel %vm1830, %v2602, 0.0
  %v2974 = vadd.f32 %v2972, %v2973
  %v2975 = vsel %vm1830, %v2603, 0.0
  %v2976 = vadd.f32 %v2974, %v2975
  %v2977 = vsel %vm1830, %v2604, 0.0
  %v2978 = vadd.f32 %v2976, %v2977
  %v2979 = vsel %vm1830, %v2605, 0.0
  %v2980 = vadd.f32 %v2978, %v2979
  %v2981 = vsel %vm1830, %v2606, 0.0
  %v2982 = vadd.f32 %v2980, %v2981
  %v2983 = vsel %vm1830, %v2607, 0.0
  %v2984 = vadd.f32 %v2982, %v2983
  %v2985 = vsel %vm1830, %v2608, 0.0
  %v2986 = vadd.f32 %v2984, %v2985
  %v2987 = vsel %vm1830, %v2609, 0.0
  %v2988 = vadd.f32 %v2986, %v2987
  %v2989 = vsel %vm1830, %v2610, 0.0
  %v2990 = vadd.f32 %v2988, %v2989
  %v2991 = vsel %vm1830, %v2611, 0.0
  %v2992 = vadd.f32 %v2990, %v2991
  %v2993 = vsel %vm1830, %v2612, 0.0
  %v2994 = vadd.f32 %v2992, %v2993
  %v2995 = vsel %vm1830, %v2613, 0.0
  %v2996 = vadd.f32 %v2994, %v2995
  %v2997 = vsel %vm1830, %v2614, 0.0
  %v2998 = vadd.f32 %v2996, %v2997
  %v2999 = vsel %vm1830, %v2615, 0.0
  %v3000 = vadd.f32 %v2998, %v2999
  %v3001 = vsel %vm1830, %v2616, 0.0
  %v3002 = vadd.f32 %v3000, %v3001
  %v3003 = vsel %vm1830, %v2617, 0.0
  %v3004 = vadd.f32 %v3002, %v3003
  %v3005 = vsel %vm1830, %v2618, 0.0
  %v3006 = vadd.f32 %v3004, %v3005
  %v3007 = vsel %vm1830, %v2619, 0.0
  %v3008 = vadd.f32 %v3006, %v3007
  %v3009 = vsel %vm1830, %v2620, 0.0
  %v3010 = vadd.f32 %v3008, %v3009
  %v3011 = vsel %vm1830, %v2621, 0.0
  %v3012 = vadd.f32 %v3010, %v3011
  %v3013 = vrot.slane %v3012, 4
  %v3014 = vadd.f32 %v3012, %v3013
  %v3015 = vrot.slane %v3014, 2
  %v3016 = vadd.f32 %v3014, %v3015
  %v3017 = vrot.slane %v3016, 1
  %v3018 = vadd.f32 %v3016, %v3017
  %v3019 = vmul.f32 %v3018, %v2228
  %v3020 = vadd.f32 %v3019, 1e-05
  %v3021 = vrsqrt.pop %v3020
  %v3022 = vmul.f32 %v2230, %v3021
  %v3023 = vmul.f32 %v2231, %v3021
  %v3024 = vmul.f32 %v2232, %v3021
  %v3025 = vmul.f32 %v2233, %v3021
  %v3026 = vmul.f32 %v2234, %v3021
  %v3027 = vmul.f32 %v2235, %v3021
  %v3028 = vmul.f32 %v2236, %v3021
  %v3029 = vmul.f32 %v2237, %v3021
  %v3030 = vmul.f32 %v2238, %v3021
  %v3031 = vmul.f32 %v2239, %v3021
  %v3032 = vmul.f32 %v2240, %v3021
  %v3033 = vmul.f32 %v2241, %v3021
  %v3034 = vmul.f32 %v2242, %v3021
  %v3035 = vmul.f32 %v2243, %v3021
  %v3036 = vmul.f32 %v2244, %v3021
  %v3037 = vmul.f32 %v2245, %v3021
  %v3038 = vmul.f32 %v2246, %v3021
  %v3039 = vmul.f32 %v2247, %v3021
  %v3040 = vmul.f32 %v2248, %v3021
  %v3041 = vmul.f32 %v2249, %v3021
  %v3042 = vmul.f32 %v2250, %v3021
  %v3043 = vmul.f32 %v2251, %v3021
  %v3044 = vmul.f32 %v2252, %v3021
  %v3045 = vmul.f32 %v2253, %v3021
  %v3046 = vmul.f32 %v2254, %v3021
  %v3047 = vmul.f32 %v2255, %v3021
  %v3048 = vmul.f32 %v2256, %v3021
  %v3049 = vmul.f32 %v2257, %v3021
  %v3050 = vmul.f32 %v2258, %v3021
  %v3051 = vmul.f32 %v2259, %v3021
  %v3052 = vmul.f32 %v2260, %v3021
  %v3053 = vmul.f32 %v2261, %v3021
  %v3054 = vmul.f32 %v2262, %v3021
  %v3055 = vmul.f32 %v2263, %v3021
  %v3056 = vmul.f32 %v2264, %v3021
  %v3057 = vmul.f32 %v2265, %v3021
  %v3058 = vmul.f32 %v2266, %v3021
  %v3059 = vmul.f32 %v2267, %v3021
  %v3060 = vmul.f32 %v2268, %v3021
  %v3061 = vmul.f32 %v2269, %v3021
  %v3062 = vmul.f32 %v2270, %v3021
  %v3063 = vmul.f32 %v2271, %v3021
  %v3064 = vmul.f32 %v2272, %v3021
  %v3065 = vmul.f32 %v2273, %v3021
  %v3066 = vmul.f32 %v2274, %v3021
  %v3067 = vmul.f32 %v2275, %v3021
  %v3068 = vmul.f32 %v2276, %v3021
  %v3069 = vmul.f32 %v2277, %v3021
  %v3070 = vmul.f32 %v2278, %v3021
  %v3071 = vmul.f32 %v2279, %v3021
  %v3072 = vmul.f32 %v2280, %v3021
  %v3073 = vmul.f32 %v2281, %v3021
  %v3074 = vmul.f32 %v2282, %v3021
  %v3075 = vmul.f32 %v2283, %v3021
  %v3076 = vmul.f32 %v2284, %v3021
  %v3077 = vmul.f32 %v2285, %v3021
  %v3078 = vmul.f32 %v2286, %v3021
  %v3079 = vmul.f32 %v2287, %v3021
  %v3080 = vmul.f32 %v2288, %v3021
  %v3081 = vmul.f32 %v2289, %v3021
  %v3082 = vmul.f32 %v2290, %v3021
  %v3083 = vmul.f32 %v2291, %v3021
  %v3084 = vmul.f32 %v2292, %v3021
  %v3085 = vmul.f32 %v2293, %v3021
  %v3086 = vmul.f32 %v2294, %v3021
  %v3087 = vmul.f32 %v2295, %v3021
  %v3088 = vmul.f32 %v2296, %v3021
  %v3089 = vmul.f32 %v2297, %v3021
  %v3090 = vmul.f32 %v2298, %v3021
  %v3091 = vmul.f32 %v2299, %v3021
  %v3092 = vmul.f32 %v2300, %v3021
  %v3093 = vmul.f32 %v2301, %v3021
  %v3094 = vmul.f32 %v2302, %v3021
  %v3095 = vmul.f32 %v2303, %v3021
  %v3096 = vmul.f32 %v2304, %v3021
  %v3097 = vmul.f32 %v2305, %v3021
  %v3098 = vmul.f32 %v2306, %v3021
  %v3099 = vmul.f32 %v2307, %v3021
  %v3100 = vmul.f32 %v2308, %v3021
  %v3101 = vmul.f32 %v2309, %v3021
  %v3102 = vmul.f32 %v2310, %v3021
  %v3103 = vmul.f32 %v2311, %v3021
  %v3104 = vmul.f32 %v2312, %v3021
  %v3105 = vmul.f32 %v2313, %v3021
  %v3106 = vmul.f32 %v2314, %v3021
  %v3107 = vmul.f32 %v2315, %v3021
  %v3108 = vmul.f32 %v2316, %v3021
  %v3109 = vmul.f32 %v2317, %v3021
  %v3110 = vmul.f32 %v2318, %v3021
  %v3111 = vmul.f32 %v2319, %v3021
  %v3112 = vmul.f32 %v2320, %v3021
  %v3113 = vmul.f32 %v2321, %v3021
  %v3114 = vmul.f32 %v2322, %v3021
  %v3115 = vmul.f32 %v2323, %v3021
  %v3116 = vmul.f32 %v2324, %v3021
  %v3117 = vmul.f32 %v2325, %v3021
  %v3118 = vmul.f32 %v2326, %v3021
  %v3119 = vmul.f32 %v2327, %v3021
  %v3120 = vmul.f32 %v2328, %v3021
  %v3121 = vmul.f32 %v2329, %v3021
  %v3122 = vmul.f32 %v2330, %v3021
  %v3123 = vmul.f32 %v2331, %v3021
  %v3124 = vmul.f32 %v2332, %v3021
  %v3125 = vmul.f32 %v2333, %v3021
  %v3126 = vmul.f32 %v2334, %v3021
  %v3127 = vmul.f32 %v2335, %v3021
  %v3128 = vmul.f32 %v2336, %v3021
  %v3129 = vmul.f32 %v2337, %v3021
  %v3130 = vmul.f32 %v2338, %v3021
  %v3131 = vmul.f32 %v2339, %v3021
  %v3132 = vmul.f32 %v2340, %v3021
  %v3133 = vmul.f32 %v2341, %v3021
  %v3134 = vmul.f32 %v2342, %v3021
  %v3135 = vmul.f32 %v2343, %v3021
  %v3136 = vmul.f32 %v2344, %v3021
  %v3137 = vmul.f32 %v2345, %v3021
  %v3138 = vmul.f32 %v2346, %v3021
  %v3139 = vmul.f32 %v2347, %v3021
  %v3140 = vmul.f32 %v2348, %v3021
  %v3141 = vmul.f32 %v2349, %v3021
  %v3142 = vmul.f32 %v2350, %v3021
  %v3143 = vmul.f32 %v2351, %v3021
  %v3144 = vmul.f32 %v2352, %v3021
  %v3145 = vmul.f32 %v2353, %v3021
  %v3146 = vmul.f32 %v2354, %v3021
  %v3147 = vmul.f32 %v2355, %v3021
  %v3148 = vmul.f32 %v2356, %v3021
  %v3149 = vmul.f32 %v2357, %v3021
  %v3150 = vmul.f32 %v2358, %v3021
  %v3151 = vmul.f32 %v2359, %v3021
  %v3152 = vmul.f32 %v2360, %v3021
  %v3153 = vmul.f32 %v2361, %v3021
  %v3154 = vmul.f32 %v2362, %v3021
  %v3155 = vmul.f32 %v2363, %v3021
  %v3156 = vmul.f32 %v2364, %v3021
  %v3157 = vmul.f32 %v2365, %v3021
  %v3158 = vmul.f32 %v2366, %v3021
  %v3159 = vmul.f32 %v2367, %v3021
  %v3160 = vmul.f32 %v2368, %v3021
  %v3161 = vmul.f32 %v2369, %v3021
  %v3162 = vmul.f32 %v2370, %v3021
  %v3163 = vmul.f32 %v2371, %v3021
  %v3164 = vmul.f32 %v2372, %v3021
  %v3165 = vmul.f32 %v2373, %v3021
  %v3166 = vmul.f32 %v2374, %v3021
  %v3167 = vmul.f32 %v2375, %v3021
  %v3168 = vmul.f32 %v2376, %v3021
  %v3169 = vmul.f32 %v2377, %v3021
  %v3170 = vmul.f32 %v2378, %v3021
  %v3171 = vmul.f32 %v2379, %v3021
  %v3172 = vmul.f32 %v2380, %v3021
  %v3173 = vmul.f32 %v2381, %v3021
  %v3174 = vmul.f32 %v2382, %v3021
  %v3175 = vmul.f32 %v2383, %v3021
  %v3176 = vmul.f32 %v2384, %v3021
  %v3177 = vmul.f32 %v2385, %v3021
  %v3178 = vmul.f32 %v2386, %v3021
  %v3179 = vmul.f32 %v2387, %v3021
  %v3180 = vmul.f32 %v2388, %v3021
  %v3181 = vmul.f32 %v2389, %v3021
  %v3182 = vmul.f32 %v2390, %v3021
  %v3183 = vmul.f32 %v2391, %v3021
  %v3184 = vmul.f32 %v2392, %v3021
  %v3185 = vmul.f32 %v2393, %v3021
  %v3186 = vmul.f32 %v2394, %v3021
  %v3187 = vmul.f32 %v2395, %v3021
  %v3188 = vmul.f32 %v2396, %v3021
  %v3189 = vmul.f32 %v2397, %v3021
  %v3190 = vmul.f32 %v2398, %v3021
  %v3191 = vmul.f32 %v2399, %v3021
  %v3192 = vmul.f32 %v2400, %v3021
  %v3193 = vmul.f32 %v2401, %v3021
  %v3194 = vmul.f32 %v2402, %v3021
  %v3195 = vmul.f32 %v2403, %v3021
  %v3196 = vmul.f32 %v2404, %v3021
  %v3197 = vmul.f32 %v2405, %v3021
  %v3198 = vmul.f32 %v2406, %v3021
  %v3199 = vmul.f32 %v2407, %v3021
  %v3200 = vmul.f32 %v2408, %v3021
  %v3201 = vmul.f32 %v2409, %v3021
  %v3202 = vmul.f32 %v2410, %v3021
  %v3203 = vmul.f32 %v2411, %v3021
  %v3204 = vmul.f32 %v2412, %v3021
  %v3205 = vmul.f32 %v2413, %v3021
  %v3206 = vmul.f32 %v2414, %v3021
  %v3207 = vmul.f32 %v2415, %v3021
  %v3208 = vmul.f32 %v2416, %v3021
  %v3209 = vmul.f32 %v2417, %v3021
  %v3210 = vmul.f32 %v2418, %v3021
  %v3211 = vmul.f32 %v2419, %v3021
  %v3212 = vmul.f32 %v2420, %v3021
  %v3213 = vmul.f32 %v2421, %v3021
  %v3214 = vmul.f32 %v2422, %v3021
  %v3215 = vmul.f32 %v2423, %v3021
  %v3216 = vmul.f32 %v2424, %v3021
  %v3217 = vmul.f32 %v2425, %v3021
  %v3218 = vld [vmem:[%s2] sm:$0x1]
  %v3220 = vlaneseq
  %v3221 = vshrl.u32 %v3220, 7
  %v3222 = vsub.s32 0, %v3221
  %v3223 = vrot.slane %v3218, %v3222
  %v3225 = vmul.f32 %v3022, %v3223
  %v3226 = vmul.f32 %v3023, %v3223
  %v3227 = vmul.f32 %v3024, %v3223
  %v3228 = vmul.f32 %v3025, %v3223
  %v3229 = vmul.f32 %v3026, %v3223
  %v3230 = vmul.f32 %v3027, %v3223
  %v3231 = vmul.f32 %v3028, %v3223
  %v3232 = vmul.f32 %v3029, %v3223
  %v3233 = vmul.f32 %v3030, %v3223
  %v3234 = vmul.f32 %v3031, %v3223
  %v3235 = vmul.f32 %v3032, %v3223
  %v3236 = vmul.f32 %v3033, %v3223
  %v3237 = vmul.f32 %v3034, %v3223
  %v3238 = vmul.f32 %v3035, %v3223
  %v3239 = vmul.f32 %v3036, %v3223
  %v3240 = vmul.f32 %v3037, %v3223
  %v3241 = vmul.f32 %v3038, %v3223
  %v3242 = vmul.f32 %v3039, %v3223
  %v3243 = vmul.f32 %v3040, %v3223
  %v3244 = vmul.f32 %v3041, %v3223
  %v3245 = vmul.f32 %v3042, %v3223
  %v3246 = vmul.f32 %v3043, %v3223
  %v3247 = vmul.f32 %v3044, %v3223
  %v3248 = vmul.f32 %v3045, %v3223
  %v3249 = vmul.f32 %v3046, %v3223
  %v3250 = vmul.f32 %v3047, %v3223
  %v3251 = vmul.f32 %v3048, %v3223
  %v3252 = vmul.f32 %v3049, %v3223
  %v3253 = vmul.f32 %v3050, %v3223
  %v3254 = vmul.f32 %v3051, %v3223
  %v3255 = vmul.f32 %v3052, %v3223
  %v3256 = vmul.f32 %v3053, %v3223
  %v3257 = vmul.f32 %v3054, %v3223
  %v3258 = vmul.f32 %v3055, %v3223
  %v3259 = vmul.f32 %v3056, %v3223
  %v3260 = vmul.f32 %v3057, %v3223
  %v3261 = vmul.f32 %v3058, %v3223
  %v3262 = vmul.f32 %v3059, %v3223
  %v3263 = vmul.f32 %v3060, %v3223
  %v3264 = vmul.f32 %v3061, %v3223
  %v3265 = vmul.f32 %v3062, %v3223
  %v3266 = vmul.f32 %v3063, %v3223
  %v3267 = vmul.f32 %v3064, %v3223
  %v3268 = vmul.f32 %v3065, %v3223
  %v3269 = vmul.f32 %v3066, %v3223
  %v3270 = vmul.f32 %v3067, %v3223
  %v3271 = vmul.f32 %v3068, %v3223
  %v3272 = vmul.f32 %v3069, %v3223
  %v3273 = vmul.f32 %v3070, %v3223
  %v3274 = vmul.f32 %v3071, %v3223
  %v3275 = vmul.f32 %v3072, %v3223
  %v3276 = vmul.f32 %v3073, %v3223
  %v3277 = vmul.f32 %v3074, %v3223
  %v3278 = vmul.f32 %v3075, %v3223
  %v3279 = vmul.f32 %v3076, %v3223
  %v3280 = vmul.f32 %v3077, %v3223
  %v3281 = vmul.f32 %v3078, %v3223
  %v3282 = vmul.f32 %v3079, %v3223
  %v3283 = vmul.f32 %v3080, %v3223
  %v3284 = vmul.f32 %v3081, %v3223
  %v3285 = vmul.f32 %v3082, %v3223
  %v3286 = vmul.f32 %v3083, %v3223
  %v3287 = vmul.f32 %v3084, %v3223
  %v3288 = vmul.f32 %v3085, %v3223
  %v3289 = vmul.f32 %v3086, %v3223
  %v3290 = vmul.f32 %v3087, %v3223
  %v3291 = vmul.f32 %v3088, %v3223
  %v3292 = vmul.f32 %v3089, %v3223
  %v3293 = vmul.f32 %v3090, %v3223
  %v3294 = vmul.f32 %v3091, %v3223
  %v3295 = vmul.f32 %v3092, %v3223
  %v3296 = vmul.f32 %v3093, %v3223
  %v3297 = vmul.f32 %v3094, %v3223
  %v3298 = vmul.f32 %v3095, %v3223
  %v3299 = vmul.f32 %v3096, %v3223
  %v3300 = vmul.f32 %v3097, %v3223
  %v3301 = vmul.f32 %v3098, %v3223
  %v3302 = vmul.f32 %v3099, %v3223
  %v3303 = vmul.f32 %v3100, %v3223
  %v3304 = vmul.f32 %v3101, %v3223
  %v3305 = vmul.f32 %v3102, %v3223
  %v3306 = vmul.f32 %v3103, %v3223
  %v3307 = vmul.f32 %v3104, %v3223
  %v3308 = vmul.f32 %v3105, %v3223
  %v3309 = vmul.f32 %v3106, %v3223
  %v3310 = vmul.f32 %v3107, %v3223
  %v3311 = vmul.f32 %v3108, %v3223
  %v3312 = vmul.f32 %v3109, %v3223
  %v3313 = vmul.f32 %v3110, %v3223
  %v3314 = vmul.f32 %v3111, %v3223
  %v3315 = vmul.f32 %v3112, %v3223
  %v3316 = vmul.f32 %v3113, %v3223
  %v3317 = vmul.f32 %v3114, %v3223
  %v3318 = vmul.f32 %v3115, %v3223
  %v3319 = vmul.f32 %v3116, %v3223
  %v3320 = vmul.f32 %v3117, %v3223
  %v3321 = vmul.f32 %v3118, %v3223
  %v3322 = vmul.f32 %v3119, %v3223
  %v3323 = vmul.f32 %v3120, %v3223
  %v3324 = vmul.f32 %v3121, %v3223
  %v3325 = vmul.f32 %v3122, %v3223
  %v3326 = vmul.f32 %v3123, %v3223
  %v3327 = vmul.f32 %v3124, %v3223
  %v3328 = vmul.f32 %v3125, %v3223
  %v3329 = vmul.f32 %v3126, %v3223
  %v3330 = vmul.f32 %v3127, %v3223
  %v3331 = vmul.f32 %v3128, %v3223
  %v3332 = vmul.f32 %v3129, %v3223
  %v3333 = vmul.f32 %v3130, %v3223
  %v3334 = vmul.f32 %v3131, %v3223
  %v3335 = vmul.f32 %v3132, %v3223
  %v3336 = vmul.f32 %v3133, %v3223
  %v3337 = vmul.f32 %v3134, %v3223
  %v3338 = vmul.f32 %v3135, %v3223
  %v3339 = vmul.f32 %v3136, %v3223
  %v3340 = vmul.f32 %v3137, %v3223
  %v3341 = vmul.f32 %v3138, %v3223
  %v3342 = vmul.f32 %v3139, %v3223
  %v3343 = vmul.f32 %v3140, %v3223
  %v3344 = vmul.f32 %v3141, %v3223
  %v3345 = vmul.f32 %v3142, %v3223
  %v3346 = vmul.f32 %v3143, %v3223
  %v3347 = vmul.f32 %v3144, %v3223
  %v3348 = vmul.f32 %v3145, %v3223
  %v3349 = vmul.f32 %v3146, %v3223
  %v3350 = vmul.f32 %v3147, %v3223
  %v3351 = vmul.f32 %v3148, %v3223
  %v3352 = vmul.f32 %v3149, %v3223
  %v3353 = vmul.f32 %v3150, %v3223
  %v3354 = vmul.f32 %v3151, %v3223
  %v3355 = vmul.f32 %v3152, %v3223
  %v3356 = vmul.f32 %v3153, %v3223
  %v3357 = vmul.f32 %v3154, %v3223
  %v3358 = vmul.f32 %v3155, %v3223
  %v3359 = vmul.f32 %v3156, %v3223
  %v3360 = vmul.f32 %v3157, %v3223
  %v3361 = vmul.f32 %v3158, %v3223
  %v3362 = vmul.f32 %v3159, %v3223
  %v3363 = vmul.f32 %v3160, %v3223
  %v3364 = vmul.f32 %v3161, %v3223
  %v3365 = vmul.f32 %v3162, %v3223
  %v3366 = vmul.f32 %v3163, %v3223
  %v3367 = vmul.f32 %v3164, %v3223
  %v3368 = vmul.f32 %v3165, %v3223
  %v3369 = vmul.f32 %v3166, %v3223
  %v3370 = vmul.f32 %v3167, %v3223
  %v3371 = vmul.f32 %v3168, %v3223
  %v3372 = vmul.f32 %v3169, %v3223
  %v3373 = vmul.f32 %v3170, %v3223
  %v3374 = vmul.f32 %v3171, %v3223
  %v3375 = vmul.f32 %v3172, %v3223
  %v3376 = vmul.f32 %v3173, %v3223
  %v3377 = vmul.f32 %v3174, %v3223
  %v3378 = vmul.f32 %v3175, %v3223
  %v3379 = vmul.f32 %v3176, %v3223
  %v3380 = vmul.f32 %v3177, %v3223
  %v3381 = vmul.f32 %v3178, %v3223
  %v3382 = vmul.f32 %v3179, %v3223
  %v3383 = vmul.f32 %v3180, %v3223
  %v3384 = vmul.f32 %v3181, %v3223
  %v3385 = vmul.f32 %v3182, %v3223
  %v3386 = vmul.f32 %v3183, %v3223
  %v3387 = vmul.f32 %v3184, %v3223
  %v3388 = vmul.f32 %v3185, %v3223
  %v3389 = vmul.f32 %v3186, %v3223
  %v3390 = vmul.f32 %v3187, %v3223
  %v3391 = vmul.f32 %v3188, %v3223
  %v3392 = vmul.f32 %v3189, %v3223
  %v3393 = vmul.f32 %v3190, %v3223
  %v3394 = vmul.f32 %v3191, %v3223
  %v3395 = vmul.f32 %v3192, %v3223
  %v3396 = vmul.f32 %v3193, %v3223
  %v3397 = vmul.f32 %v3194, %v3223
  %v3398 = vmul.f32 %v3195, %v3223
  %v3399 = vmul.f32 %v3196, %v3223
  %v3400 = vmul.f32 %v3197, %v3223
  %v3401 = vmul.f32 %v3198, %v3223
  %v3402 = vmul.f32 %v3199, %v3223
  %v3403 = vmul.f32 %v3200, %v3223
  %v3404 = vmul.f32 %v3201, %v3223
  %v3405 = vmul.f32 %v3202, %v3223
  %v3406 = vmul.f32 %v3203, %v3223
  %v3407 = vmul.f32 %v3204, %v3223
  %v3408 = vmul.f32 %v3205, %v3223
  %v3409 = vmul.f32 %v3206, %v3223
  %v3410 = vmul.f32 %v3207, %v3223
  %v3411 = vmul.f32 %v3208, %v3223
  %v3412 = vmul.f32 %v3209, %v3223
  %v3413 = vmul.f32 %v3210, %v3223
  %v3414 = vmul.f32 %v3211, %v3223
  %v3415 = vmul.f32 %v3212, %v3223
  %v3416 = vmul.f32 %v3213, %v3223
  %v3417 = vmul.f32 %v3214, %v3223
  %v3418 = vmul.f32 %v3215, %v3223
  %v3419 = vmul.f32 %v3216, %v3223
  %v3420 = vmul.f32 %v3217, %v3223
  %v3421 = vld [vmem:[%s3] sm:$0x1]
  %v3423 = vlaneseq
  %v3424 = vshrl.u32 %v3423, 7
  %v3425 = vsub.s32 0, %v3424
  %v3426 = vrot.slane %v3421, %v3425
  %v3428 = vadd.f32 %v3225, %v3426
  %v3429 = vadd.f32 %v3226, %v3426
  %v3430 = vadd.f32 %v3227, %v3426
  %v3431 = vadd.f32 %v3228, %v3426
  %v3432 = vadd.f32 %v3229, %v3426
  %v3433 = vadd.f32 %v3230, %v3426
  %v3434 = vadd.f32 %v3231, %v3426
  %v3435 = vadd.f32 %v3232, %v3426
  %v3436 = vadd.f32 %v3233, %v3426
  %v3437 = vadd.f32 %v3234, %v3426
  %v3438 = vadd.f32 %v3235, %v3426
  %v3439 = vadd.f32 %v3236, %v3426
  %v3440 = vadd.f32 %v3237, %v3426
  %v3441 = vadd.f32 %v3238, %v3426
  %v3442 = vadd.f32 %v3239, %v3426
  %v3443 = vadd.f32 %v3240, %v3426
  %v3444 = vadd.f32 %v3241, %v3426
  %v3445 = vadd.f32 %v3242, %v3426
  %v3446 = vadd.f32 %v3243, %v3426
  %v3447 = vadd.f32 %v3244, %v3426
  %v3448 = vadd.f32 %v3245, %v3426
  %v3449 = vadd.f32 %v3246, %v3426
  %v3450 = vadd.f32 %v3247, %v3426
  %v3451 = vadd.f32 %v3248, %v3426
  %v3452 = vadd.f32 %v3249, %v3426
  %v3453 = vadd.f32 %v3250, %v3426
  %v3454 = vadd.f32 %v3251, %v3426
  %v3455 = vadd.f32 %v3252, %v3426
  %v3456 = vadd.f32 %v3253, %v3426
  %v3457 = vadd.f32 %v3254, %v3426
  %v3458 = vadd.f32 %v3255, %v3426
  %v3459 = vadd.f32 %v3256, %v3426
  %v3460 = vadd.f32 %v3257, %v3426
  %v3461 = vadd.f32 %v3258, %v3426
  %v3462 = vadd.f32 %v3259, %v3426
  %v3463 = vadd.f32 %v3260, %v3426
  %v3464 = vadd.f32 %v3261, %v3426
  %v3465 = vadd.f32 %v3262, %v3426
  %v3466 = vadd.f32 %v3263, %v3426
  %v3467 = vadd.f32 %v3264, %v3426
  %v3468 = vadd.f32 %v3265, %v3426
  %v3469 = vadd.f32 %v3266, %v3426
  %v3470 = vadd.f32 %v3267, %v3426
  %v3471 = vadd.f32 %v3268, %v3426
  %v3472 = vadd.f32 %v3269, %v3426
  %v3473 = vadd.f32 %v3270, %v3426
  %v3474 = vadd.f32 %v3271, %v3426
  %v3475 = vadd.f32 %v3272, %v3426
  %v3476 = vadd.f32 %v3273, %v3426
  %v3477 = vadd.f32 %v3274, %v3426
  %v3478 = vadd.f32 %v3275, %v3426
  %v3479 = vadd.f32 %v3276, %v3426
  %v3480 = vadd.f32 %v3277, %v3426
  %v3481 = vadd.f32 %v3278, %v3426
  %v3482 = vadd.f32 %v3279, %v3426
  %v3483 = vadd.f32 %v3280, %v3426
  %v3484 = vadd.f32 %v3281, %v3426
  %v3485 = vadd.f32 %v3282, %v3426
  %v3486 = vadd.f32 %v3283, %v3426
  %v3487 = vadd.f32 %v3284, %v3426
  %v3488 = vadd.f32 %v3285, %v3426
  %v3489 = vadd.f32 %v3286, %v3426
  %v3490 = vadd.f32 %v3287, %v3426
  %v3491 = vadd.f32 %v3288, %v3426
  %v3492 = vadd.f32 %v3289, %v3426
  %v3493 = vadd.f32 %v3290, %v3426
  %v3494 = vadd.f32 %v3291, %v3426
  %v3495 = vadd.f32 %v3292, %v3426
  %v3496 = vadd.f32 %v3293, %v3426
  %v3497 = vadd.f32 %v3294, %v3426
  %v3498 = vadd.f32 %v3295, %v3426
  %v3499 = vadd.f32 %v3296, %v3426
  %v3500 = vadd.f32 %v3297, %v3426
  %v3501 = vadd.f32 %v3298, %v3426
  %v3502 = vadd.f32 %v3299, %v3426
  %v3503 = vadd.f32 %v3300, %v3426
  %v3504 = vadd.f32 %v3301, %v3426
  %v3505 = vadd.f32 %v3302, %v3426
  %v3506 = vadd.f32 %v3303, %v3426
  %v3507 = vadd.f32 %v3304, %v3426
  %v3508 = vadd.f32 %v3305, %v3426
  %v3509 = vadd.f32 %v3306, %v3426
  %v3510 = vadd.f32 %v3307, %v3426
  %v3511 = vadd.f32 %v3308, %v3426
  %v3512 = vadd.f32 %v3309, %v3426
  %v3513 = vadd.f32 %v3310, %v3426
  %v3514 = vadd.f32 %v3311, %v3426
  %v3515 = vadd.f32 %v3312, %v3426
  %v3516 = vadd.f32 %v3313, %v3426
  %v3517 = vadd.f32 %v3314, %v3426
  %v3518 = vadd.f32 %v3315, %v3426
  %v3519 = vadd.f32 %v3316, %v3426
  %v3520 = vadd.f32 %v3317, %v3426
  %v3521 = vadd.f32 %v3318, %v3426
  %v3522 = vadd.f32 %v3319, %v3426
  %v3523 = vadd.f32 %v3320, %v3426
  %v3524 = vadd.f32 %v3321, %v3426
  %v3525 = vadd.f32 %v3322, %v3426
  %v3526 = vadd.f32 %v3323, %v3426
  %v3527 = vadd.f32 %v3324, %v3426
  %v3528 = vadd.f32 %v3325, %v3426
  %v3529 = vadd.f32 %v3326, %v3426
  %v3530 = vadd.f32 %v3327, %v3426
  %v3531 = vadd.f32 %v3328, %v3426
  %v3532 = vadd.f32 %v3329, %v3426
  %v3533 = vadd.f32 %v3330, %v3426
  %v3534 = vadd.f32 %v3331, %v3426
  %v3535 = vadd.f32 %v3332, %v3426
  %v3536 = vadd.f32 %v3333, %v3426
  %v3537 = vadd.f32 %v3334, %v3426
  %v3538 = vadd.f32 %v3335, %v3426
  %v3539 = vadd.f32 %v3336, %v3426
  %v3540 = vadd.f32 %v3337, %v3426
  %v3541 = vadd.f32 %v3338, %v3426
  %v3542 = vadd.f32 %v3339, %v3426
  %v3543 = vadd.f32 %v3340, %v3426
  %v3544 = vadd.f32 %v3341, %v3426
  %v3545 = vadd.f32 %v3342, %v3426
  %v3546 = vadd.f32 %v3343, %v3426
  %v3547 = vadd.f32 %v3344, %v3426
  %v3548 = vadd.f32 %v3345, %v3426
  %v3549 = vadd.f32 %v3346, %v3426
  %v3550 = vadd.f32 %v3347, %v3426
  %v3551 = vadd.f32 %v3348, %v3426
  %v3552 = vadd.f32 %v3349, %v3426
  %v3553 = vadd.f32 %v3350, %v3426
  %v3554 = vadd.f32 %v3351, %v3426
  %v3555 = vadd.f32 %v3352, %v3426
  %v3556 = vadd.f32 %v3353, %v3426
  %v3557 = vadd.f32 %v3354, %v3426
  %v3558 = vadd.f32 %v3355, %v3426
  %v3559 = vadd.f32 %v3356, %v3426
  %v3560 = vadd.f32 %v3357, %v3426
  %v3561 = vadd.f32 %v3358, %v3426
  %v3562 = vadd.f32 %v3359, %v3426
  %v3563 = vadd.f32 %v3360, %v3426
  %v3564 = vadd.f32 %v3361, %v3426
  %v3565 = vadd.f32 %v3362, %v3426
  %v3566 = vadd.f32 %v3363, %v3426
  %v3567 = vadd.f32 %v3364, %v3426
  %v3568 = vadd.f32 %v3365, %v3426
  %v3569 = vadd.f32 %v3366, %v3426
  %v3570 = vadd.f32 %v3367, %v3426
  %v3571 = vadd.f32 %v3368, %v3426
  %v3572 = vadd.f32 %v3369, %v3426
  %v3573 = vadd.f32 %v3370, %v3426
  %v3574 = vadd.f32 %v3371, %v3426
  %v3575 = vadd.f32 %v3372, %v3426
  %v3576 = vadd.f32 %v3373, %v3426
  %v3577 = vadd.f32 %v3374, %v3426
  %v3578 = vadd.f32 %v3375, %v3426
  %v3579 = vadd.f32 %v3376, %v3426
  %v3580 = vadd.f32 %v3377, %v3426
  %v3581 = vadd.f32 %v3378, %v3426
  %v3582 = vadd.f32 %v3379, %v3426
  %v3583 = vadd.f32 %v3380, %v3426
  %v3584 = vadd.f32 %v3381, %v3426
  %v3585 = vadd.f32 %v3382, %v3426
  %v3586 = vadd.f32 %v3383, %v3426
  %v3587 = vadd.f32 %v3384, %v3426
  %v3588 = vadd.f32 %v3385, %v3426
  %v3589 = vadd.f32 %v3386, %v3426
  %v3590 = vadd.f32 %v3387, %v3426
  %v3591 = vadd.f32 %v3388, %v3426
  %v3592 = vadd.f32 %v3389, %v3426
  %v3593 = vadd.f32 %v3390, %v3426
  %v3594 = vadd.f32 %v3391, %v3426
  %v3595 = vadd.f32 %v3392, %v3426
  %v3596 = vadd.f32 %v3393, %v3426
  %v3597 = vadd.f32 %v3394, %v3426
  %v3598 = vadd.f32 %v3395, %v3426
  %v3599 = vadd.f32 %v3396, %v3426
  %v3600 = vadd.f32 %v3397, %v3426
  %v3601 = vadd.f32 %v3398, %v3426
  %v3602 = vadd.f32 %v3399, %v3426
  %v3603 = vadd.f32 %v3400, %v3426
  %v3604 = vadd.f32 %v3401, %v3426
  %v3605 = vadd.f32 %v3402, %v3426
  %v3606 = vadd.f32 %v3403, %v3426
  %v3607 = vadd.f32 %v3404, %v3426
  %v3608 = vadd.f32 %v3405, %v3426
  %v3609 = vadd.f32 %v3406, %v3426
  %v3610 = vadd.f32 %v3407, %v3426
  %v3611 = vadd.f32 %v3408, %v3426
  %v3612 = vadd.f32 %v3409, %v3426
  %v3613 = vadd.f32 %v3410, %v3426
  %v3614 = vadd.f32 %v3411, %v3426
  %v3615 = vadd.f32 %v3412, %v3426
  %v3616 = vadd.f32 %v3413, %v3426
  %v3617 = vadd.f32 %v3414, %v3426
  %v3618 = vadd.f32 %v3415, %v3426
  %v3619 = vadd.f32 %v3416, %v3426
  %v3620 = vadd.f32 %v3417, %v3426
  %v3621 = vadd.f32 %v3418, %v3426
  %v3622 = vadd.f32 %v3419, %v3426
  %v3623 = vadd.f32 %v3420, %v3426
  %v3624 = vmax.f32 %v3428, 0.0
  %v3625 = vmax.f32 %v3429, 0.0
  %v3626 = vmax.f32 %v3430, 0.0
  %v3627 = vmax.f32 %v3431, 0.0
  %v3628 = vmax.f32 %v3432, 0.0
  %v3629 = vmax.f32 %v3433, 0.0
  %v3630 = vmax.f32 %v3434, 0.0
  %v3631 = vmax.f32 %v3435, 0.0
  %v3632 = vmax.f32 %v3436, 0.0
  %v3633 = vmax.f32 %v3437, 0.0
  %v3634 = vmax.f32 %v3438, 0.0
  %v3635 = vmax.f32 %v3439, 0.0
  %v3636 = vmax.f32 %v3440, 0.0
  %v3637 = vmax.f32 %v3441, 0.0
  %v3638 = vmax.f32 %v3442, 0.0
  %v3639 = vmax.f32 %v3443, 0.0
  %v3640 = vmax.f32 %v3444, 0.0
  %v3641 = vmax.f32 %v3445, 0.0
  %v3642 = vmax.f32 %v3446, 0.0
  %v3643 = vmax.f32 %v3447, 0.0
  %v3644 = vmax.f32 %v3448, 0.0
  %v3645 = vmax.f32 %v3449, 0.0
  %v3646 = vmax.f32 %v3450, 0.0
  %v3647 = vmax.f32 %v3451, 0.0
  %v3648 = vmax.f32 %v3452, 0.0
  %v3649 = vmax.f32 %v3453, 0.0
  %v3650 = vmax.f32 %v3454, 0.0
  %v3651 = vmax.f32 %v3455, 0.0
  %v3652 = vmax.f32 %v3456, 0.0
  %v3653 = vmax.f32 %v3457, 0.0
  %v3654 = vmax.f32 %v3458, 0.0
  %v3655 = vmax.f32 %v3459, 0.0
  %v3656 = vmax.f32 %v3460, 0.0
  %v3657 = vmax.f32 %v3461, 0.0
  %v3658 = vmax.f32 %v3462, 0.0
  %v3659 = vmax.f32 %v3463, 0.0
  %v3660 = vmax.f32 %v3464, 0.0
  %v3661 = vmax.f32 %v3465, 0.0
  %v3662 = vmax.f32 %v3466, 0.0
  %v3663 = vmax.f32 %v3467, 0.0
  %v3664 = vmax.f32 %v3468, 0.0
  %v3665 = vmax.f32 %v3469, 0.0
  %v3666 = vmax.f32 %v3470, 0.0
  %v3667 = vmax.f32 %v3471, 0.0
  %v3668 = vmax.f32 %v3472, 0.0
  %v3669 = vmax.f32 %v3473, 0.0
  %v3670 = vmax.f32 %v3474, 0.0
  %v3671 = vmax.f32 %v3475, 0.0
  %v3672 = vmax.f32 %v3476, 0.0
  %v3673 = vmax.f32 %v3477, 0.0
  %v3674 = vmax.f32 %v3478, 0.0
  %v3675 = vmax.f32 %v3479, 0.0
  %v3676 = vmax.f32 %v3480, 0.0
  %v3677 = vmax.f32 %v3481, 0.0
  %v3678 = vmax.f32 %v3482, 0.0
  %v3679 = vmax.f32 %v3483, 0.0
  %v3680 = vmax.f32 %v3484, 0.0
  %v3681 = vmax.f32 %v3485, 0.0
  %v3682 = vmax.f32 %v3486, 0.0
  %v3683 = vmax.f32 %v3487, 0.0
  %v3684 = vmax.f32 %v3488, 0.0
  %v3685 = vmax.f32 %v3489, 0.0
  %v3686 = vmax.f32 %v3490, 0.0
  %v3687 = vmax.f32 %v3491, 0.0
  %v3688 = vmax.f32 %v3492, 0.0
  %v3689 = vmax.f32 %v3493, 0.0
  %v3690 = vmax.f32 %v3494, 0.0
  %v3691 = vmax.f32 %v3495, 0.0
  %v3692 = vmax.f32 %v3496, 0.0
  %v3693 = vmax.f32 %v3497, 0.0
  %v3694 = vmax.f32 %v3498, 0.0
  %v3695 = vmax.f32 %v3499, 0.0
  %v3696 = vmax.f32 %v3500, 0.0
  %v3697 = vmax.f32 %v3501, 0.0
  %v3698 = vmax.f32 %v3502, 0.0
  %v3699 = vmax.f32 %v3503, 0.0
  %v3700 = vmax.f32 %v3504, 0.0
  %v3701 = vmax.f32 %v3505, 0.0
  %v3702 = vmax.f32 %v3506, 0.0
  %v3703 = vmax.f32 %v3507, 0.0
  %v3704 = vmax.f32 %v3508, 0.0
  %v3705 = vmax.f32 %v3509, 0.0
  %v3706 = vmax.f32 %v3510, 0.0
  %v3707 = vmax.f32 %v3511, 0.0
  %v3708 = vmax.f32 %v3512, 0.0
  %v3709 = vmax.f32 %v3513, 0.0
  %v3710 = vmax.f32 %v3514, 0.0
  %v3711 = vmax.f32 %v3515, 0.0
  %v3712 = vmax.f32 %v3516, 0.0
  %v3713 = vmax.f32 %v3517, 0.0
  %v3714 = vmax.f32 %v3518, 0.0
  %v3715 = vmax.f32 %v3519, 0.0
  %v3716 = vmax.f32 %v3520, 0.0
  %v3717 = vmax.f32 %v3521, 0.0
  %v3718 = vmax.f32 %v3522, 0.0
  %v3719 = vmax.f32 %v3523, 0.0
  %v3720 = vmax.f32 %v3524, 0.0
  %v3721 = vmax.f32 %v3525, 0.0
  %v3722 = vmax.f32 %v3526, 0.0
  %v3723 = vmax.f32 %v3527, 0.0
  %v3724 = vmax.f32 %v3528, 0.0
  %v3725 = vmax.f32 %v3529, 0.0
  %v3726 = vmax.f32 %v3530, 0.0
  %v3727 = vmax.f32 %v3531, 0.0
  %v3728 = vmax.f32 %v3532, 0.0
  %v3729 = vmax.f32 %v3533, 0.0
  %v3730 = vmax.f32 %v3534, 0.0
  %v3731 = vmax.f32 %v3535, 0.0
  %v3732 = vmax.f32 %v3536, 0.0
  %v3733 = vmax.f32 %v3537, 0.0
  %v3734 = vmax.f32 %v3538, 0.0
  %v3735 = vmax.f32 %v3539, 0.0
  %v3736 = vmax.f32 %v3540, 0.0
  %v3737 = vmax.f32 %v3541, 0.0
  %v3738 = vmax.f32 %v3542, 0.0
  %v3739 = vmax.f32 %v3543, 0.0
  %v3740 = vmax.f32 %v3544, 0.0
  %v3741 = vmax.f32 %v3545, 0.0
  %v3742 = vmax.f32 %v3546, 0.0
  %v3743 = vmax.f32 %v3547, 0.0
  %v3744 = vmax.f32 %v3548, 0.0
  %v3745 = vmax.f32 %v3549, 0.0
  %v3746 = vmax.f32 %v3550, 0.0
  %v3747 = vmax.f32 %v3551, 0.0
  %v3748 = vmax.f32 %v3552, 0.0
  %v3749 = vmax.f32 %v3553, 0.0
  %v3750 = vmax.f32 %v3554, 0.0
  %v3751 = vmax.f32 %v3555, 0.0
  %v3752 = vmax.f32 %v3556, 0.0
  %v3753 = vmax.f32 %v3557, 0.0
  %v3754 = vmax.f32 %v3558, 0.0
  %v3755 = vmax.f32 %v3559, 0.0
  %v3756 = vmax.f32 %v3560, 0.0
  %v3757 = vmax.f32 %v3561, 0.0
  %v3758 = vmax.f32 %v3562, 0.0
  %v3759 = vmax.f32 %v3563, 0.0
  %v3760 = vmax.f32 %v3564, 0.0
  %v3761 = vmax.f32 %v3565, 0.0
  %v3762 = vmax.f32 %v3566, 0.0
  %v3763 = vmax.f32 %v3567, 0.0
  %v3764 = vmax.f32 %v3568, 0.0
  %v3765 = vmax.f32 %v3569, 0.0
  %v3766 = vmax.f32 %v3570, 0.0
  %v3767 = vmax.f32 %v3571, 0.0
  %v3768 = vmax.f32 %v3572, 0.0
  %v3769 = vmax.f32 %v3573, 0.0
  %v3770 = vmax.f32 %v3574, 0.0
  %v3771 = vmax.f32 %v3575, 0.0
  %v3772 = vmax.f32 %v3576, 0.0
  %v3773 = vmax.f32 %v3577, 0.0
  %v3774 = vmax.f32 %v3578, 0.0
  %v3775 = vmax.f32 %v3579, 0.0
  %v3776 = vmax.f32 %v3580, 0.0
  %v3777 = vmax.f32 %v3581, 0.0
  %v3778 = vmax.f32 %v3582, 0.0
  %v3779 = vmax.f32 %v3583, 0.0
  %v3780 = vmax.f32 %v3584, 0.0
  %v3781 = vmax.f32 %v3585, 0.0
  %v3782 = vmax.f32 %v3586, 0.0
  %v3783 = vmax.f32 %v3587, 0.0
  %v3784 = vmax.f32 %v3588, 0.0
  %v3785 = vmax.f32 %v3589, 0.0
  %v3786 = vmax.f32 %v3590, 0.0
  %v3787 = vmax.f32 %v3591, 0.0
  %v3788 = vmax.f32 %v3592, 0.0
  %v3789 = vmax.f32 %v3593, 0.0
  %v3790 = vmax.f32 %v3594, 0.0
  %v3791 = vmax.f32 %v3595, 0.0
  %v3792 = vmax.f32 %v3596, 0.0
  %v3793 = vmax.f32 %v3597, 0.0
  %v3794 = vmax.f32 %v3598, 0.0
  %v3795 = vmax.f32 %v3599, 0.0
  %v3796 = vmax.f32 %v3600, 0.0
  %v3797 = vmax.f32 %v3601, 0.0
  %v3798 = vmax.f32 %v3602, 0.0
  %v3799 = vmax.f32 %v3603, 0.0
  %v3800 = vmax.f32 %v3604, 0.0
  %v3801 = vmax.f32 %v3605, 0.0
  %v3802 = vmax.f32 %v3606, 0.0
  %v3803 = vmax.f32 %v3607, 0.0
  %v3804 = vmax.f32 %v3608, 0.0
  %v3805 = vmax.f32 %v3609, 0.0
  %v3806 = vmax.f32 %v3610, 0.0
  %v3807 = vmax.f32 %v3611, 0.0
  %v3808 = vmax.f32 %v3612, 0.0
  %v3809 = vmax.f32 %v3613, 0.0
  %v3810 = vmax.f32 %v3614, 0.0
  %v3811 = vmax.f32 %v3615, 0.0
  %v3812 = vmax.f32 %v3616, 0.0
  %v3813 = vmax.f32 %v3617, 0.0
  %v3814 = vmax.f32 %v3618, 0.0
  %v3815 = vmax.f32 %v3619, 0.0
  %v3816 = vmax.f32 %v3620, 0.0
  %v3817 = vmax.f32 %v3621, 0.0
  %v3818 = vmax.f32 %v3622, 0.0
  %v3819 = vmax.f32 %v3623, 0.0
  %3820 = vst.msk [vmem:[%s4] sm:$0xff] %vm1830, %v3624
  %3821 = vst.msk [vmem:[%s4 + $0x8] sm:$0xff] %vm1830, %v3625
  %3822 = vst.msk [vmem:[%s4 + $0x10] sm:$0xff] %vm1830, %v3626
  %3823 = vst.msk [vmem:[%s4 + $0x18] sm:$0xff] %vm1830, %v3627
  %3824 = vst.msk [vmem:[%s4 + $0x20] sm:$0xff] %vm1830, %v3628
  %3825 = vst.msk [vmem:[%s4 + $0x28] sm:$0xff] %vm1830, %v3629
  %3826 = vst.msk [vmem:[%s4 + $0x30] sm:$0xff] %vm1830, %v3630
  %3827 = vst.msk [vmem:[%s4 + $0x38] sm:$0xff] %vm1830, %v3631
  %3828 = vst.msk [vmem:[%s4 + $0x40] sm:$0xff] %vm1830, %v3632
  %3829 = vst.msk [vmem:[%s4 + $0x48] sm:$0xff] %vm1830, %v3633
  %3830 = vst.msk [vmem:[%s4 + $0x50] sm:$0xff] %vm1830, %v3634
  %3831 = vst.msk [vmem:[%s4 + $0x58] sm:$0xff] %vm1830, %v3635
  %3832 = vst.msk [vmem:[%s4 + $0x60] sm:$0xff] %vm1830, %v3636
  %3833 = vst.msk [vmem:[%s4 + $0x68] sm:$0xff] %vm1830, %v3637
  %3834 = vst.msk [vmem:[%s4 + $0x70] sm:$0xff] %vm1830, %v3638
  %3835 = vst.msk [vmem:[%s4 + $0x78] sm:$0xff] %vm1830, %v3639
  %3836 = vst.msk [vmem:[%s4 + $0x80] sm:$0xff] %vm1830, %v3640
  %3837 = vst.msk [vmem:[%s4 + $0x88] sm:$0xff] %vm1830, %v3641
  %3838 = vst.msk [vmem:[%s4 + $0x90] sm:$0xff] %vm1830, %v3642
  %3839 = vst.msk [vmem:[%s4 + $0x98] sm:$0xff] %vm1830, %v3643
  %3840 = vst.msk [vmem:[%s4 + $0xa0] sm:$0xff] %vm1830, %v3644
  %3841 = vst.msk [vmem:[%s4 + $0xa8] sm:$0xff] %vm1830, %v3645
  %3842 = vst.msk [vmem:[%s4 + $0xb0] sm:$0xff] %vm1830, %v3646
  %3843 = vst.msk [vmem:[%s4 + $0xb8] sm:$0xff] %vm1830, %v3647
  %3844 = vst.msk [vmem:[%s4 + $0xc0] sm:$0xff] %vm1830, %v3648
  %3845 = vst.msk [vmem:[%s4 + $0xc8] sm:$0xff] %vm1830, %v3649
  %3846 = vst.msk [vmem:[%s4 + $0xd0] sm:$0xff] %vm1830, %v3650
  %3847 = vst.msk [vmem:[%s4 + $0xd8] sm:$0xff] %vm1830, %v3651
  %3848 = vst.msk [vmem:[%s4 + $0xe0] sm:$0xff] %vm1830, %v3652
  %3849 = vst.msk [vmem:[%s4 + $0xe8] sm:$0xff] %vm1830, %v3653
  %3850 = vst.msk [vmem:[%s4 + $0xf0] sm:$0xff] %vm1830, %v3654
  %3851 = vst.msk [vmem:[%s4 + $0xf8] sm:$0xff] %vm1830, %v3655
  %3852 = vst.msk [vmem:[%s4 + $0x100] sm:$0xff] %vm1830, %v3656
  %3853 = vst.msk [vmem:[%s4 + $0x108] sm:$0xff] %vm1830, %v3657
  %3854 = vst.msk [vmem:[%s4 + $0x110] sm:$0xff] %vm1830, %v3658
  %3855 = vst.msk [vmem:[%s4 + $0x118] sm:$0xff] %vm1830, %v3659
  %3856 = vst.msk [vmem:[%s4 + $0x120] sm:$0xff] %vm1830, %v3660
  %3857 = vst.msk [vmem:[%s4 + $0x128] sm:$0xff] %vm1830, %v3661
  %3858 = vst.msk [vmem:[%s4 + $0x130] sm:$0xff] %vm1830, %v3662
  %3859 = vst.msk [vmem:[%s4 + $0x138] sm:$0xff] %vm1830, %v3663
  %3860 = vst.msk [vmem:[%s4 + $0x140] sm:$0xff] %vm1830, %v3664
  %3861 = vst.msk [vmem:[%s4 + $0x148] sm:$0xff] %vm1830, %v3665
  %3862 = vst.msk [vmem:[%s4 + $0x150] sm:$0xff] %vm1830, %v3666
  %3863 = vst.msk [vmem:[%s4 + $0x158] sm:$0xff] %vm1830, %v3667
  %3864 = vst.msk [vmem:[%s4 + $0x160] sm:$0xff] %vm1830, %v3668
  %3865 = vst.msk [vmem:[%s4 + $0x168] sm:$0xff] %vm1830, %v3669
  %3866 = vst.msk [vmem:[%s4 + $0x170] sm:$0xff] %vm1830, %v3670
  %3867 = vst.msk [vmem:[%s4 + $0x178] sm:$0xff] %vm1830, %v3671
  %3868 = vst.msk [vmem:[%s4 + $0x180] sm:$0xff] %vm1830, %v3672
  %3869 = vst.msk [vmem:[%s4 + $0x188] sm:$0xff] %vm1830, %v3673
  %3870 = vst.msk [vmem:[%s4 + $0x190] sm:$0xff] %vm1830, %v3674
  %3871 = vst.msk [vmem:[%s4 + $0x198] sm:$0xff] %vm1830, %v3675
  %3872 = vst.msk [vmem:[%s4 + $0x1a0] sm:$0xff] %vm1830, %v3676
  %3873 = vst.msk [vmem:[%s4 + $0x1a8] sm:$0xff] %vm1830, %v3677
  %3874 = vst.msk [vmem:[%s4 + $0x1b0] sm:$0xff] %vm1830, %v3678
  %3875 = vst.msk [vmem:[%s4 + $0x1b8] sm:$0xff] %vm1830, %v3679
  %3876 = vst.msk [vmem:[%s4 + $0x1c0] sm:$0xff] %vm1830, %v3680
  %3877 = vst.msk [vmem:[%s4 + $0x1c8] sm:$0xff] %vm1830, %v3681
  %3878 = vst.msk [vmem:[%s4 + $0x1d0] sm:$0xff] %vm1830, %v3682
  %3879 = vst.msk [vmem:[%s4 + $0x1d8] sm:$0xff] %vm1830, %v3683
  %3880 = vst.msk [vmem:[%s4 + $0x1e0] sm:$0xff] %vm1830, %v3684
  %3881 = vst.msk [vmem:[%s4 + $0x1e8] sm:$0xff] %vm1830, %v3685
  %3882 = vst.msk [vmem:[%s4 + $0x1f0] sm:$0xff] %vm1830, %v3686
  %3883 = vst.msk [vmem:[%s4 + $0x1f8] sm:$0xff] %vm1830, %v3687
  %3884 = vst.msk [vmem:[%s4 + $0x200] sm:$0xff] %vm1830, %v3688
  %3885 = vst.msk [vmem:[%s4 + $0x208] sm:$0xff] %vm1830, %v3689
  %3886 = vst.msk [vmem:[%s4 + $0x210] sm:$0xff] %vm1830, %v3690
  %3887 = vst.msk [vmem:[%s4 + $0x218] sm:$0xff] %vm1830, %v3691
  %3888 = vst.msk [vmem:[%s4 + $0x220] sm:$0xff] %vm1830, %v3692
  %3889 = vst.msk [vmem:[%s4 + $0x228] sm:$0xff] %vm1830, %v3693
  %3890 = vst.msk [vmem:[%s4 + $0x230] sm:$0xff] %vm1830, %v3694
  %3891 = vst.msk [vmem:[%s4 + $0x238] sm:$0xff] %vm1830, %v3695
  %3892 = vst.msk [vmem:[%s4 + $0x240] sm:$0xff] %vm1830, %v3696
  %3893 = vst.msk [vmem:[%s4 + $0x248] sm:$0xff] %vm1830, %v3697
  %3894 = vst.msk [vmem:[%s4 + $0x250] sm:$0xff] %vm1830, %v3698
  %3895 = vst.msk [vmem:[%s4 + $0x258] sm:$0xff] %vm1830, %v3699
  %3896 = vst.msk [vmem:[%s4 + $0x260] sm:$0xff] %vm1830, %v3700
  %3897 = vst.msk [vmem:[%s4 + $0x268] sm:$0xff] %vm1830, %v3701
  %3898 = vst.msk [vmem:[%s4 + $0x270] sm:$0xff] %vm1830, %v3702
  %3899 = vst.msk [vmem:[%s4 + $0x278] sm:$0xff] %vm1830, %v3703
  %3900 = vst.msk [vmem:[%s4 + $0x280] sm:$0xff] %vm1830, %v3704
  %3901 = vst.msk [vmem:[%s4 + $0x288] sm:$0xff] %vm1830, %v3705
  %3902 = vst.msk [vmem:[%s4 + $0x290] sm:$0xff] %vm1830, %v3706
  %3903 = vst.msk [vmem:[%s4 + $0x298] sm:$0xff] %vm1830, %v3707
  %3904 = vst.msk [vmem:[%s4 + $0x2a0] sm:$0xff] %vm1830, %v3708
  %3905 = vst.msk [vmem:[%s4 + $0x2a8] sm:$0xff] %vm1830, %v3709
  %3906 = vst.msk [vmem:[%s4 + $0x2b0] sm:$0xff] %vm1830, %v3710
  %3907 = vst.msk [vmem:[%s4 + $0x2b8] sm:$0xff] %vm1830, %v3711
  %3908 = vst.msk [vmem:[%s4 + $0x2c0] sm:$0xff] %vm1830, %v3712
  %3909 = vst.msk [vmem:[%s4 + $0x2c8] sm:$0xff] %vm1830, %v3713
  %3910 = vst.msk [vmem:[%s4 + $0x2d0] sm:$0xff] %vm1830, %v3714
  %3911 = vst.msk [vmem:[%s4 + $0x2d8] sm:$0xff] %vm1830, %v3715
  %3912 = vst.msk [vmem:[%s4 + $0x2e0] sm:$0xff] %vm1830, %v3716
  %3913 = vst.msk [vmem:[%s4 + $0x2e8] sm:$0xff] %vm1830, %v3717
  %3914 = vst.msk [vmem:[%s4 + $0x2f0] sm:$0xff] %vm1830, %v3718
  %3915 = vst.msk [vmem:[%s4 + $0x2f8] sm:$0xff] %vm1830, %v3719
  %3916 = vst.msk [vmem:[%s4 + $0x300] sm:$0xff] %vm1830, %v3720
  %3917 = vst.msk [vmem:[%s4 + $0x308] sm:$0xff] %vm1830, %v3721
  %3918 = vst.msk [vmem:[%s4 + $0x310] sm:$0xff] %vm1830, %v3722
  %3919 = vst.msk [vmem:[%s4 + $0x318] sm:$0xff] %vm1830, %v3723
  %3920 = vst.msk [vmem:[%s4 + $0x320] sm:$0xff] %vm1830, %v3724
  %3921 = vst.msk [vmem:[%s4 + $0x328] sm:$0xff] %vm1830, %v3725
  %3922 = vst.msk [vmem:[%s4 + $0x330] sm:$0xff] %vm1830, %v3726
  %3923 = vst.msk [vmem:[%s4 + $0x338] sm:$0xff] %vm1830, %v3727
  %3924 = vst.msk [vmem:[%s4 + $0x340] sm:$0xff] %vm1830, %v3728
  %3925 = vst.msk [vmem:[%s4 + $0x348] sm:$0xff] %vm1830, %v3729
  %3926 = vst.msk [vmem:[%s4 + $0x350] sm:$0xff] %vm1830, %v3730
  %3927 = vst.msk [vmem:[%s4 + $0x358] sm:$0xff] %vm1830, %v3731
  %3928 = vst.msk [vmem:[%s4 + $0x360] sm:$0xff] %vm1830, %v3732
  %3929 = vst.msk [vmem:[%s4 + $0x368] sm:$0xff] %vm1830, %v3733
  %3930 = vst.msk [vmem:[%s4 + $0x370] sm:$0xff] %vm1830, %v3734
  %3931 = vst.msk [vmem:[%s4 + $0x378] sm:$0xff] %vm1830, %v3735
  %3932 = vst.msk [vmem:[%s4 + $0x380] sm:$0xff] %vm1830, %v3736
  %3933 = vst.msk [vmem:[%s4 + $0x388] sm:$0xff] %vm1830, %v3737
  %3934 = vst.msk [vmem:[%s4 + $0x390] sm:$0xff] %vm1830, %v3738
  %3935 = vst.msk [vmem:[%s4 + $0x398] sm:$0xff] %vm1830, %v3739
  %3936 = vst.msk [vmem:[%s4 + $0x3a0] sm:$0xff] %vm1830, %v3740
  %3937 = vst.msk [vmem:[%s4 + $0x3a8] sm:$0xff] %vm1830, %v3741
  %3938 = vst.msk [vmem:[%s4 + $0x3b0] sm:$0xff] %vm1830, %v3742
  %3939 = vst.msk [vmem:[%s4 + $0x3b8] sm:$0xff] %vm1830, %v3743
  %3940 = vst.msk [vmem:[%s4 + $0x3c0] sm:$0xff] %vm1830, %v3744
  %3941 = vst.msk [vmem:[%s4 + $0x3c8] sm:$0xff] %vm1830, %v3745
  %3942 = vst.msk [vmem:[%s4 + $0x3d0] sm:$0xff] %vm1830, %v3746
  %3943 = vst.msk [vmem:[%s4 + $0x3d8] sm:$0xff] %vm1830, %v3747
  %3944 = vst.msk [vmem:[%s4 + $0x3e0] sm:$0xff] %vm1830, %v3748
  %3945 = vst.msk [vmem:[%s4 + $0x3e8] sm:$0xff] %vm1830, %v3749
  %3946 = vst.msk [vmem:[%s4 + $0x3f0] sm:$0xff] %vm1830, %v3750
  %3947 = vst.msk [vmem:[%s4 + $0x3f8] sm:$0xff] %vm1830, %v3751
  %3948 = vst.msk [vmem:[%s4 + $0x400] sm:$0xff] %vm1830, %v3752
  %3949 = vst.msk [vmem:[%s4 + $0x408] sm:$0xff] %vm1830, %v3753
  %3950 = vst.msk [vmem:[%s4 + $0x410] sm:$0xff] %vm1830, %v3754
  %3951 = vst.msk [vmem:[%s4 + $0x418] sm:$0xff] %vm1830, %v3755
  %3952 = vst.msk [vmem:[%s4 + $0x420] sm:$0xff] %vm1830, %v3756
  %3953 = vst.msk [vmem:[%s4 + $0x428] sm:$0xff] %vm1830, %v3757
  %3954 = vst.msk [vmem:[%s4 + $0x430] sm:$0xff] %vm1830, %v3758
  %3955 = vst.msk [vmem:[%s4 + $0x438] sm:$0xff] %vm1830, %v3759
  %3956 = vst.msk [vmem:[%s4 + $0x440] sm:$0xff] %vm1830, %v3760
  %3957 = vst.msk [vmem:[%s4 + $0x448] sm:$0xff] %vm1830, %v3761
  %3958 = vst.msk [vmem:[%s4 + $0x450] sm:$0xff] %vm1830, %v3762
  %3959 = vst.msk [vmem:[%s4 + $0x458] sm:$0xff] %vm1830, %v3763
  %3960 = vst.msk [vmem:[%s4 + $0x460] sm:$0xff] %vm1830, %v3764
  %3961 = vst.msk [vmem:[%s4 + $0x468] sm:$0xff] %vm1830, %v3765
  %3962 = vst.msk [vmem:[%s4 + $0x470] sm:$0xff] %vm1830, %v3766
  %3963 = vst.msk [vmem:[%s4 + $0x478] sm:$0xff] %vm1830, %v3767
  %3964 = vst.msk [vmem:[%s4 + $0x480] sm:$0xff] %vm1830, %v3768
  %3965 = vst.msk [vmem:[%s4 + $0x488] sm:$0xff] %vm1830, %v3769
  %3966 = vst.msk [vmem:[%s4 + $0x490] sm:$0xff] %vm1830, %v3770
  %3967 = vst.msk [vmem:[%s4 + $0x498] sm:$0xff] %vm1830, %v3771
  %3968 = vst.msk [vmem:[%s4 + $0x4a0] sm:$0xff] %vm1830, %v3772
  %3969 = vst.msk [vmem:[%s4 + $0x4a8] sm:$0xff] %vm1830, %v3773
  %3970 = vst.msk [vmem:[%s4 + $0x4b0] sm:$0xff] %vm1830, %v3774
  %3971 = vst.msk [vmem:[%s4 + $0x4b8] sm:$0xff] %vm1830, %v3775
  %3972 = vst.msk [vmem:[%s4 + $0x4c0] sm:$0xff] %vm1830, %v3776
  %3973 = vst.msk [vmem:[%s4 + $0x4c8] sm:$0xff] %vm1830, %v3777
  %3974 = vst.msk [vmem:[%s4 + $0x4d0] sm:$0xff] %vm1830, %v3778
  %3975 = vst.msk [vmem:[%s4 + $0x4d8] sm:$0xff] %vm1830, %v3779
  %3976 = vst.msk [vmem:[%s4 + $0x4e0] sm:$0xff] %vm1830, %v3780
  %3977 = vst.msk [vmem:[%s4 + $0x4e8] sm:$0xff] %vm1830, %v3781
  %3978 = vst.msk [vmem:[%s4 + $0x4f0] sm:$0xff] %vm1830, %v3782
  %3979 = vst.msk [vmem:[%s4 + $0x4f8] sm:$0xff] %vm1830, %v3783
  %3980 = vst.msk [vmem:[%s4 + $0x500] sm:$0xff] %vm1830, %v3784
  %3981 = vst.msk [vmem:[%s4 + $0x508] sm:$0xff] %vm1830, %v3785
  %3982 = vst.msk [vmem:[%s4 + $0x510] sm:$0xff] %vm1830, %v3786
  %3983 = vst.msk [vmem:[%s4 + $0x518] sm:$0xff] %vm1830, %v3787
  %3984 = vst.msk [vmem:[%s4 + $0x520] sm:$0xff] %vm1830, %v3788
  %3985 = vst.msk [vmem:[%s4 + $0x528] sm:$0xff] %vm1830, %v3789
  %3986 = vst.msk [vmem:[%s4 + $0x530] sm:$0xff] %vm1830, %v3790
  %3987 = vst.msk [vmem:[%s4 + $0x538] sm:$0xff] %vm1830, %v3791
  %3988 = vst.msk [vmem:[%s4 + $0x540] sm:$0xff] %vm1830, %v3792
  %3989 = vst.msk [vmem:[%s4 + $0x548] sm:$0xff] %vm1830, %v3793
  %3990 = vst.msk [vmem:[%s4 + $0x550] sm:$0xff] %vm1830, %v3794
  %3991 = vst.msk [vmem:[%s4 + $0x558] sm:$0xff] %vm1830, %v3795
  %3992 = vst.msk [vmem:[%s4 + $0x560] sm:$0xff] %vm1830, %v3796
  %3993 = vst.msk [vmem:[%s4 + $0x568] sm:$0xff] %vm1830, %v3797
  %3994 = vst.msk [vmem:[%s4 + $0x570] sm:$0xff] %vm1830, %v3798
  %3995 = vst.msk [vmem:[%s4 + $0x578] sm:$0xff] %vm1830, %v3799
  %3996 = vst.msk [vmem:[%s4 + $0x580] sm:$0xff] %vm1830, %v3800
  %3997 = vst.msk [vmem:[%s4 + $0x588] sm:$0xff] %vm1830, %v3801
  %3998 = vst.msk [vmem:[%s4 + $0x590] sm:$0xff] %vm1830, %v3802
  %3999 = vst.msk [vmem:[%s4 + $0x598] sm:$0xff] %vm1830, %v3803
  %4000 = vst.msk [vmem:[%s4 + $0x5a0] sm:$0xff] %vm1830, %v3804
  %4001 = vst.msk [vmem:[%s4 + $0x5a8] sm:$0xff] %vm1830, %v3805
  %4002 = vst.msk [vmem:[%s4 + $0x5b0] sm:$0xff] %vm1830, %v3806
  %4003 = vst.msk [vmem:[%s4 + $0x5b8] sm:$0xff] %vm1830, %v3807
  %4004 = vst.msk [vmem:[%s4 + $0x5c0] sm:$0xff] %vm1830, %v3808
  %4005 = vst.msk [vmem:[%s4 + $0x5c8] sm:$0xff] %vm1830, %v3809
  %4006 = vst.msk [vmem:[%s4 + $0x5d0] sm:$0xff] %vm1830, %v3810
  %4007 = vst.msk [vmem:[%s4 + $0x5d8] sm:$0xff] %vm1830, %v3811
  %4008 = vst.msk [vmem:[%s4 + $0x5e0] sm:$0xff] %vm1830, %v3812
  %4009 = vst.msk [vmem:[%s4 + $0x5e8] sm:$0xff] %vm1830, %v3813
  %4010 = vst.msk [vmem:[%s4 + $0x5f0] sm:$0xff] %vm1830, %v3814
  %4011 = vst.msk [vmem:[%s4 + $0x5f8] sm:$0xff] %vm1830, %v3815
  %4012 = vst.msk [vmem:[%s4 + $0x600] sm:$0xff] %vm1830, %v3816
  %4013 = vst.msk [vmem:[%s4 + $0x608] sm:$0xff] %vm1830, %v3817
  %4014 = vst.msk [vmem:[%s4 + $0x610] sm:$0xff] %vm1830, %v3818
  %4015 = vst.msk [vmem:[%s4 + $0x618] sm:$0xff] %vm1830, %v3819
  // Predicated region
  $region18: #{tpu_custom_call.1} parent=0 // pred_check
    _
  $region19: #{tpu_custom_call.1} parent=0 // pred_check_branch
    %4017 = sbr.rel (0) target = $region21
  $region20: #{tpu_custom_call.1} parent=0 // pred_region
    _
  $region21: #{tpu_custom_call.1} parent=0 // pred_fallthru
    _
  // Predicated region
  $region22: #{tpu_custom_call.1} parent=0 // pred_check
    _
  $region23: #{tpu_custom_call.1} parent=0 // pred_check_branch
    %4019 = sbr.rel (0) target = $region25
  $region24: #{tpu_custom_call.1} parent=0 // pred_region
    _
  $region25: #{tpu_custom_call.1} parent=0 // pred_fallthru
    _

</llo_original>
